<compile_context>
chip_gen: v6e
topology: v6e:2x2x1
jax: 0.10.0
libtpu: 0.0.40
codegen_flags: <defaults>
</compile_context>

<pallas_src>
import functools
import math

import jax
import jax.numpy as jnp
from jax.experimental import pallas as pl
from jax.experimental.pallas import tpu as pltpu


def _fusion_kernel(x_ref, g1_ref, b1_ref, wqkv_ref, bqkv_ref, wo_ref, bo_ref,
                   g2_ref, b2_ref, w1_ref, bb1_ref, w2_ref, bb2_ref,
                   out_ref, k_scr, v_scr,
                   *, hidden_dim, num_heads, eps, block_b, seq_len,
                   kv_block, ffn_block):
    H = hidden_dim
    hd = H // num_heads
    S = seq_len
    M = block_b * S
    n_kv = S // kv_block
    ffn_dim = w1_ref.shape[1]
    n_ffn = ffn_dim // ffn_block
    scale = 1.0 / math.sqrt(hd)
    bf16 = jnp.bfloat16

    def layernorm(v, g, b):
        mu = jnp.mean(v, axis=-1, keepdims=True)
        var = jnp.mean(jnp.square(v - mu), axis=-1, keepdims=True)
        return (v - mu) * jax.lax.rsqrt(var + eps) * g + b

    x = x_ref[...].reshape(M, H).astype(jnp.float32)          # (M, H) f32 residual

    # ---- LayerNorm 1 + fused QKV projection (bf16 MXU operands, f32 accumulate) ----
    xn1 = layernorm(x, g1_ref[...], b1_ref[...])
    qkv = jnp.dot(xn1.astype(bf16), wqkv_ref[...],
                  preferred_element_type=jnp.float32) + bqkv_ref[...]
    # cast to bf16 immediately; K/V go to VMEM scratch so the kv fori_loop can slice
    # them with pl.ds (bounded live state, half the activation footprint).
    q = qkv[:, :H].astype(bf16)
    k_scr[...] = qkv[:, H:2 * H].astype(bf16)
    v_scr[...] = qkv[:, 2 * H:].astype(bf16)

    # ---- multi-head self-attention, flash-style over KV blocks ----
    attn_rows = []
    for bi in range(block_b):                       # static, small
        r = bi * S
        head_outs = []
        for h in range(num_heads):                  # static, small
            c = h * hd
            qh = q[r:r + S, c:c + hd]               # (S, hd) bf16

            def kv_body(kb, carry):
                m_i, l_i, acc = carry
                kr = pl.multiple_of(r + kb * kv_block, kv_block)
                kh = k_scr[pl.ds(kr, kv_block), c:c + hd]       # (tk, hd) bf16
                vh = v_scr[pl.ds(kr, kv_block), c:c + hd]
                # contract last axes of both operands: no (tk, hd) transpose
                s = jax.lax.dot_general(
                    qh, kh, (((1,), (1,)), ((), ())),
                    preferred_element_type=jnp.float32) * scale  # (S, tk) f32
                m_new = jnp.maximum(m_i, jnp.max(s, axis=-1, keepdims=True))
                alpha = jnp.exp(m_i - m_new)
                p = jnp.exp(s - m_new)
                l_new = alpha * l_i + jnp.sum(p, axis=-1, keepdims=True)
                acc_new = alpha * acc + jnp.dot(p.astype(bf16), vh,
                                                preferred_element_type=jnp.float32)
                return m_new, l_new, acc_new

            init = (jnp.full((S, 1), -jnp.inf, jnp.float32),
                    jnp.zeros((S, 1), jnp.float32),
                    jnp.zeros((S, hd), jnp.float32))
            _, l_f, acc_f = jax.lax.fori_loop(0, n_kv, kv_body, init,
                                              unroll=n_kv <= 4)
            head_outs.append(acc_f * pl.reciprocal(l_f, approx=True))

        # one (S,H)@(H,H) output projection per batch row (full-width MXU rows)
        if num_heads > 1:
            o_cat = jnp.concatenate(head_outs, axis=-1).astype(bf16)
        else:
            o_cat = head_outs[0].astype(bf16)
        attn_rows.append(jnp.dot(o_cat, wo_ref[...],
                                 preferred_element_type=jnp.float32))
    attn = jnp.concatenate(attn_rows, axis=0) if block_b > 1 else attn_rows[0]

    # residual 1 (dropout1 == identity in eval mode)
    x = x + attn + bo_ref[...]

    # ---- LayerNorm 2 + FusionFFN: Linear(H,4H) -> ReLU -> Linear(4H,H), chunked ----
    xn2 = layernorm(x, g2_ref[...], b2_ref[...]).astype(bf16)

    def ffn_body(ci, acc):
        f = pl.multiple_of(ci * ffn_block, ffn_block)
        h1 = jnp.dot(xn2, w1_ref[:, pl.ds(f, ffn_block)],
                     preferred_element_type=jnp.float32) + bb1_ref[:, pl.ds(f, ffn_block)]
        h1 = jnp.maximum(h1, 0.0).astype(bf16)
        return acc + jnp.dot(h1, w2_ref[pl.ds(f, ffn_block), :],
                             preferred_element_type=jnp.float32)

    ffn = jax.lax.fori_loop(0, n_ffn, ffn_body, jnp.zeros((M, H), jnp.float32),
                            unroll=n_ffn <= 2)

    # residual 2 (dropout2 == identity in eval mode)
    x = x + ffn + bb2_ref[...]
    out_ref[...] = x.reshape(block_b, S, H).astype(out_ref.dtype)


def _vmem_capacity_bytes():
    """Physical VMEM of the local TPU generation (fallback: 128 MiB = v5e/v6e)."""
    try:
        cap = getattr(pltpu.get_tpu_info(), "vmem_capacity_bytes", None)
        if cap:
            return int(cap)
    except Exception:
        pass
    return 128 << 20


def custom_fusion_layer(x, params, *, num_heads, eps=1e-5, block_b=None,
                        kv_block=None, ffn_block=None):
    """x: (B, S, H) float32. params: dict of weights (stored (in, out) for x @ W)."""
    B, S, H = x.shape
    assert H % num_heads == 0
    ffn_dim = params["w_ffn1"].shape[1]

    bf16 = jnp.bfloat16
    # matmul weights in bf16 (MXU-native, half the VMEM / DMA footprint);
    # biases and LayerNorm affine params stay f32.
    weight_args = [
        params["ln1_g"], params["ln1_b"],
        params["w_qkv"].astype(bf16), params["b_qkv"],
        params["w_out"].astype(bf16), params["b_out"],
        params["ln2_g"], params["ln2_b"],
        params["w_ffn1"].astype(bf16), params["b_ffn1"],
        params["w_ffn2"].astype(bf16), params["b_ffn2"],
    ]

    def nbytes(a):
        return a.size * a.dtype.itemsize
    w_bytes = sum(nbytes(a) for a in weight_args)

    # ---- generation-aware VMEM budget (v7x: 64 MiB physical -> ~48 MiB usable;
    #      v5e/v6e: 128 MiB -> ~96 MiB). 96 MiB would be illegal on v7x. ----
    vmem_cap = _vmem_capacity_bytes()
    vmem_budget = max(min((vmem_cap * 3) // 4, 96 << 20), 32 << 20)

    # ---- KV block size for the flash-style attention loop ----
    if kv_block is None:
        kv_block = S
        for cand in (512, 256, 128):
            if S > cand and S % cand == 0:
                kv_block = cand
                break
    assert S % kv_block == 0

    # ---- chunk size over the 4H FFN intermediate dim ----
    if ffn_block is None:
        ffn_block = ffn_dim
        for cand in (1024, 512, 256):
            if ffn_dim > cand and ffn_dim % cand == 0:
                ffn_block = cand
                break
    assert ffn_dim % ffn_block == 0

    # ---- batch rows per grid step: explicit accounting of live intermediates,
    #      and keep grid >= 2 so v7x's two TensorCores both get work. ----
    def step_bytes(bb):
        m = bb * S
        act = (2 * 2 * m * H * 4        # x in + out blocks, double-buffered
               + 4 * m * H * 4          # f32 slabs: residual, LN out, attn, FFN acc
               + m * 3 * H * 2          # bf16 qkv value
               + 2 * m * H * 2          # bf16 K/V scratch
               + m * kv_block * 4)      # live score tile
        return act + 2 * w_bytes + (4 << 20)   # conservative: weights double-buffered

    if block_b is None:
        block_b = 1
        for cand in range(B, 0, -1):
            if B % cand != 0:
                continue
            if B >= 2 and B // cand < 2:
                continue                 # leave >= 2 grid steps for megacore sharding
            if step_bytes(cand) <= vmem_budget:
                block_b = cand
                break
    assert B % block_b == 0

    vmem_limit = int(min(max(step_bytes(block_b), 32 << 20), vmem_budget))

    kernel = functools.partial(
        _fusion_kernel, hidden_dim=H, num_heads=num_heads, eps=eps,
        block_b=block_b, seq_len=S, kv_block=kv_block, ffn_block=ffn_block)

    # advisory cost estimate for the whole call (helps XLA schedule around it)
    mtot = B * S
    flops = (2 * mtot * H * 3 * H          # QKV projection
             + 4 * mtot * S * H            # QK^T and P@V
             + 2 * mtot * H * H            # output projection
             + 4 * mtot * H * ffn_dim)     # FFN
    cost = pl.CostEstimate(
        flops=flops,
        transcendentals=mtot * S * num_heads + 2 * mtot,
        bytes_accessed=2 * x.size * x.dtype.itemsize + w_bytes)

    out_shape = jax.ShapeDtypeStruct((B, S, H), x.dtype)

    def run(single_buffer_weights):
        def w_spec(a):
            if single_buffer_weights:
                # constant index map -> no need for 2-deep pipeline buffers
                return pl.BlockSpec(a.shape, lambda b: (0, 0),
                                    pipeline_mode=pl.Buffered(1))
            return pl.BlockSpec(a.shape, lambda b: (0, 0))

        return pl.pallas_call(
            kernel,
            out_shape=out_shape,
            grid_spec=pltpu.PrefetchScalarGridSpec(
                num_scalar_prefetch=0,
                grid=(B // block_b,),
                in_specs=([pl.BlockSpec((block_b, S, H), lambda b: (b, 0, 0))]
                          + [w_spec(a) for a in weight_args]),
                out_specs=pl.BlockSpec((block_b, S, H), lambda b: (b, 0, 0)),
                scratch_shapes=[pltpu.VMEM((block_b * S, H), jnp.bfloat16),
                                pltpu.VMEM((block_b * S, H), jnp.bfloat16)],
            ),
            compiler_params=pltpu.CompilerParams(
                dimension_semantics=("parallel",),
                vmem_limit_bytes=vmem_limit,
            ),
            cost_estimate=cost,
        )(x, *weight_args)

    try:
        return run(True)
    except Exception:
        # Fallback for jax builds where pipeline_mode=pl.Buffered(1) on a top-level
        # BlockSpec is not supported: default (double-buffered) weight specs.
        return run(False)


def init_params(key, hidden_dim):
    """Deterministic synthetic parameters. Linear weights stored as (in, out) for x @ W."""
    ks = jax.random.split(key, 6)
    std = 0.02
    H = hidden_dim
    params = {
        "ln1_g": jnp.ones((1, H), jnp.float32),
        "ln1_b": jnp.zeros((1, H), jnp.float32),
        "ln2_g": jnp.ones((1, H), jnp.float32),
        "ln2_b": jnp.zeros((1, H), jnp.float32),
        # MultiheadAttention in_proj (3H, H) in torch -> transposed (H, 3H)
        "w_qkv": std * jax.random.normal(ks[0], (H, 3 * H), jnp.float32),
        "b_qkv": jnp.zeros((1, 3 * H), jnp.float32),
        # out_proj (H, H) -> transposed (H, H)
        "w_out": std * jax.random.normal(ks[1], (H, H), jnp.float32),
        "b_out": jnp.zeros((1, H), jnp.float32),
        # FFN: Linear(H, 4H) and Linear(4H, H), stored transposed
        "w_ffn1": std * jax.random.normal(ks[2], (H, 4 * H), jnp.float32),
        "b_ffn1": std * jax.random.normal(ks[3], (1, 4 * H), jnp.float32),
        "w_ffn2": std * jax.random.normal(ks[4], (4 * H, H), jnp.float32),
        "b_ffn2": std * jax.random.normal(ks[5], (1, H), jnp.float32),
    }
    return params


def _reference(x, p, num_heads, eps=1e-5):
    """Pure-JAX f32 reference of the PyTorch forward (eval mode) for a sanity check."""
    B, S, H = x.shape
    hd = H // num_heads

    def ln(v, g, b):
        mu = jnp.mean(v, -1, keepdims=True)
        var = jnp.mean((v - mu) ** 2, -1, keepdims=True)
        return (v - mu) * jax.lax.rsqrt(var + eps) * g + b

    xn1 = ln(x, p["ln1_g"][0], p["ln1_b"][0])
    qkv = xn1 @ p["w_qkv"] + p["b_qkv"][0]
    q, k, v = jnp.split(qkv, 3, axis=-1)
    q = q.reshape(B, S, num_heads, hd).transpose(0, 2, 1, 3)
    k = k.reshape(B, S, num_heads, hd).transpose(0, 2, 1, 3)
    v = v.reshape(B, S, num_heads, hd).transpose(0, 2, 1, 3)
    s = jnp.einsum("bhqd,bhkd->bhqk", q, k) / math.sqrt(hd)
    pw = jax.nn.softmax(s, axis=-1)
    att = jnp.einsum("bhqk,bhkd->bhqd", pw, v).transpose(0, 2, 1, 3).reshape(B, S, H)
    att = att @ p["w_out"] + p["b_out"][0]
    x = x + att
    xn2 = ln(x, p["ln2_g"][0], p["ln2_b"][0])
    ffn = jnp.maximum(xn2 @ p["w_ffn1"] + p["b_ffn1"][0], 0.0) @ p["w_ffn2"] + p["b_ffn2"][0]
    return x + ffn


if __name__ == "__main__":
    B, S, H, NH = 2, 8, 32, 4
    key = jax.random.PRNGKey(0)
    kx, kp = jax.random.split(key)
    x = jax.random.normal(kx, (B, S, H), jnp.float32)
    params = init_params(kp, H)

    out = custom_fusion_layer(x, params, num_heads=NH)
    out = jax.block_until_ready(out)

    ref = _reference(x, params, NH)
    assert out.shape == (B, S, H)
    # bf16 matmul operands (kernel) vs f32 reference -> loosened tolerance.
    assert jnp.allclose(out, ref, atol=2e-2, rtol=2e-2), "mismatch vs pure-JAX reference"

    print("KERNEL_OK")
</pallas_src>

<mosaic_0001>
module attributes {stable_mosaic.version = 11 : i64} {
  func.func @_fusion_kernel(%arg0: i32, %arg1: memref<1x8x32xf32, #tpu.memory_space<vmem>>, %arg2: memref<1x32xf32, #tpu.memory_space<vmem>>, %arg3: memref<1x32xf32, #tpu.memory_space<vmem>>, %arg4: memref<32x96xbf16, #tpu.memory_space<vmem>>, %arg5: memref<1x96xf32, #tpu.memory_space<vmem>>, %arg6: memref<32x32xbf16, #tpu.memory_space<vmem>>, %arg7: memref<1x32xf32, #tpu.memory_space<vmem>>, %arg8: memref<1x32xf32, #tpu.memory_space<vmem>>, %arg9: memref<1x32xf32, #tpu.memory_space<vmem>>, %arg10: memref<32x128xbf16, #tpu.memory_space<vmem>>, %arg11: memref<1x128xf32, #tpu.memory_space<vmem>>, %arg12: memref<128x32xbf16, #tpu.memory_space<vmem>>, %arg13: memref<1x32xf32, #tpu.memory_space<vmem>>, %arg14: memref<1x8x32xf32, #tpu.memory_space<vmem>>, %arg15: memref<8x32xbf16, #tpu.memory_space<vmem>>, %arg16: memref<8x32xbf16, #tpu.memory_space<vmem>>) attributes {dimension_semantics = [#tpu.dimension_semantics<parallel>], iteration_bounds = array<i64: 2>, scalar_prefetch = 0 : i64, scratch_operands = 2 : i64, tpu.core_type = #tpu.core_type<tc>, window_params = [{transform_indices = @transform_0, window_bounds = array<i64: 1, 8, 32>}, {pipeline_mode = #tpu.pipeline_mode<synchronous>, transform_indices = @transform_1, window_bounds = array<i64: 1, 32>}, {pipeline_mode = #tpu.pipeline_mode<synchronous>, transform_indices = @transform_2, window_bounds = array<i64: 1, 32>}, {pipeline_mode = #tpu.pipeline_mode<synchronous>, transform_indices = @transform_3, window_bounds = array<i64: 32, 96>}, {pipeline_mode = #tpu.pipeline_mode<synchronous>, transform_indices = @transform_4, window_bounds = array<i64: 1, 96>}, {pipeline_mode = #tpu.pipeline_mode<synchronous>, transform_indices = @transform_5, window_bounds = array<i64: 32, 32>}, {pipeline_mode = #tpu.pipeline_mode<synchronous>, transform_indices = @transform_6, window_bounds = array<i64: 1, 32>}, {pipeline_mode = #tpu.pipeline_mode<synchronous>, transform_indices = @transform_7, window_bounds = array<i64: 1, 32>}, {pipeline_mode = #tpu.pipeline_mode<synchronous>, transform_indices = @transform_8, window_bounds = array<i64: 1, 32>}, {pipeline_mode = #tpu.pipeline_mode<synchronous>, transform_indices = @transform_9, window_bounds = array<i64: 32, 128>}, {pipeline_mode = #tpu.pipeline_mode<synchronous>, transform_indices = @transform_10, window_bounds = array<i64: 1, 128>}, {pipeline_mode = #tpu.pipeline_mode<synchronous>, transform_indices = @transform_11, window_bounds = array<i64: 128, 32>}, {pipeline_mode = #tpu.pipeline_mode<synchronous>, transform_indices = @transform_12, window_bounds = array<i64: 1, 32>}, {transform_indices = @transform_13, window_bounds = array<i64: 1, 8, 32>}]} {
    %c0 = arith.constant 0 : index
    %c0_0 = arith.constant 0 : index
    %c0_1 = arith.constant 0 : index
    %0 = vector.load %arg1[%c0, %c0_0, %c0_1] : memref<1x8x32xf32, #tpu.memory_space<vmem>>, vector<1x8x32xf32>
    %1 = vector.shape_cast %0 : vector<1x8x32xf32> to vector<8x32xf32>
    %c0_2 = arith.constant 0 : index
    %c0_3 = arith.constant 0 : index
    %2 = vector.load %arg2[%c0_2, %c0_3] : memref<1x32xf32, #tpu.memory_space<vmem>>, vector<1x32xf32>
    %c0_4 = arith.constant 0 : index
    %c0_5 = arith.constant 0 : index
    %3 = vector.load %arg3[%c0_4, %c0_5] : memref<1x32xf32, #tpu.memory_space<vmem>>, vector<1x32xf32>
    %cst = arith.constant dense<0.000000e+00> : vector<8xf32>
    %4 = vector.multi_reduction <add>, %1, %cst [1] : vector<8x32xf32> to vector<8xf32>
    %5 = vector.shape_cast %4 : vector<8xf32> to vector<8x1xf32>
    %cst_6 = arith.constant 3.200000e+01 : f32
    %6 = vector.broadcast %cst_6 : f32 to vector<8x1xf32>
    %7 = arith.divf %5, %6 : vector<8x1xf32>
    %8 = vector.broadcast %7 : vector<8x1xf32> to vector<8x32xf32>
    %9 = arith.subf %1, %8 : vector<8x32xf32>
    %10 = arith.mulf %9, %9 : vector<8x32xf32>
    %cst_7 = arith.constant dense<0.000000e+00> : vector<8xf32>
    %11 = vector.multi_reduction <add>, %10, %cst_7 [1] : vector<8x32xf32> to vector<8xf32>
    %12 = vector.shape_cast %11 : vector<8xf32> to vector<8x1xf32>
    %cst_8 = arith.constant 3.200000e+01 : f32
    %13 = vector.broadcast %cst_8 : f32 to vector<8x1xf32>
    %14 = arith.divf %12, %13 : vector<8x1xf32>
    %15 = vector.broadcast %7 : vector<8x1xf32> to vector<8x32xf32>
    %16 = arith.subf %1, %15 : vector<8x32xf32>
    %cst_9 = arith.constant 9.99999974E-6 : f32
    %17 = vector.broadcast %cst_9 : f32 to vector<8x1xf32>
    %18 = arith.addf %14, %17 : vector<8x1xf32>
    %19 = math.rsqrt %18 : vector<8x1xf32>
    %20 = vector.broadcast %19 : vector<8x1xf32> to vector<8x32xf32>
    %21 = arith.mulf %16, %20 : vector<8x32xf32>
    %22 = vector.broadcast %2 : vector<1x32xf32> to vector<8x32xf32>
    %23 = arith.mulf %21, %22 : vector<8x32xf32>
    %24 = vector.broadcast %3 : vector<1x32xf32> to vector<8x32xf32>
    %25 = arith.addf %23, %24 : vector<8x32xf32>
    %26 = arith.truncf %25 : vector<8x32xf32> to vector<8x32xbf16>
    %c0_10 = arith.constant 0 : index
    %c0_11 = arith.constant 0 : index
    %27 = vector.load %arg4[%c0_10, %c0_11] : memref<32x96xbf16, #tpu.memory_space<vmem>>, vector<32x96xbf16>
    %cst_12 = arith.constant dense<0.000000e+00> : vector<8x96xf32>
    %28 = tpu.matmul %26, %27, %cst_12 {dimension_numbers = #tpu.dot_dimension_numbers<[1], [0], [0], [1], [0, 0, 1, 1], [], []>} : vector<8x32xbf16>, vector<32x96xbf16>, vector<8x96xf32> -> vector<8x96xf32>
    %c0_13 = arith.constant 0 : index
    %c0_14 = arith.constant 0 : index
    %29 = vector.load %arg5[%c0_13, %c0_14] : memref<1x96xf32, #tpu.memory_space<vmem>>, vector<1x96xf32>
    %30 = vector.broadcast %29 : vector<1x96xf32> to vector<8x96xf32>
    %31 = arith.addf %28, %30 : vector<8x96xf32>
    %32 = vector.extract_strided_slice %31 {offsets = [0, 0], sizes = [8, 32], strides = [1, 1]} : vector<8x96xf32> to vector<8x32xf32>
    %33 = arith.truncf %32 : vector<8x32xf32> to vector<8x32xbf16>
    %34 = vector.extract_strided_slice %31 {offsets = [0, 32], sizes = [8, 32], strides = [1, 1]} : vector<8x96xf32> to vector<8x32xf32>
    %35 = arith.truncf %34 : vector<8x32xf32> to vector<8x32xbf16>
    %c0_15 = arith.constant 0 : index
    %c0_16 = arith.constant 0 : index
    %36 = vector.load %arg15[%c0_15, %c0_16] : memref<8x32xbf16, #tpu.memory_space<vmem>>, vector<8x32xbf16>
    tpu.vector_store %arg15[%c0_15, %c0_16], %35 {strides = array<i32>} : memref<8x32xbf16, #tpu.memory_space<vmem>>, vector<8x32xbf16>,
    %37 = vector.extract_strided_slice %31 {offsets = [0, 64], sizes = [8, 32], strides = [1, 1]} : vector<8x96xf32> to vector<8x32xf32>
    %38 = arith.truncf %37 : vector<8x32xf32> to vector<8x32xbf16>
    %c0_17 = arith.constant 0 : index
    %c0_18 = arith.constant 0 : index
    %39 = vector.load %arg16[%c0_17, %c0_18] : memref<8x32xbf16, #tpu.memory_space<vmem>>, vector<8x32xbf16>
    tpu.vector_store %arg16[%c0_17, %c0_18], %38 {strides = array<i32>} : memref<8x32xbf16, #tpu.memory_space<vmem>>, vector<8x32xbf16>,
    %40 = vector.extract_strided_slice %33 {offsets = [0, 0], sizes = [8, 8], strides = [1, 1]} : vector<8x32xbf16> to vector<8x8xbf16>
    %cst_19 = arith.constant 0xFF800000 : f32
    %41 = vector.broadcast %cst_19 : f32 to vector<8x1xf32>
    %cst_20 = arith.constant 0.000000e+00 : f32
    %42 = vector.broadcast %cst_20 : f32 to vector<8x1xf32>
    %cst_21 = arith.constant 0.000000e+00 : f32
    %43 = vector.broadcast %cst_21 : f32 to vector<8x8xf32>
    %c0_i32 = arith.constant 0 : i32
    %c8_i32 = arith.constant 8 : i32
    %44 = arith.muli %c0_i32, %c8_i32 : i32
    %c0_i32_22 = arith.constant 0 : i32
    %45 = arith.addi %c0_i32_22, %44 : i32
    %46 = tpu.assume_multiple %45, 8 : i32
    %47 = arith.index_cast %46 : i32 to index
    %c0_23 = arith.constant 0 : index
    %48 = vector.load %arg15[%47, %c0_23] : memref<8x32xbf16, #tpu.memory_space<vmem>>, vector<8x8xbf16>
    %49 = arith.index_cast %46 : i32 to index
    %c0_24 = arith.constant 0 : index
    %50 = vector.load %arg16[%49, %c0_24] : memref<8x32xbf16, #tpu.memory_space<vmem>>, vector<8x8xbf16>
    %cst_25 = arith.constant dense<0.000000e+00> : vector<8x8xf32>
    %51 = tpu.matmul %40, %48, %cst_25 {dimension_numbers = #tpu.dot_dimension_numbers<[1], [1], [0], [0], [0, 0, 1, 0], [], []>} : vector<8x8xbf16>, vector<8x8xbf16>, vector<8x8xf32> -> vector<8x8xf32>
    %cst_26 = arith.constant 0.353553385 : f32
    %52 = vector.broadcast %cst_26 : f32 to vector<8x8xf32>
    %53 = arith.mulf %51, %52 : vector<8x8xf32>
    %cst_27 = arith.constant dense<0xFF800000> : vector<8xf32>
    %54 = vector.multi_reduction <maximumf>, %53, %cst_27 [1] : vector<8x8xf32> to vector<8xf32>
    %55 = vector.shape_cast %54 : vector<8xf32> to vector<8x1xf32>
    %56 = arith.maximumf %41, %55 : vector<8x1xf32>
    %57 = arith.subf %41, %56 : vector<8x1xf32>
    %58 = math.exp %57 : vector<8x1xf32>
    %59 = vector.broadcast %56 : vector<8x1xf32> to vector<8x8xf32>
    %60 = arith.subf %53, %59 : vector<8x8xf32>
    %61 = math.exp %60 : vector<8x8xf32>
    %62 = arith.mulf %58, %42 : vector<8x1xf32>
    %cst_28 = arith.constant dense<0.000000e+00> : vector<8xf32>
    %63 = vector.multi_reduction <add>, %61, %cst_28 [1] : vector<8x8xf32> to vector<8xf32>
    %64 = vector.shape_cast %63 : vector<8xf32> to vector<8x1xf32>
    %65 = arith.addf %62, %64 : vector<8x1xf32>
    %66 = vector.broadcast %58 : vector<8x1xf32> to vector<8x8xf32>
    %67 = arith.mulf %66, %43 : vector<8x8xf32>
    %68 = arith.truncf %61 : vector<8x8xf32> to vector<8x8xbf16>
    %cst_29 = arith.constant dense<0.000000e+00> : vector<8x8xf32>
    %69 = tpu.matmul %68, %50, %cst_29 {dimension_numbers = #tpu.dot_dimension_numbers<[1], [0], [0], [1], [0, 0, 1, 1], [], []>} : vector<8x8xbf16>, vector<8x8xbf16>, vector<8x8xf32> -> vector<8x8xf32>
    %70 = arith.addf %67, %69 : vector<8x8xf32>
    %c1_i32 = arith.constant 1 : i32
    %71 = tpu.reciprocal %65 {approx = true} : vector<8x1xf32> -> vector<8x1xf32>
    %72 = vector.broadcast %71 : vector<8x1xf32> to vector<8x8xf32>
    %73 = arith.mulf %70, %72 : vector<8x8xf32>
    %74 = vector.extract_strided_slice %33 {offsets = [0, 8], sizes = [8, 8], strides = [1, 1]} : vector<8x32xbf16> to vector<8x8xbf16>
    %cst_30 = arith.constant 0xFF800000 : f32
    %75 = vector.broadcast %cst_30 : f32 to vector<8x1xf32>
    %cst_31 = arith.constant 0.000000e+00 : f32
    %76 = vector.broadcast %cst_31 : f32 to vector<8x1xf32>
    %cst_32 = arith.constant 0.000000e+00 : f32
    %77 = vector.broadcast %cst_32 : f32 to vector<8x8xf32>
    %c0_i32_33 = arith.constant 0 : i32
    %c8_i32_34 = arith.constant 8 : i32
    %78 = arith.muli %c0_i32_33, %c8_i32_34 : i32
    %c0_i32_35 = arith.constant 0 : i32
    %79 = arith.addi %c0_i32_35, %78 : i32
    %80 = tpu.assume_multiple %79, 8 : i32
    %81 = arith.index_cast %80 : i32 to index
    %c8 = arith.constant 8 : index
    %82 = vector.load %arg15[%81, %c8] : memref<8x32xbf16, #tpu.memory_space<vmem>>, vector<8x8xbf16>
    %83 = arith.index_cast %80 : i32 to index
    %c8_36 = arith.constant 8 : index
    %84 = vector.load %arg16[%83, %c8_36] : memref<8x32xbf16, #tpu.memory_space<vmem>>, vector<8x8xbf16>
    %cst_37 = arith.constant dense<0.000000e+00> : vector<8x8xf32>
    %85 = tpu.matmul %74, %82, %cst_37 {dimension_numbers = #tpu.dot_dimension_numbers<[1], [1], [0], [0], [0, 0, 1, 0], [], []>} : vector<8x8xbf16>, vector<8x8xbf16>, vector<8x8xf32> -> vector<8x8xf32>
    %cst_38 = arith.constant 0.353553385 : f32
    %86 = vector.broadcast %cst_38 : f32 to vector<8x8xf32>
    %87 = arith.mulf %85, %86 : vector<8x8xf32>
    %cst_39 = arith.constant dense<0xFF800000> : vector<8xf32>
    %88 = vector.multi_reduction <maximumf>, %87, %cst_39 [1] : vector<8x8xf32> to vector<8xf32>
    %89 = vector.shape_cast %88 : vector<8xf32> to vector<8x1xf32>
    %90 = arith.maximumf %75, %89 : vector<8x1xf32>
    %91 = arith.subf %75, %90 : vector<8x1xf32>
    %92 = math.exp %91 : vector<8x1xf32>
    %93 = vector.broadcast %90 : vector<8x1xf32> to vector<8x8xf32>
    %94 = arith.subf %87, %93 : vector<8x8xf32>
    %95 = math.exp %94 : vector<8x8xf32>
    %96 = arith.mulf %92, %76 : vector<8x1xf32>
    %cst_40 = arith.constant dense<0.000000e+00> : vector<8xf32>
    %97 = vector.multi_reduction <add>, %95, %cst_40 [1] : vector<8x8xf32> to vector<8xf32>
    %98 = vector.shape_cast %97 : vector<8xf32> to vector<8x1xf32>
    %99 = arith.addf %96, %98 : vector<8x1xf32>
    %100 = vector.broadcast %92 : vector<8x1xf32> to vector<8x8xf32>
    %101 = arith.mulf %100, %77 : vector<8x8xf32>
    %102 = arith.truncf %95 : vector<8x8xf32> to vector<8x8xbf16>
    %cst_41 = arith.constant dense<0.000000e+00> : vector<8x8xf32>
    %103 = tpu.matmul %102, %84, %cst_41 {dimension_numbers = #tpu.dot_dimension_numbers<[1], [0], [0], [1], [0, 0, 1, 1], [], []>} : vector<8x8xbf16>, vector<8x8xbf16>, vector<8x8xf32> -> vector<8x8xf32>
    %104 = arith.addf %101, %103 : vector<8x8xf32>
    %c1_i32_42 = arith.constant 1 : i32
    %105 = tpu.reciprocal %99 {approx = true} : vector<8x1xf32> -> vector<8x1xf32>
    %106 = vector.broadcast %105 : vector<8x1xf32> to vector<8x8xf32>
    %107 = arith.mulf %104, %106 : vector<8x8xf32>
    %108 = vector.extract_strided_slice %33 {offsets = [0, 16], sizes = [8, 8], strides = [1, 1]} : vector<8x32xbf16> to vector<8x8xbf16>
    %cst_43 = arith.constant 0xFF800000 : f32
    %109 = vector.broadcast %cst_43 : f32 to vector<8x1xf32>
    %cst_44 = arith.constant 0.000000e+00 : f32
    %110 = vector.broadcast %cst_44 : f32 to vector<8x1xf32>
    %cst_45 = arith.constant 0.000000e+00 : f32
    %111 = vector.broadcast %cst_45 : f32 to vector<8x8xf32>
    %c0_i32_46 = arith.constant 0 : i32
    %c8_i32_47 = arith.constant 8 : i32
    %112 = arith.muli %c0_i32_46, %c8_i32_47 : i32
    %c0_i32_48 = arith.constant 0 : i32
    %113 = arith.addi %c0_i32_48, %112 : i32
    %114 = tpu.assume_multiple %113, 8 : i32
    %115 = arith.index_cast %114 : i32 to index
    %c16 = arith.constant 16 : index
    %116 = vector.load %arg15[%115, %c16] : memref<8x32xbf16, #tpu.memory_space<vmem>>, vector<8x8xbf16>
    %117 = arith.index_cast %114 : i32 to index
    %c16_49 = arith.constant 16 : index
    %118 = vector.load %arg16[%117, %c16_49] : memref<8x32xbf16, #tpu.memory_space<vmem>>, vector<8x8xbf16>
    %cst_50 = arith.constant dense<0.000000e+00> : vector<8x8xf32>
    %119 = tpu.matmul %108, %116, %cst_50 {dimension_numbers = #tpu.dot_dimension_numbers<[1], [1], [0], [0], [0, 0, 1, 0], [], []>} : vector<8x8xbf16>, vector<8x8xbf16>, vector<8x8xf32> -> vector<8x8xf32>
    %cst_51 = arith.constant 0.353553385 : f32
    %120 = vector.broadcast %cst_51 : f32 to vector<8x8xf32>
    %121 = arith.mulf %119, %120 : vector<8x8xf32>
    %cst_52 = arith.constant dense<0xFF800000> : vector<8xf32>
    %122 = vector.multi_reduction <maximumf>, %121, %cst_52 [1] : vector<8x8xf32> to vector<8xf32>
    %123 = vector.shape_cast %122 : vector<8xf32> to vector<8x1xf32>
    %124 = arith.maximumf %109, %123 : vector<8x1xf32>
    %125 = arith.subf %109, %124 : vector<8x1xf32>
    %126 = math.exp %125 : vector<8x1xf32>
    %127 = vector.broadcast %124 : vector<8x1xf32> to vector<8x8xf32>
    %128 = arith.subf %121, %127 : vector<8x8xf32>
    %129 = math.exp %128 : vector<8x8xf32>
    %130 = arith.mulf %126, %110 : vector<8x1xf32>
    %cst_53 = arith.constant dense<0.000000e+00> : vector<8xf32>
    %131 = vector.multi_reduction <add>, %129, %cst_53 [1] : vector<8x8xf32> to vector<8xf32>
    %132 = vector.shape_cast %131 : vector<8xf32> to vector<8x1xf32>
    %133 = arith.addf %130, %132 : vector<8x1xf32>
    %134 = vector.broadcast %126 : vector<8x1xf32> to vector<8x8xf32>
    %135 = arith.mulf %134, %111 : vector<8x8xf32>
    %136 = arith.truncf %129 : vector<8x8xf32> to vector<8x8xbf16>
    %cst_54 = arith.constant dense<0.000000e+00> : vector<8x8xf32>
    %137 = tpu.matmul %136, %118, %cst_54 {dimension_numbers = #tpu.dot_dimension_numbers<[1], [0], [0], [1], [0, 0, 1, 1], [], []>} : vector<8x8xbf16>, vector<8x8xbf16>, vector<8x8xf32> -> vector<8x8xf32>
    %138 = arith.addf %135, %137 : vector<8x8xf32>
    %c1_i32_55 = arith.constant 1 : i32
    %139 = tpu.reciprocal %133 {approx = true} : vector<8x1xf32> -> vector<8x1xf32>
    %140 = vector.broadcast %139 : vector<8x1xf32> to vector<8x8xf32>
    %141 = arith.mulf %138, %140 : vector<8x8xf32>
    %142 = vector.extract_strided_slice %33 {offsets = [0, 24], sizes = [8, 8], strides = [1, 1]} : vector<8x32xbf16> to vector<8x8xbf16>
    %cst_56 = arith.constant 0xFF800000 : f32
    %143 = vector.broadcast %cst_56 : f32 to vector<8x1xf32>
    %cst_57 = arith.constant 0.000000e+00 : f32
    %144 = vector.broadcast %cst_57 : f32 to vector<8x1xf32>
    %cst_58 = arith.constant 0.000000e+00 : f32
    %145 = vector.broadcast %cst_58 : f32 to vector<8x8xf32>
    %c0_i32_59 = arith.constant 0 : i32
    %c8_i32_60 = arith.constant 8 : i32
    %146 = arith.muli %c0_i32_59, %c8_i32_60 : i32
    %c0_i32_61 = arith.constant 0 : i32
    %147 = arith.addi %c0_i32_61, %146 : i32
    %148 = tpu.assume_multiple %147, 8 : i32
    %149 = arith.index_cast %148 : i32 to index
    %c24 = arith.constant 24 : index
    %150 = vector.load %arg15[%149, %c24] : memref<8x32xbf16, #tpu.memory_space<vmem>>, vector<8x8xbf16>
    %151 = arith.index_cast %148 : i32 to index
    %c24_62 = arith.constant 24 : index
    %152 = vector.load %arg16[%151, %c24_62] : memref<8x32xbf16, #tpu.memory_space<vmem>>, vector<8x8xbf16>
    %cst_63 = arith.constant dense<0.000000e+00> : vector<8x8xf32>
    %153 = tpu.matmul %142, %150, %cst_63 {dimension_numbers = #tpu.dot_dimension_numbers<[1], [1], [0], [0], [0, 0, 1, 0], [], []>} : vector<8x8xbf16>, vector<8x8xbf16>, vector<8x8xf32> -> vector<8x8xf32>
    %cst_64 = arith.constant 0.353553385 : f32
    %154 = vector.broadcast %cst_64 : f32 to vector<8x8xf32>
    %155 = arith.mulf %153, %154 : vector<8x8xf32>
    %cst_65 = arith.constant dense<0xFF800000> : vector<8xf32>
    %156 = vector.multi_reduction <maximumf>, %155, %cst_65 [1] : vector<8x8xf32> to vector<8xf32>
    %157 = vector.shape_cast %156 : vector<8xf32> to vector<8x1xf32>
    %158 = arith.maximumf %143, %157 : vector<8x1xf32>
    %159 = arith.subf %143, %158 : vector<8x1xf32>
    %160 = math.exp %159 : vector<8x1xf32>
    %161 = vector.broadcast %158 : vector<8x1xf32> to vector<8x8xf32>
    %162 = arith.subf %155, %161 : vector<8x8xf32>
    %163 = math.exp %162 : vector<8x8xf32>
    %164 = arith.mulf %160, %144 : vector<8x1xf32>
    %cst_66 = arith.constant dense<0.000000e+00> : vector<8xf32>
    %165 = vector.multi_reduction <add>, %163, %cst_66 [1] : vector<8x8xf32> to vector<8xf32>
    %166 = vector.shape_cast %165 : vector<8xf32> to vector<8x1xf32>
    %167 = arith.addf %164, %166 : vector<8x1xf32>
    %168 = vector.broadcast %160 : vector<8x1xf32> to vector<8x8xf32>
    %169 = arith.mulf %168, %145 : vector<8x8xf32>
    %170 = arith.truncf %163 : vector<8x8xf32> to vector<8x8xbf16>
    %cst_67 = arith.constant dense<0.000000e+00> : vector<8x8xf32>
    %171 = tpu.matmul %170, %152, %cst_67 {dimension_numbers = #tpu.dot_dimension_numbers<[1], [0], [0], [1], [0, 0, 1, 1], [], []>} : vector<8x8xbf16>, vector<8x8xbf16>, vector<8x8xf32> -> vector<8x8xf32>
    %172 = arith.addf %169, %171 : vector<8x8xf32>
    %c1_i32_68 = arith.constant 1 : i32
    %173 = tpu.reciprocal %167 {approx = true} : vector<8x1xf32> -> vector<8x1xf32>
    %174 = vector.broadcast %173 : vector<8x1xf32> to vector<8x8xf32>
    %175 = arith.mulf %172, %174 : vector<8x8xf32>
    %176 = tpu.concatenate %73, %107, %141, %175 in 1 : vector<8x8xf32>, vector<8x8xf32>, vector<8x8xf32>, vector<8x8xf32> -> vector<8x32xf32>
    %177 = arith.truncf %176 : vector<8x32xf32> to vector<8x32xbf16>
    %c0_69 = arith.constant 0 : index
    %c0_70 = arith.constant 0 : index
    %178 = vector.load %arg6[%c0_69, %c0_70] : memref<32x32xbf16, #tpu.memory_space<vmem>>, vector<32x32xbf16>
    %cst_71 = arith.constant dense<0.000000e+00> : vector<8x32xf32>
    %179 = tpu.matmul %177, %178, %cst_71 {dimension_numbers = #tpu.dot_dimension_numbers<[1], [0], [0], [1], [0, 0, 1, 1], [], []>} : vector<8x32xbf16>, vector<32x32xbf16>, vector<8x32xf32> -> vector<8x32xf32>
    %180 = arith.addf %1, %179 : vector<8x32xf32>
    %c0_72 = arith.constant 0 : index
    %c0_73 = arith.constant 0 : index
    %181 = vector.load %arg7[%c0_72, %c0_73] : memref<1x32xf32, #tpu.memory_space<vmem>>, vector<1x32xf32>
    %182 = vector.broadcast %181 : vector<1x32xf32> to vector<8x32xf32>
    %183 = arith.addf %180, %182 : vector<8x32xf32>
    %c0_74 = arith.constant 0 : index
    %c0_75 = arith.constant 0 : index
    %184 = vector.load %arg8[%c0_74, %c0_75] : memref<1x32xf32, #tpu.memory_space<vmem>>, vector<1x32xf32>
    %c0_76 = arith.constant 0 : index
    %c0_77 = arith.constant 0 : index
    %185 = vector.load %arg9[%c0_76, %c0_77] : memref<1x32xf32, #tpu.memory_space<vmem>>, vector<1x32xf32>
    %cst_78 = arith.constant dense<0.000000e+00> : vector<8xf32>
    %186 = vector.multi_reduction <add>, %183, %cst_78 [1] : vector<8x32xf32> to vector<8xf32>
    %187 = vector.shape_cast %186 : vector<8xf32> to vector<8x1xf32>
    %cst_79 = arith.constant 3.200000e+01 : f32
    %188 = vector.broadcast %cst_79 : f32 to vector<8x1xf32>
    %189 = arith.divf %187, %188 : vector<8x1xf32>
    %190 = vector.broadcast %189 : vector<8x1xf32> to vector<8x32xf32>
    %191 = arith.subf %183, %190 : vector<8x32xf32>
    %192 = arith.mulf %191, %191 : vector<8x32xf32>
    %cst_80 = arith.constant dense<0.000000e+00> : vector<8xf32>
    %193 = vector.multi_reduction <add>, %192, %cst_80 [1] : vector<8x32xf32> to vector<8xf32>
    %194 = vector.shape_cast %193 : vector<8xf32> to vector<8x1xf32>
    %cst_81 = arith.constant 3.200000e+01 : f32
    %195 = vector.broadcast %cst_81 : f32 to vector<8x1xf32>
    %196 = arith.divf %194, %195 : vector<8x1xf32>
    %197 = vector.broadcast %189 : vector<8x1xf32> to vector<8x32xf32>
    %198 = arith.subf %183, %197 : vector<8x32xf32>
    %cst_82 = arith.constant 9.99999974E-6 : f32
    %199 = vector.broadcast %cst_82 : f32 to vector<8x1xf32>
    %200 = arith.addf %196, %199 : vector<8x1xf32>
    %201 = math.rsqrt %200 : vector<8x1xf32>
    %202 = vector.broadcast %201 : vector<8x1xf32> to vector<8x32xf32>
    %203 = arith.mulf %198, %202 : vector<8x32xf32>
    %204 = vector.broadcast %184 : vector<1x32xf32> to vector<8x32xf32>
    %205 = arith.mulf %203, %204 : vector<8x32xf32>
    %206 = vector.broadcast %185 : vector<1x32xf32> to vector<8x32xf32>
    %207 = arith.addf %205, %206 : vector<8x32xf32>
    %208 = arith.truncf %207 : vector<8x32xf32> to vector<8x32xbf16>
    %cst_83 = arith.constant 0.000000e+00 : f32
    %209 = vector.broadcast %cst_83 : f32 to vector<8x32xf32>
    %c0_i32_84 = arith.constant 0 : i32
    %c128_i32 = arith.constant 128 : i32
    %210 = arith.muli %c0_i32_84, %c128_i32 : i32
    %211 = tpu.assume_multiple %210, 128 : i32
    %c0_85 = arith.constant 0 : index
    %212 = arith.index_cast %211 : i32 to index
    %213 = vector.load %arg10[%c0_85, %212] : memref<32x128xbf16, #tpu.memory_space<vmem>>, vector<32x128xbf16>
    %cst_86 = arith.constant dense<0.000000e+00> : vector<8x128xf32>
    %214 = tpu.matmul %208, %213, %cst_86 {dimension_numbers = #tpu.dot_dimension_numbers<[1], [0], [0], [1], [0, 0, 1, 1], [], []>} : vector<8x32xbf16>, vector<32x128xbf16>, vector<8x128xf32> -> vector<8x128xf32>
    %c0_87 = arith.constant 0 : index
    %215 = arith.index_cast %211 : i32 to index
    %216 = vector.load %arg11[%c0_87, %215] : memref<1x128xf32, #tpu.memory_space<vmem>>, vector<1x128xf32>
    %217 = vector.broadcast %216 : vector<1x128xf32> to vector<8x128xf32>
    %218 = arith.addf %214, %217 : vector<8x128xf32>
    %cst_88 = arith.constant 0.000000e+00 : f32
    %219 = vector.broadcast %cst_88 : f32 to vector<8x128xf32>
    %220 = arith.maximumf %218, %219 : vector<8x128xf32>
    %221 = arith.truncf %220 : vector<8x128xf32> to vector<8x128xbf16>
    %222 = arith.index_cast %211 : i32 to index
    %c0_89 = arith.constant 0 : index
    %223 = vector.load %arg12[%222, %c0_89] : memref<128x32xbf16, #tpu.memory_space<vmem>>, vector<128x32xbf16>
    %cst_90 = arith.constant dense<0.000000e+00> : vector<8x32xf32>
    %224 = tpu.matmul %221, %223, %cst_90 {dimension_numbers = #tpu.dot_dimension_numbers<[1], [0], [0], [1], [0, 0, 1, 1], [], []>} : vector<8x128xbf16>, vector<128x32xbf16>, vector<8x32xf32> -> vector<8x32xf32>
    %225 = arith.addf %209, %224 : vector<8x32xf32>
    %c1_i32_91 = arith.constant 1 : i32
    %226 = arith.addf %183, %225 : vector<8x32xf32>
    %c0_92 = arith.constant 0 : index
    %c0_93 = arith.constant 0 : index
    %227 = vector.load %arg13[%c0_92, %c0_93] : memref<1x32xf32, #tpu.memory_space<vmem>>, vector<1x32xf32>
    %228 = vector.broadcast %227 : vector<1x32xf32> to vector<8x32xf32>
    %229 = arith.addf %226, %228 : vector<8x32xf32>
    %230 = vector.shape_cast %229 : vector<8x32xf32> to vector<1x8x32xf32>
    %c0_94 = arith.constant 0 : index
    %c0_95 = arith.constant 0 : index
    %c0_96 = arith.constant 0 : index
    %231 = vector.load %arg14[%c0_94, %c0_95, %c0_96] : memref<1x8x32xf32, #tpu.memory_space<vmem>>, vector<1x8x32xf32>
    tpu.vector_store %arg14[%c0_94, %c0_95, %c0_96], %230 {strides = array<i32>} : memref<1x8x32xf32, #tpu.memory_space<vmem>>, vector<1x8x32xf32>,
    return
  }
  func.func @transform_0(%arg0: i32) -> (i32, i32, i32) {
    %c0_i32 = arith.constant 0 : i32
    %c0_i32_0 = arith.constant 0 : i32
    %c0_i32_1 = arith.constant 0 : i32
    return %arg0, %c0_i32, %c0_i32_0 : i32, i32, i32
  }
  func.func @transform_1(%arg0: i32) -> (i32, i32) {
    %c0_i32 = arith.constant 0 : i32
    %c0_i32_0 = arith.constant 0 : i32
    %c0_i32_1 = arith.constant 0 : i32
    return %c0_i32, %c0_i32_0 : i32, i32
  }
  func.func @transform_2(%arg0: i32) -> (i32, i32) {
    %c0_i32 = arith.constant 0 : i32
    %c0_i32_0 = arith.constant 0 : i32
    %c0_i32_1 = arith.constant 0 : i32
    return %c0_i32, %c0_i32_0 : i32, i32
  }
  func.func @transform_3(%arg0: i32) -> (i32, i32) {
    %c0_i32 = arith.constant 0 : i32
    %c0_i32_0 = arith.constant 0 : i32
    %c0_i32_1 = arith.constant 0 : i32
    return %c0_i32, %c0_i32_0 : i32, i32
  }
  func.func @transform_4(%arg0: i32) -> (i32, i32) {
    %c0_i32 = arith.constant 0 : i32
    %c0_i32_0 = arith.constant 0 : i32
    %c0_i32_1 = arith.constant 0 : i32
    return %c0_i32, %c0_i32_0 : i32, i32
  }
  func.func @transform_5(%arg0: i32) -> (i32, i32) {
    %c0_i32 = arith.constant 0 : i32
    %c0_i32_0 = arith.constant 0 : i32
    %c0_i32_1 = arith.constant 0 : i32
    return %c0_i32, %c0_i32_0 : i32, i32
  }
  func.func @transform_6(%arg0: i32) -> (i32, i32) {
    %c0_i32 = arith.constant 0 : i32
    %c0_i32_0 = arith.constant 0 : i32
    %c0_i32_1 = arith.constant 0 : i32
    return %c0_i32, %c0_i32_0 : i32, i32
  }
  func.func @transform_7(%arg0: i32) -> (i32, i32) {
    %c0_i32 = arith.constant 0 : i32
    %c0_i32_0 = arith.constant 0 : i32
    %c0_i32_1 = arith.constant 0 : i32
    return %c0_i32, %c0_i32_0 : i32, i32
  }
  func.func @transform_8(%arg0: i32) -> (i32, i32) {
    %c0_i32 = arith.constant 0 : i32
    %c0_i32_0 = arith.constant 0 : i32
    %c0_i32_1 = arith.constant 0 : i32
    return %c0_i32, %c0_i32_0 : i32, i32
  }
  func.func @transform_9(%arg0: i32) -> (i32, i32) {
    %c0_i32 = arith.constant 0 : i32
    %c0_i32_0 = arith.constant 0 : i32
    %c0_i32_1 = arith.constant 0 : i32
    return %c0_i32, %c0_i32_0 : i32, i32
  }
  func.func @transform_10(%arg0: i32) -> (i32, i32) {
    %c0_i32 = arith.constant 0 : i32
    %c0_i32_0 = arith.constant 0 : i32
    %c0_i32_1 = arith.constant 0 : i32
    return %c0_i32, %c0_i32_0 : i32, i32
  }
  func.func @transform_11(%arg0: i32) -> (i32, i32) {
    %c0_i32 = arith.constant 0 : i32
    %c0_i32_0 = arith.constant 0 : i32
    %c0_i32_1 = arith.constant 0 : i32
    return %c0_i32, %c0_i32_0 : i32, i32
  }
  func.func @transform_12(%arg0: i32) -> (i32, i32) {
    %c0_i32 = arith.constant 0 : i32
    %c0_i32_0 = arith.constant 0 : i32
    %c0_i32_1 = arith.constant 0 : i32
    return %c0_i32, %c0_i32_0 : i32, i32
  }
  func.func @transform_13(%arg0: i32) -> (i32, i32, i32) {
    %c0_i32 = arith.constant 0 : i32
    %c0_i32_0 = arith.constant 0 : i32
    %c0_i32_1 = arith.constant 0 : i32
    return %arg0, %c0_i32, %c0_i32_0 : i32, i32, i32
  }
}

module attributes {stable_mosaic.version = 11 : i64} {
  func.func @_fusion_kernel(%arg0: i32, %arg1: memref<1x8x32xf32, #tpu.memory_space<vmem>>, %arg2: memref<1x32xf32, #tpu.memory_space<vmem>>, %arg3: memref<1x32xf32, #tpu.memory_space<vmem>>, %arg4: memref<32x96xbf16, #tpu.memory_space<vmem>>, %arg5: memref<1x96xf32, #tpu.memory_space<vmem>>, %arg6: memref<32x32xbf16, #tpu.memory_space<vmem>>, %arg7: memref<1x32xf32, #tpu.memory_space<vmem>>, %arg8: memref<1x32xf32, #tpu.memory_space<vmem>>, %arg9: memref<1x32xf32, #tpu.memory_space<vmem>>, %arg10: memref<32x128xbf16, #tpu.memory_space<vmem>>, %arg11: memref<1x128xf32, #tpu.memory_space<vmem>>, %arg12: memref<128x32xbf16, #tpu.memory_space<vmem>>, %arg13: memref<1x32xf32, #tpu.memory_space<vmem>>, %arg14: memref<1x8x32xf32, #tpu.memory_space<vmem>>, %arg15: memref<8x32xbf16, #tpu.memory_space<vmem>>, %arg16: memref<8x32xbf16, #tpu.memory_space<vmem>>) attributes {dimension_semantics = [#tpu.dimension_semantics<parallel>], iteration_bounds = array<i64: 2>, scalar_prefetch = 0 : i64, scratch_operands = 2 : i64, tpu.core_type = #tpu.core_type<tc>, window_params = [{transform_indices = @transform_0, window_bounds = array<i64: 1, 8, 32>}, {pipeline_mode = #tpu.pipeline_mode<synchronous>, transform_indices = @transform_1, window_bounds = array<i64: 1, 32>}, {pipeline_mode = #tpu.pipeline_mode<synchronous>, transform_indices = @transform_2, window_bounds = array<i64: 1, 32>}, {pipeline_mode = #tpu.pipeline_mode<synchronous>, transform_indices = @transform_3, window_bounds = array<i64: 32, 96>}, {pipeline_mode = #tpu.pipeline_mode<synchronous>, transform_indices = @transform_4, window_bounds = array<i64: 1, 96>}, {pipeline_mode = #tpu.pipeline_mode<synchronous>, transform_indices = @transform_5, window_bounds = array<i64: 32, 32>}, {pipeline_mode = #tpu.pipeline_mode<synchronous>, transform_indices = @transform_6, window_bounds = array<i64: 1, 32>}, {pipeline_mode = #tpu.pipeline_mode<synchronous>, transform_indices = @transform_7, window_bounds = array<i64: 1, 32>}, {pipeline_mode = #tpu.pipeline_mode<synchronous>, transform_indices = @transform_8, window_bounds = array<i64: 1, 32>}, {pipeline_mode = #tpu.pipeline_mode<synchronous>, transform_indices = @transform_9, window_bounds = array<i64: 32, 128>}, {pipeline_mode = #tpu.pipeline_mode<synchronous>, transform_indices = @transform_10, window_bounds = array<i64: 1, 128>}, {pipeline_mode = #tpu.pipeline_mode<synchronous>, transform_indices = @transform_11, window_bounds = array<i64: 128, 32>}, {pipeline_mode = #tpu.pipeline_mode<synchronous>, transform_indices = @transform_12, window_bounds = array<i64: 1, 32>}, {transform_indices = @transform_13, window_bounds = array<i64: 1, 8, 32>}]} {
    %c0 = arith.constant 0 : index
    %c0_0 = arith.constant 0 : index
    %c0_1 = arith.constant 0 : index
    %0 = vector.load %arg1[%c0, %c0_0, %c0_1] : memref<1x8x32xf32, #tpu.memory_space<vmem>>, vector<1x8x32xf32>
    %1 = vector.shape_cast %0 : vector<1x8x32xf32> to vector<8x32xf32>
    %c0_2 = arith.constant 0 : index
    %c0_3 = arith.constant 0 : index
    %2 = vector.load %arg2[%c0_2, %c0_3] : memref<1x32xf32, #tpu.memory_space<vmem>>, vector<1x32xf32>
    %c0_4 = arith.constant 0 : index
    %c0_5 = arith.constant 0 : index
    %3 = vector.load %arg3[%c0_4, %c0_5] : memref<1x32xf32, #tpu.memory_space<vmem>>, vector<1x32xf32>
    %cst = arith.constant dense<0.000000e+00> : vector<8xf32>
    %4 = vector.multi_reduction <add>, %1, %cst [1] : vector<8x32xf32> to vector<8xf32>
    %5 = vector.shape_cast %4 : vector<8xf32> to vector<8x1xf32>
    %cst_6 = arith.constant 3.200000e+01 : f32
    %6 = vector.broadcast %cst_6 : f32 to vector<8x1xf32>
    %7 = arith.divf %5, %6 : vector<8x1xf32>
    %8 = vector.broadcast %7 : vector<8x1xf32> to vector<8x32xf32>
    %9 = arith.subf %1, %8 : vector<8x32xf32>
    %10 = arith.mulf %9, %9 : vector<8x32xf32>
    %cst_7 = arith.constant dense<0.000000e+00> : vector<8xf32>
    %11 = vector.multi_reduction <add>, %10, %cst_7 [1] : vector<8x32xf32> to vector<8xf32>
    %12 = vector.shape_cast %11 : vector<8xf32> to vector<8x1xf32>
    %cst_8 = arith.constant 3.200000e+01 : f32
    %13 = vector.broadcast %cst_8 : f32 to vector<8x1xf32>
    %14 = arith.divf %12, %13 : vector<8x1xf32>
    %15 = vector.broadcast %7 : vector<8x1xf32> to vector<8x32xf32>
    %16 = arith.subf %1, %15 : vector<8x32xf32>
    %cst_9 = arith.constant 9.99999974E-6 : f32
    %17 = vector.broadcast %cst_9 : f32 to vector<8x1xf32>
    %18 = arith.addf %14, %17 : vector<8x1xf32>
    %19 = math.rsqrt %18 : vector<8x1xf32>
    %20 = vector.broadcast %19 : vector<8x1xf32> to vector<8x32xf32>
    %21 = arith.mulf %16, %20 : vector<8x32xf32>
    %22 = vector.broadcast %2 : vector<1x32xf32> to vector<8x32xf32>
    %23 = arith.mulf %21, %22 : vector<8x32xf32>
    %24 = vector.broadcast %3 : vector<1x32xf32> to vector<8x32xf32>
    %25 = arith.addf %23, %24 : vector<8x32xf32>
    %26 = arith.truncf %25 : vector<8x32xf32> to vector<8x32xbf16>
    %c0_10 = arith.constant 0 : index
    %c0_11 = arith.constant 0 : index
    %27 = vector.load %arg4[%c0_10, %c0_11] : memref<32x96xbf16, #tpu.memory_space<vmem>>, vector<32x96xbf16>
    %cst_12 = arith.constant dense<0.000000e+00> : vector<8x96xf32>
    %28 = tpu.matmul %26, %27, %cst_12 {dimension_numbers = #tpu.dot_dimension_numbers<[1], [0], [0], [1], [0, 0, 1, 1], [], []>} : vector<8x32xbf16>, vector<32x96xbf16>, vector<8x96xf32> -> vector<8x96xf32>
    %c0_13 = arith.constant 0 : index
    %c0_14 = arith.constant 0 : index
    %29 = vector.load %arg5[%c0_13, %c0_14] : memref<1x96xf32, #tpu.memory_space<vmem>>, vector<1x96xf32>
    %30 = vector.broadcast %29 : vector<1x96xf32> to vector<8x96xf32>
    %31 = arith.addf %28, %30 : vector<8x96xf32>
    %32 = vector.extract_strided_slice %31 {offsets = [0, 0], sizes = [8, 32], strides = [1, 1]} : vector<8x96xf32> to vector<8x32xf32>
    %33 = arith.truncf %32 : vector<8x32xf32> to vector<8x32xbf16>
    %34 = vector.extract_strided_slice %31 {offsets = [0, 32], sizes = [8, 32], strides = [1, 1]} : vector<8x96xf32> to vector<8x32xf32>
    %35 = arith.truncf %34 : vector<8x32xf32> to vector<8x32xbf16>
    %c0_15 = arith.constant 0 : index
    %c0_16 = arith.constant 0 : index
    %36 = vector.load %arg15[%c0_15, %c0_16] : memref<8x32xbf16, #tpu.memory_space<vmem>>, vector<8x32xbf16>
    tpu.vector_store %arg15[%c0_15, %c0_16], %35 {strides = array<i32>} : memref<8x32xbf16, #tpu.memory_space<vmem>>, vector<8x32xbf16>,
    %37 = vector.extract_strided_slice %31 {offsets = [0, 64], sizes = [8, 32], strides = [1, 1]} : vector<8x96xf32> to vector<8x32xf32>
    %38 = arith.truncf %37 : vector<8x32xf32> to vector<8x32xbf16>
    %c0_17 = arith.constant 0 : index
    %c0_18 = arith.constant 0 : index
    %39 = vector.load %arg16[%c0_17, %c0_18] : memref<8x32xbf16, #tpu.memory_space<vmem>>, vector<8x32xbf16>
    tpu.vector_store %arg16[%c0_17, %c0_18], %38 {strides = array<i32>} : memref<8x32xbf16, #tpu.memory_space<vmem>>, vector<8x32xbf16>,
    %40 = vector.extract_strided_slice %33 {offsets = [0, 0], sizes = [8, 8], strides = [1, 1]} : vector<8x32xbf16> to vector<8x8xbf16>
    %cst_19 = arith.constant 0xFF800000 : f32
    %41 = vector.broadcast %cst_19 : f32 to vector<8x1xf32>
    %cst_20 = arith.constant 0.000000e+00 : f32
    %42 = vector.broadcast %cst_20 : f32 to vector<8x1xf32>
    %cst_21 = arith.constant 0.000000e+00 : f32
    %43 = vector.broadcast %cst_21 : f32 to vector<8x8xf32>
    %c0_i32 = arith.constant 0 : i32
    %c8_i32 = arith.constant 8 : i32
    %44 = arith.muli %c0_i32, %c8_i32 : i32
    %c0_i32_22 = arith.constant 0 : i32
    %45 = arith.addi %c0_i32_22, %44 : i32
    %46 = tpu.assume_multiple %45, 8 : i32
    %47 = arith.index_cast %46 : i32 to index
    %c0_23 = arith.constant 0 : index
    %48 = vector.load %arg15[%47, %c0_23] : memref<8x32xbf16, #tpu.memory_space<vmem>>, vector<8x8xbf16>
    %49 = arith.index_cast %46 : i32 to index
    %c0_24 = arith.constant 0 : index
    %50 = vector.load %arg16[%49, %c0_24] : memref<8x32xbf16, #tpu.memory_space<vmem>>, vector<8x8xbf16>
    %cst_25 = arith.constant dense<0.000000e+00> : vector<8x8xf32>
    %51 = tpu.matmul %40, %48, %cst_25 {dimension_numbers = #tpu.dot_dimension_numbers<[1], [1], [0], [0], [0, 0, 1, 0], [], []>} : vector<8x8xbf16>, vector<8x8xbf16>, vector<8x8xf32> -> vector<8x8xf32>
    %cst_26 = arith.constant 0.353553385 : f32
    %52 = vector.broadcast %cst_26 : f32 to vector<8x8xf32>
    %53 = arith.mulf %51, %52 : vector<8x8xf32>
    %cst_27 = arith.constant dense<0xFF800000> : vector<8xf32>
    %54 = vector.multi_reduction <maximumf>, %53, %cst_27 [1] : vector<8x8xf32> to vector<8xf32>
    %55 = vector.shape_cast %54 : vector<8xf32> to vector<8x1xf32>
    %56 = arith.maximumf %41, %55 : vector<8x1xf32>
    %57 = arith.subf %41, %56 : vector<8x1xf32>
    %58 = math.exp %57 : vector<8x1xf32>
    %59 = vector.broadcast %56 : vector<8x1xf32> to vector<8x8xf32>
    %60 = arith.subf %53, %59 : vector<8x8xf32>
    %61 = math.exp %60 : vector<8x8xf32>
    %62 = arith.mulf %58, %42 : vector<8x1xf32>
    %cst_28 = arith.constant dense<0.000000e+00> : vector<8xf32>
    %63 = vector.multi_reduction <add>, %61, %cst_28 [1] : vector<8x8xf32> to vector<8xf32>
    %64 = vector.shape_cast %63 : vector<8xf32> to vector<8x1xf32>
    %65 = arith.addf %62, %64 : vector<8x1xf32>
    %66 = vector.broadcast %58 : vector<8x1xf32> to vector<8x8xf32>
    %67 = arith.mulf %66, %43 : vector<8x8xf32>
    %68 = arith.truncf %61 : vector<8x8xf32> to vector<8x8xbf16>
    %cst_29 = arith.constant dense<0.000000e+00> : vector<8x8xf32>
    %69 = tpu.matmul %68, %50, %cst_29 {dimension_numbers = #tpu.dot_dimension_numbers<[1], [0], [0], [1], [0, 0, 1, 1], [], []>} : vector<8x8xbf16>, vector<8x8xbf16>, vector<8x8xf32> -> vector<8x8xf32>
    %70 = arith.addf %67, %69 : vector<8x8xf32>
    %c1_i32 = arith.constant 1 : i32
    %71 = tpu.reciprocal %65 {approx = true} : vector<8x1xf32> -> vector<8x1xf32>
    %72 = vector.broadcast %71 : vector<8x1xf32> to vector<8x8xf32>
    %73 = arith.mulf %70, %72 : vector<8x8xf32>
    %74 = vector.extract_strided_slice %33 {offsets = [0, 8], sizes = [8, 8], strides = [1, 1]} : vector<8x32xbf16> to vector<8x8xbf16>
    %cst_30 = arith.constant 0xFF800000 : f32
    %75 = vector.broadcast %cst_30 : f32 to vector<8x1xf32>
    %cst_31 = arith.constant 0.000000e+00 : f32
    %76 = vector.broadcast %cst_31 : f32 to vector<8x1xf32>
    %cst_32 = arith.constant 0.000000e+00 : f32
    %77 = vector.broadcast %cst_32 : f32 to vector<8x8xf32>
    %c0_i32_33 = arith.constant 0 : i32
    %c8_i32_34 = arith.constant 8 : i32
    %78 = arith.muli %c0_i32_33, %c8_i32_34 : i32
    %c0_i32_35 = arith.constant 0 : i32
    %79 = arith.addi %c0_i32_35, %78 : i32
    %80 = tpu.assume_multiple %79, 8 : i32
    %81 = arith.index_cast %80 : i32 to index
    %c8 = arith.constant 8 : index
    %82 = vector.load %arg15[%81, %c8] : memref<8x32xbf16, #tpu.memory_space<vmem>>, vector<8x8xbf16>
    %83 = arith.index_cast %80 : i32 to index
    %c8_36 = arith.constant 8 : index
    %84 = vector.load %arg16[%83, %c8_36] : memref<8x32xbf16, #tpu.memory_space<vmem>>, vector<8x8xbf16>
    %cst_37 = arith.constant dense<0.000000e+00> : vector<8x8xf32>
    %85 = tpu.matmul %74, %82, %cst_37 {dimension_numbers = #tpu.dot_dimension_numbers<[1], [1], [0], [0], [0, 0, 1, 0], [], []>} : vector<8x8xbf16>, vector<8x8xbf16>, vector<8x8xf32> -> vector<8x8xf32>
    %cst_38 = arith.constant 0.353553385 : f32
    %86 = vector.broadcast %cst_38 : f32 to vector<8x8xf32>
    %87 = arith.mulf %85, %86 : vector<8x8xf32>
    %cst_39 = arith.constant dense<0xFF800000> : vector<8xf32>
    %88 = vector.multi_reduction <maximumf>, %87, %cst_39 [1] : vector<8x8xf32> to vector<8xf32>
    %89 = vector.shape_cast %88 : vector<8xf32> to vector<8x1xf32>
    %90 = arith.maximumf %75, %89 : vector<8x1xf32>
    %91 = arith.subf %75, %90 : vector<8x1xf32>
    %92 = math.exp %91 : vector<8x1xf32>
    %93 = vector.broadcast %90 : vector<8x1xf32> to vector<8x8xf32>
    %94 = arith.subf %87, %93 : vector<8x8xf32>
    %95 = math.exp %94 : vector<8x8xf32>
    %96 = arith.mulf %92, %76 : vector<8x1xf32>
    %cst_40 = arith.constant dense<0.000000e+00> : vector<8xf32>
    %97 = vector.multi_reduction <add>, %95, %cst_40 [1] : vector<8x8xf32> to vector<8xf32>
    %98 = vector.shape_cast %97 : vector<8xf32> to vector<8x1xf32>
    %99 = arith.addf %96, %98 : vector<8x1xf32>
    %100 = vector.broadcast %92 : vector<8x1xf32> to vector<8x8xf32>
    %101 = arith.mulf %100, %77 : vector<8x8xf32>
    %102 = arith.truncf %95 : vector<8x8xf32> to vector<8x8xbf16>
    %cst_41 = arith.constant dense<0.000000e+00> : vector<8x8xf32>
    %103 = tpu.matmul %102, %84, %cst_41 {dimension_numbers = #tpu.dot_dimension_numbers<[1], [0], [0], [1], [0, 0, 1, 1], [], []>} : vector<8x8xbf16>, vector<8x8xbf16>, vector<8x8xf32> -> vector<8x8xf32>
    %104 = arith.addf %101, %103 : vector<8x8xf32>
    %c1_i32_42 = arith.constant 1 : i32
    %105 = tpu.reciprocal %99 {approx = true} : vector<8x1xf32> -> vector<8x1xf32>
    %106 = vector.broadcast %105 : vector<8x1xf32> to vector<8x8xf32>
    %107 = arith.mulf %104, %106 : vector<8x8xf32>
    %108 = vector.extract_strided_slice %33 {offsets = [0, 16], sizes = [8, 8], strides = [1, 1]} : vector<8x32xbf16> to vector<8x8xbf16>
    %cst_43 = arith.constant 0xFF800000 : f32
    %109 = vector.broadcast %cst_43 : f32 to vector<8x1xf32>
    %cst_44 = arith.constant 0.000000e+00 : f32
    %110 = vector.broadcast %cst_44 : f32 to vector<8x1xf32>
    %cst_45 = arith.constant 0.000000e+00 : f32
    %111 = vector.broadcast %cst_45 : f32 to vector<8x8xf32>
    %c0_i32_46 = arith.constant 0 : i32
    %c8_i32_47 = arith.constant 8 : i32
    %112 = arith.muli %c0_i32_46, %c8_i32_47 : i32
    %c0_i32_48 = arith.constant 0 : i32
    %113 = arith.addi %c0_i32_48, %112 : i32
    %114 = tpu.assume_multiple %113, 8 : i32
    %115 = arith.index_cast %114 : i32 to index
    %c16 = arith.constant 16 : index
    %116 = vector.load %arg15[%115, %c16] : memref<8x32xbf16, #tpu.memory_space<vmem>>, vector<8x8xbf16>
    %117 = arith.index_cast %114 : i32 to index
    %c16_49 = arith.constant 16 : index
    %118 = vector.load %arg16[%117, %c16_49] : memref<8x32xbf16, #tpu.memory_space<vmem>>, vector<8x8xbf16>
    %cst_50 = arith.constant dense<0.000000e+00> : vector<8x8xf32>
    %119 = tpu.matmul %108, %116, %cst_50 {dimension_numbers = #tpu.dot_dimension_numbers<[1], [1], [0], [0], [0, 0, 1, 0], [], []>} : vector<8x8xbf16>, vector<8x8xbf16>, vector<8x8xf32> -> vector<8x8xf32>
    %cst_51 = arith.constant 0.353553385 : f32
    %120 = vector.broadcast %cst_51 : f32 to vector<8x8xf32>
    %121 = arith.mulf %119, %120 : vector<8x8xf32>
    %cst_52 = arith.constant dense<0xFF800000> : vector<8xf32>
    %122 = vector.multi_reduction <maximumf>, %121, %cst_52 [1] : vector<8x8xf32> to vector<8xf32>
    %123 = vector.shape_cast %122 : vector<8xf32> to vector<8x1xf32>
    %124 = arith.maximumf %109, %123 : vector<8x1xf32>
    %125 = arith.subf %109, %124 : vector<8x1xf32>
    %126 = math.exp %125 : vector<8x1xf32>
    %127 = vector.broadcast %124 : vector<8x1xf32> to vector<8x8xf32>
    %128 = arith.subf %121, %127 : vector<8x8xf32>
    %129 = math.exp %128 : vector<8x8xf32>
    %130 = arith.mulf %126, %110 : vector<8x1xf32>
    %cst_53 = arith.constant dense<0.000000e+00> : vector<8xf32>
    %131 = vector.multi_reduction <add>, %129, %cst_53 [1] : vector<8x8xf32> to vector<8xf32>
    %132 = vector.shape_cast %131 : vector<8xf32> to vector<8x1xf32>
    %133 = arith.addf %130, %132 : vector<8x1xf32>
    %134 = vector.broadcast %126 : vector<8x1xf32> to vector<8x8xf32>
    %135 = arith.mulf %134, %111 : vector<8x8xf32>
    %136 = arith.truncf %129 : vector<8x8xf32> to vector<8x8xbf16>
    %cst_54 = arith.constant dense<0.000000e+00> : vector<8x8xf32>
    %137 = tpu.matmul %136, %118, %cst_54 {dimension_numbers = #tpu.dot_dimension_numbers<[1], [0], [0], [1], [0, 0, 1, 1], [], []>} : vector<8x8xbf16>, vector<8x8xbf16>, vector<8x8xf32> -> vector<8x8xf32>
    %138 = arith.addf %135, %137 : vector<8x8xf32>
    %c1_i32_55 = arith.constant 1 : i32
    %139 = tpu.reciprocal %133 {approx = true} : vector<8x1xf32> -> vector<8x1xf32>
    %140 = vector.broadcast %139 : vector<8x1xf32> to vector<8x8xf32>
    %141 = arith.mulf %138, %140 : vector<8x8xf32>
    %142 = vector.extract_strided_slice %33 {offsets = [0, 24], sizes = [8, 8], strides = [1, 1]} : vector<8x32xbf16> to vector<8x8xbf16>
    %cst_56 = arith.constant 0xFF800000 : f32
    %143 = vector.broadcast %cst_56 : f32 to vector<8x1xf32>
    %cst_57 = arith.constant 0.000000e+00 : f32
    %144 = vector.broadcast %cst_57 : f32 to vector<8x1xf32>
    %cst_58 = arith.constant 0.000000e+00 : f32
    %145 = vector.broadcast %cst_58 : f32 to vector<8x8xf32>
    %c0_i32_59 = arith.constant 0 : i32
    %c8_i32_60 = arith.constant 8 : i32
    %146 = arith.muli %c0_i32_59, %c8_i32_60 : i32
    %c0_i32_61 = arith.constant 0 : i32
    %147 = arith.addi %c0_i32_61, %146 : i32
    %148 = tpu.assume_multiple %147, 8 : i32
    %149 = arith.index_cast %148 : i32 to index
    %c24 = arith.constant 24 : index
    %150 = vector.load %arg15[%149, %c24] : memref<8x32xbf16, #tpu.memory_space<vmem>>, vector<8x8xbf16>
    %151 = arith.index_cast %148 : i32 to index
    %c24_62 = arith.constant 24 : index
    %152 = vector.load %arg16[%151, %c24_62] : memref<8x32xbf16, #tpu.memory_space<vmem>>, vector<8x8xbf16>
    %cst_63 = arith.constant dense<0.000000e+00> : vector<8x8xf32>
    %153 = tpu.matmul %142, %150, %cst_63 {dimension_numbers = #tpu.dot_dimension_numbers<[1], [1], [0], [0], [0, 0, 1, 0], [], []>} : vector<8x8xbf16>, vector<8x8xbf16>, vector<8x8xf32> -> vector<8x8xf32>
    %cst_64 = arith.constant 0.353553385 : f32
    %154 = vector.broadcast %cst_64 : f32 to vector<8x8xf32>
    %155 = arith.mulf %153, %154 : vector<8x8xf32>
    %cst_65 = arith.constant dense<0xFF800000> : vector<8xf32>
    %156 = vector.multi_reduction <maximumf>, %155, %cst_65 [1] : vector<8x8xf32> to vector<8xf32>
    %157 = vector.shape_cast %156 : vector<8xf32> to vector<8x1xf32>
    %158 = arith.maximumf %143, %157 : vector<8x1xf32>
    %159 = arith.subf %143, %158 : vector<8x1xf32>
    %160 = math.exp %159 : vector<8x1xf32>
    %161 = vector.broadcast %158 : vector<8x1xf32> to vector<8x8xf32>
    %162 = arith.subf %155, %161 : vector<8x8xf32>
    %163 = math.exp %162 : vector<8x8xf32>
    %164 = arith.mulf %160, %144 : vector<8x1xf32>
    %cst_66 = arith.constant dense<0.000000e+00> : vector<8xf32>
    %165 = vector.multi_reduction <add>, %163, %cst_66 [1] : vector<8x8xf32> to vector<8xf32>
    %166 = vector.shape_cast %165 : vector<8xf32> to vector<8x1xf32>
    %167 = arith.addf %164, %166 : vector<8x1xf32>
    %168 = vector.broadcast %160 : vector<8x1xf32> to vector<8x8xf32>
    %169 = arith.mulf %168, %145 : vector<8x8xf32>
    %170 = arith.truncf %163 : vector<8x8xf32> to vector<8x8xbf16>
    %cst_67 = arith.constant dense<0.000000e+00> : vector<8x8xf32>
    %171 = tpu.matmul %170, %152, %cst_67 {dimension_numbers = #tpu.dot_dimension_numbers<[1], [0], [0], [1], [0, 0, 1, 1], [], []>} : vector<8x8xbf16>, vector<8x8xbf16>, vector<8x8xf32> -> vector<8x8xf32>
    %172 = arith.addf %169, %171 : vector<8x8xf32>
    %c1_i32_68 = arith.constant 1 : i32
    %173 = tpu.reciprocal %167 {approx = true} : vector<8x1xf32> -> vector<8x1xf32>
    %174 = vector.broadcast %173 : vector<8x1xf32> to vector<8x8xf32>
    %175 = arith.mulf %172, %174 : vector<8x8xf32>
    %176 = tpu.concatenate %73, %107, %141, %175 in 1 : vector<8x8xf32>, vector<8x8xf32>, vector<8x8xf32>, vector<8x8xf32> -> vector<8x32xf32>
    %177 = arith.truncf %176 : vector<8x32xf32> to vector<8x32xbf16>
    %c0_69 = arith.constant 0 : index
    %c0_70 = arith.constant 0 : index
    %178 = vector.load %arg6[%c0_69, %c0_70] : memref<32x32xbf16, #tpu.memory_space<vmem>>, vector<32x32xbf16>
    %cst_71 = arith.constant dense<0.000000e+00> : vector<8x32xf32>
    %179 = tpu.matmul %177, %178, %cst_71 {dimension_numbers = #tpu.dot_dimension_numbers<[1], [0], [0], [1], [0, 0, 1, 1], [], []>} : vector<8x32xbf16>, vector<32x32xbf16>, vector<8x32xf32> -> vector<8x32xf32>
    %180 = arith.addf %1, %179 : vector<8x32xf32>
    %c0_72 = arith.constant 0 : index
    %c0_73 = arith.constant 0 : index
    %181 = vector.load %arg7[%c0_72, %c0_73] : memref<1x32xf32, #tpu.memory_space<vmem>>, vector<1x32xf32>
    %182 = vector.broadcast %181 : vector<1x32xf32> to vector<8x32xf32>
    %183 = arith.addf %180, %182 : vector<8x32xf32>
    %c0_74 = arith.constant 0 : index
    %c0_75 = arith.constant 0 : index
    %184 = vector.load %arg8[%c0_74, %c0_75] : memref<1x32xf32, #tpu.memory_space<vmem>>, vector<1x32xf32>
    %c0_76 = arith.constant 0 : index
    %c0_77 = arith.constant 0 : index
    %185 = vector.load %arg9[%c0_76, %c0_77] : memref<1x32xf32, #tpu.memory_space<vmem>>, vector<1x32xf32>
    %cst_78 = arith.constant dense<0.000000e+00> : vector<8xf32>
    %186 = vector.multi_reduction <add>, %183, %cst_78 [1] : vector<8x32xf32> to vector<8xf32>
    %187 = vector.shape_cast %186 : vector<8xf32> to vector<8x1xf32>
    %cst_79 = arith.constant 3.200000e+01 : f32
    %188 = vector.broadcast %cst_79 : f32 to vector<8x1xf32>
    %189 = arith.divf %187, %188 : vector<8x1xf32>
    %190 = vector.broadcast %189 : vector<8x1xf32> to vector<8x32xf32>
    %191 = arith.subf %183, %190 : vector<8x32xf32>
    %192 = arith.mulf %191, %191 : vector<8x32xf32>
    %cst_80 = arith.constant dense<0.000000e+00> : vector<8xf32>
    %193 = vector.multi_reduction <add>, %192, %cst_80 [1] : vector<8x32xf32> to vector<8xf32>
    %194 = vector.shape_cast %193 : vector<8xf32> to vector<8x1xf32>
    %cst_81 = arith.constant 3.200000e+01 : f32
    %195 = vector.broadcast %cst_81 : f32 to vector<8x1xf32>
    %196 = arith.divf %194, %195 : vector<8x1xf32>
    %197 = vector.broadcast %189 : vector<8x1xf32> to vector<8x32xf32>
    %198 = arith.subf %183, %197 : vector<8x32xf32>
    %cst_82 = arith.constant 9.99999974E-6 : f32
    %199 = vector.broadcast %cst_82 : f32 to vector<8x1xf32>
    %200 = arith.addf %196, %199 : vector<8x1xf32>
    %201 = math.rsqrt %200 : vector<8x1xf32>
    %202 = vector.broadcast %201 : vector<8x1xf32> to vector<8x32xf32>
    %203 = arith.mulf %198, %202 : vector<8x32xf32>
    %204 = vector.broadcast %184 : vector<1x32xf32> to vector<8x32xf32>
    %205 = arith.mulf %203, %204 : vector<8x32xf32>
    %206 = vector.broadcast %185 : vector<1x32xf32> to vector<8x32xf32>
    %207 = arith.addf %205, %206 : vector<8x32xf32>
    %208 = arith.truncf %207 : vector<8x32xf32> to vector<8x32xbf16>
    %cst_83 = arith.constant 0.000000e+00 : f32
    %209 = vector.broadcast %cst_83 : f32 to vector<8x32xf32>
    %c0_i32_84 = arith.constant 0 : i32
    %c128_i32 = arith.constant 128 : i32
    %210 = arith.muli %c0_i32_84, %c128_i32 : i32
    %211 = tpu.assume_multiple %210, 128 : i32
    %c0_85 = arith.constant 0 : index
    %212 = arith.index_cast %211 : i32 to index
    %213 = vector.load %arg10[%c0_85, %212] : memref<32x128xbf16, #tpu.memory_space<vmem>>, vector<32x128xbf16>
    %cst_86 = arith.constant dense<0.000000e+00> : vector<8x128xf32>
    %214 = tpu.matmul %208, %213, %cst_86 {dimension_numbers = #tpu.dot_dimension_numbers<[1], [0], [0], [1], [0, 0, 1, 1], [], []>} : vector<8x32xbf16>, vector<32x128xbf16>, vector<8x128xf32> -> vector<8x128xf32>
    %c0_87 = arith.constant 0 : index
    %215 = arith.index_cast %211 : i32 to index
    %216 = vector.load %arg11[%c0_87, %215] : memref<1x128xf32, #tpu.memory_space<vmem>>, vector<1x128xf32>
    %217 = vector.broadcast %216 : vector<1x128xf32> to vector<8x128xf32>
    %218 = arith.addf %214, %217 : vector<8x128xf32>
    %cst_88 = arith.constant 0.000000e+00 : f32
    %219 = vector.broadcast %cst_88 : f32 to vector<8x128xf32>
    %220 = arith.maximumf %218, %219 : vector<8x128xf32>
    %221 = arith.truncf %220 : vector<8x128xf32> to vector<8x128xbf16>
    %222 = arith.index_cast %211 : i32 to index
    %c0_89 = arith.constant 0 : index
    %223 = vector.load %arg12[%222, %c0_89] : memref<128x32xbf16, #tpu.memory_space<vmem>>, vector<128x32xbf16>
    %cst_90 = arith.constant dense<0.000000e+00> : vector<8x32xf32>
    %224 = tpu.matmul %221, %223, %cst_90 {dimension_numbers = #tpu.dot_dimension_numbers<[1], [0], [0], [1], [0, 0, 1, 1], [], []>} : vector<8x128xbf16>, vector<128x32xbf16>, vector<8x32xf32> -> vector<8x32xf32>
    %225 = arith.addf %209, %224 : vector<8x32xf32>
    %c1_i32_91 = arith.constant 1 : i32
    %226 = arith.addf %183, %225 : vector<8x32xf32>
    %c0_92 = arith.constant 0 : index
    %c0_93 = arith.constant 0 : index
    %227 = vector.load %arg13[%c0_92, %c0_93] : memref<1x32xf32, #tpu.memory_space<vmem>>, vector<1x32xf32>
    %228 = vector.broadcast %227 : vector<1x32xf32> to vector<8x32xf32>
    %229 = arith.addf %226, %228 : vector<8x32xf32>
    %230 = vector.shape_cast %229 : vector<8x32xf32> to vector<1x8x32xf32>
    %c0_94 = arith.constant 0 : index
    %c0_95 = arith.constant 0 : index
    %c0_96 = arith.constant 0 : index
    %231 = vector.load %arg14[%c0_94, %c0_95, %c0_96] : memref<1x8x32xf32, #tpu.memory_space<vmem>>, vector<1x8x32xf32>
    tpu.vector_store %arg14[%c0_94, %c0_95, %c0_96], %230 {strides = array<i32>} : memref<1x8x32xf32, #tpu.memory_space<vmem>>, vector<1x8x32xf32>,
    return
  }
  func.func @transform_0(%arg0: i32) -> (i32, i32, i32) {
    %c0_i32 = arith.constant 0 : i32
    %c0_i32_0 = arith.constant 0 : i32
    %c0_i32_1 = arith.constant 0 : i32
    return %arg0, %c0_i32, %c0_i32_0 : i32, i32, i32
  }
  func.func @transform_1(%arg0: i32) -> (i32, i32) {
    %c0_i32 = arith.constant 0 : i32
    %c0_i32_0 = arith.constant 0 : i32
    %c0_i32_1 = arith.constant 0 : i32
    return %c0_i32, %c0_i32_0 : i32, i32
  }
  func.func @transform_2(%arg0: i32) -> (i32, i32) {
    %c0_i32 = arith.constant 0 : i32
    %c0_i32_0 = arith.constant 0 : i32
    %c0_i32_1 = arith.constant 0 : i32
    return %c0_i32, %c0_i32_0 : i32, i32
  }
  func.func @transform_3(%arg0: i32) -> (i32, i32) {
    %c0_i32 = arith.constant 0 : i32
    %c0_i32_0 = arith.constant 0 : i32
    %c0_i32_1 = arith.constant 0 : i32
    return %c0_i32, %c0_i32_0 : i32, i32
  }
  func.func @transform_4(%arg0: i32) -> (i32, i32) {
    %c0_i32 = arith.constant 0 : i32
    %c0_i32_0 = arith.constant 0 : i32
    %c0_i32_1 = arith.constant 0 : i32
    return %c0_i32, %c0_i32_0 : i32, i32
  }
  func.func @transform_5(%arg0: i32) -> (i32, i32) {
    %c0_i32 = arith.constant 0 : i32
    %c0_i32_0 = arith.constant 0 : i32
    %c0_i32_1 = arith.constant 0 : i32
    return %c0_i32, %c0_i32_0 : i32, i32
  }
  func.func @transform_6(%arg0: i32) -> (i32, i32) {
    %c0_i32 = arith.constant 0 : i32
    %c0_i32_0 = arith.constant 0 : i32
    %c0_i32_1 = arith.constant 0 : i32
    return %c0_i32, %c0_i32_0 : i32, i32
  }
  func.func @transform_7(%arg0: i32) -> (i32, i32) {
    %c0_i32 = arith.constant 0 : i32
    %c0_i32_0 = arith.constant 0 : i32
    %c0_i32_1 = arith.constant 0 : i32
    return %c0_i32, %c0_i32_0 : i32, i32
  }
  func.func @transform_8(%arg0: i32) -> (i32, i32) {
    %c0_i32 = arith.constant 0 : i32
    %c0_i32_0 = arith.constant 0 : i32
    %c0_i32_1 = arith.constant 0 : i32
    return %c0_i32, %c0_i32_0 : i32, i32
  }
  func.func @transform_9(%arg0: i32) -> (i32, i32) {
    %c0_i32 = arith.constant 0 : i32
    %c0_i32_0 = arith.constant 0 : i32
    %c0_i32_1 = arith.constant 0 : i32
    return %c0_i32, %c0_i32_0 : i32, i32
  }
  func.func @transform_10(%arg0: i32) -> (i32, i32) {
    %c0_i32 = arith.constant 0 : i32
    %c0_i32_0 = arith.constant 0 : i32
    %c0_i32_1 = arith.constant 0 : i32
    return %c0_i32, %c0_i32_0 : i32, i32
  }
  func.func @transform_11(%arg0: i32) -> (i32, i32) {
    %c0_i32 = arith.constant 0 : i32
    %c0_i32_0 = arith.constant 0 : i32
    %c0_i32_1 = arith.constant 0 : i32
    return %c0_i32, %c0_i32_0 : i32, i32
  }
  func.func @transform_12(%arg0: i32) -> (i32, i32) {
    %c0_i32 = arith.constant 0 : i32
    %c0_i32_0 = arith.constant 0 : i32
    %c0_i32_1 = arith.constant 0 : i32
    return %c0_i32, %c0_i32_0 : i32, i32
  }
  func.func @transform_13(%arg0: i32) -> (i32, i32, i32) {
    %c0_i32 = arith.constant 0 : i32
    %c0_i32_0 = arith.constant 0 : i32
    %c0_i32_1 = arith.constant 0 : i32
    return %arg0, %c0_i32, %c0_i32_0 : i32, i32, i32
  }
}

</mosaic_0001>

<llo_original>
// kernel: tpu_custom_call.1
$region0: #{tpu_custom_call.1}
  #allocation0 [shape = 'u32[]', space=smem, size = 0x4, offset = 0x4, fixed_abs, tag = 'smem constant byte address 0x4 - core index']
  #allocation1 [shape = 'u32[144,128]{1,0:T(1,128)}', space=vmem, size = 0x12000, scoped, tag = 'internal scratch']
  #allocation2 [shape = 'bf16[8,32]{1,0:T(8,128)(2,1)}', space=vmem, size = 0x800, scoped, tag = 'scratch operand']
  #allocation3 [shape = 'bf16[8,32]{1,0:T(8,128)(2,1)}', space=vmem, size = 0x800, scoped, tag = 'scratch operand']
  %s0 = inlined_call_operand.vmem [shape: f32[2,8,32], index: 0, kind: input, shape index: {}]
  %s1 = inlined_call_operand.vmem [shape: f32[1,32], index: 1, kind: input, shape index: {}]
  %s2 = inlined_call_operand.vmem [shape: f32[1,32], index: 2, kind: input, shape index: {}]
  %s3 = inlined_call_operand.vmem [shape: bf16[32,96], index: 3, kind: input, shape index: {}]
  %s4 = inlined_call_operand.vmem [shape: f32[1,96], index: 4, kind: input, shape index: {}]
  %s5 = inlined_call_operand.vmem [shape: bf16[32,32], index: 5, kind: input, shape index: {}]
  %s6 = inlined_call_operand.vmem [shape: f32[1,32], index: 6, kind: input, shape index: {}]
  %s7 = inlined_call_operand.vmem [shape: f32[1,32], index: 7, kind: input, shape index: {}]
  %s8 = inlined_call_operand.vmem [shape: f32[1,32], index: 8, kind: input, shape index: {}]
  %s9 = inlined_call_operand.vmem [shape: bf16[32,128], index: 9, kind: input, shape index: {}]
  %s10 = inlined_call_operand.vmem [shape: f32[1,128], index: 10, kind: input, shape index: {}]
  %s11 = inlined_call_operand.vmem [shape: bf16[128,32], index: 11, kind: input, shape index: {}]
  %s12 = inlined_call_operand.vmem [shape: f32[1,32], index: 12, kind: input, shape index: {}]
  %s13 = inlined_call_operand.hbm [shape: f32[2,8,32], index: 13, kind: output, shape index: {}]
  %s14 = sld [smem:[#allocation0]]
  $region85: #{tpu_custom_call.1} parent=0
    _
  %s16 = ssub.s32 1, %s14
  %s17 = scalar_select 0, %s16, %s14
  $region1: #{tpu_custom_call.1} parent=0
    #allocation4 [shape = 'u8[8192]{0}', space=vmem, size = 0x2000, scoped, tag = 'output window, operand 0']
    #allocation5 [shape = 's32[2]{0}', space=sflag, size = 0x8, scoped, tag = 'scoped memory for tpu_custom_call.1']
    %18 = vsyncpa [#allocation5], 0
    %s19 = scalar_lea.sflag [#allocation5], 1
    %20 = vsyncpa %s19, 0
    loop: start=0, step=1, limit=4
    $region2: #{tpu_custom_call.1} parent=1 // loop_pre_header
      _
    $region3: #{tpu_custom_call.1} parent=1 // loop_header
      %s22 = sphi 0, %s26
      %p23 = scmp.ge.s32.totalorder %s22, 4
      %s32 = sphi 0, %s34
      %s35 = sphi 0, %s32
      %s36 = sphi 0, %s35
      %s52 = sphi 0, %s36
      %s56 = sphi 0, %s56
      %s58 = sphi 0, %s56
      %s59 = sphi 0, %s58
      %s73 = sphi 0, %s59
      %s77 = sphi 0, %s77
      %s79 = sphi 0, %s77
      %s80 = sphi 0, %s79
      %s94 = sphi 0, %s80
      %s98 = sphi 0, %s98
      %s100 = sphi 0, %s98
      %s101 = sphi 0, %s100
      %s115 = sphi 0, %s101
      %s119 = sphi 0, %s119
      %s121 = sphi 0, %s119
      %s122 = sphi 0, %s121
      %s136 = sphi 0, %s122
      %s140 = sphi 0, %s140
      %s142 = sphi 0, %s140
      %s143 = sphi 0, %s142
      %s157 = sphi 0, %s143
      %s161 = sphi 0, %s161
      %s163 = sphi 0, %s161
      %s164 = sphi 0, %s163
      %s178 = sphi 0, %s164
      %s182 = sphi 0, %s182
      %s184 = sphi 0, %s182
      %s185 = sphi 0, %s184
      %s199 = sphi 0, %s185
      %s203 = sphi 0, %s203
      %s205 = sphi 0, %s203
      %s206 = sphi 0, %s205
      %s220 = sphi 0, %s206
      %s224 = sphi 0, %s224
      %s226 = sphi 0, %s224
      %s227 = sphi 0, %s226
      %s241 = sphi 0, %s227
      %s245 = sphi 0, %s245
      %s247 = sphi 0, %s245
      %s248 = sphi 0, %s247
      %s262 = sphi 0, %s248
      %s266 = sphi 0, %s266
      %s268 = sphi 0, %s266
      %s269 = sphi 0, %s268
      %s283 = sphi 0, %s269
      %s287 = sphi 0, %s287
      %s289 = sphi 0, %s287
      %s290 = sphi 0, %s289
      %s304 = sphi 0, %s290
      %s310 = sphi 0, %s312
      %s313 = sphi 0, %s310
      %s314 = sphi 0, %s313
      %s330 = sphi 0, %s314
    $region4: #{tpu_custom_call.1} parent=1 // loop_header_branch
      %25 = sbr.rel (%p23) target = $region8
    $region5: #{tpu_custom_call.1} parent=1 // loop_body
      %s27 = ssub.s32 %s22, 1
      %s28 = ssub.s32 %s22, 2
      %s29 = sadd.s32 %s22, 1
      %s30 = ssub.s32 %s22, %s29
      %p31 = scmp.eq.s32.totalorder %s30, 0
      %s33 = sadd.s32 %s32, 1
      %s34 = scalar_select %p31, %s32, %s33
      %p37 = pneg %p31
      %p38 = scmp.eq.s32.totalorder %s22, 1
      %p39 = por %p37, %p38
      %p40 = scmp.ne.s32.totalorder %s32, %s35
      %p41 = scmp.eq.s32.totalorder %s22, 0
      %p42 = por %p40, %p41
      %p43 = scmp.ne.s32.totalorder %s32, %s35
      %p44 = scmp.eq.s32.totalorder %s27, 1
      %p45 = por %p43, %p44
      %p46 = scmp.ne.s32.totalorder %s35, %s36
      %p47 = scmp.eq.s32.totalorder %s27, 0
      %p48 = por %p46, %p47
      %p49 = scmp.ne.s32.totalorder %s35, %s36
      %p50 = scmp.eq.s32.totalorder %s28, 1
      %p51 = por %p49, %p50
      %p53 = scmp.ne.s32.totalorder %s36, %s52
      %p54 = scmp.eq.s32.totalorder %s28, 0
      %p55 = por %p53, %p54
      %s57 = sadd.s32 %s56, 1
      %p60 = scmp.eq.s32.totalorder %s22, 1
      %p61 = scmp.ne.s32.totalorder %s56, %s58
      %p62 = scmp.eq.s32.totalorder %s22, 0
      %p63 = por %p61, %p62
      %p64 = scmp.ne.s32.totalorder %s56, %s58
      %p65 = scmp.eq.s32.totalorder %s27, 1
      %p66 = por %p64, %p65
      %p67 = scmp.ne.s32.totalorder %s58, %s59
      %p68 = scmp.eq.s32.totalorder %s27, 0
      %p69 = por %p67, %p68
      %p70 = scmp.ne.s32.totalorder %s58, %s59
      %p71 = scmp.eq.s32.totalorder %s28, 1
      %p72 = por %p70, %p71
      %p74 = scmp.ne.s32.totalorder %s59, %s73
      %p75 = scmp.eq.s32.totalorder %s28, 0
      %p76 = por %p74, %p75
      %s78 = sadd.s32 %s77, 1
      %p81 = scmp.eq.s32.totalorder %s22, 1
      %p82 = scmp.ne.s32.totalorder %s77, %s79
      %p83 = scmp.eq.s32.totalorder %s22, 0
      %p84 = por %p82, %p83
      %p85 = scmp.ne.s32.totalorder %s77, %s79
      %p86 = scmp.eq.s32.totalorder %s27, 1
      %p87 = por %p85, %p86
      %p88 = scmp.ne.s32.totalorder %s79, %s80
      %p89 = scmp.eq.s32.totalorder %s27, 0
      %p90 = por %p88, %p89
      %p91 = scmp.ne.s32.totalorder %s79, %s80
      %p92 = scmp.eq.s32.totalorder %s28, 1
      %p93 = por %p91, %p92
      %p95 = scmp.ne.s32.totalorder %s80, %s94
      %p96 = scmp.eq.s32.totalorder %s28, 0
      %p97 = por %p95, %p96
      %s99 = sadd.s32 %s98, 1
      %p102 = scmp.eq.s32.totalorder %s22, 1
      %p103 = scmp.ne.s32.totalorder %s98, %s100
      %p104 = scmp.eq.s32.totalorder %s22, 0
      %p105 = por %p103, %p104
      %p106 = scmp.ne.s32.totalorder %s98, %s100
      %p107 = scmp.eq.s32.totalorder %s27, 1
      %p108 = por %p106, %p107
      %p109 = scmp.ne.s32.totalorder %s100, %s101
      %p110 = scmp.eq.s32.totalorder %s27, 0
      %p111 = por %p109, %p110
      %p112 = scmp.ne.s32.totalorder %s100, %s101
      %p113 = scmp.eq.s32.totalorder %s28, 1
      %p114 = por %p112, %p113
      %p116 = scmp.ne.s32.totalorder %s101, %s115
      %p117 = scmp.eq.s32.totalorder %s28, 0
      %p118 = por %p116, %p117
      %s120 = sadd.s32 %s119, 1
      %p123 = scmp.eq.s32.totalorder %s22, 1
      %p124 = scmp.ne.s32.totalorder %s119, %s121
      %p125 = scmp.eq.s32.totalorder %s22, 0
      %p126 = por %p124, %p125
      %p127 = scmp.ne.s32.totalorder %s119, %s121
      %p128 = scmp.eq.s32.totalorder %s27, 1
      %p129 = por %p127, %p128
      %p130 = scmp.ne.s32.totalorder %s121, %s122
      %p131 = scmp.eq.s32.totalorder %s27, 0
      %p132 = por %p130, %p131
      %p133 = scmp.ne.s32.totalorder %s121, %s122
      %p134 = scmp.eq.s32.totalorder %s28, 1
      %p135 = por %p133, %p134
      %p137 = scmp.ne.s32.totalorder %s122, %s136
      %p138 = scmp.eq.s32.totalorder %s28, 0
      %p139 = por %p137, %p138
      %s141 = sadd.s32 %s140, 1
      %p144 = scmp.eq.s32.totalorder %s22, 1
      %p145 = scmp.ne.s32.totalorder %s140, %s142
      %p146 = scmp.eq.s32.totalorder %s22, 0
      %p147 = por %p145, %p146
      %p148 = scmp.ne.s32.totalorder %s140, %s142
      %p149 = scmp.eq.s32.totalorder %s27, 1
      %p150 = por %p148, %p149
      %p151 = scmp.ne.s32.totalorder %s142, %s143
      %p152 = scmp.eq.s32.totalorder %s27, 0
      %p153 = por %p151, %p152
      %p154 = scmp.ne.s32.totalorder %s142, %s143
      %p155 = scmp.eq.s32.totalorder %s28, 1
      %p156 = por %p154, %p155
      %p158 = scmp.ne.s32.totalorder %s143, %s157
      %p159 = scmp.eq.s32.totalorder %s28, 0
      %p160 = por %p158, %p159
      %s162 = sadd.s32 %s161, 1
      %p165 = scmp.eq.s32.totalorder %s22, 1
      %p166 = scmp.ne.s32.totalorder %s161, %s163
      %p167 = scmp.eq.s32.totalorder %s22, 0
      %p168 = por %p166, %p167
      %p169 = scmp.ne.s32.totalorder %s161, %s163
      %p170 = scmp.eq.s32.totalorder %s27, 1
      %p171 = por %p169, %p170
      %p172 = scmp.ne.s32.totalorder %s163, %s164
      %p173 = scmp.eq.s32.totalorder %s27, 0
      %p174 = por %p172, %p173
      %p175 = scmp.ne.s32.totalorder %s163, %s164
      %p176 = scmp.eq.s32.totalorder %s28, 1
      %p177 = por %p175, %p176
      %p179 = scmp.ne.s32.totalorder %s164, %s178
      %p180 = scmp.eq.s32.totalorder %s28, 0
      %p181 = por %p179, %p180
      %s183 = sadd.s32 %s182, 1
      %p186 = scmp.eq.s32.totalorder %s22, 1
      %p187 = scmp.ne.s32.totalorder %s182, %s184
      %p188 = scmp.eq.s32.totalorder %s22, 0
      %p189 = por %p187, %p188
      %p190 = scmp.ne.s32.totalorder %s182, %s184
      %p191 = scmp.eq.s32.totalorder %s27, 1
      %p192 = por %p190, %p191
      %p193 = scmp.ne.s32.totalorder %s184, %s185
      %p194 = scmp.eq.s32.totalorder %s27, 0
      %p195 = por %p193, %p194
      %p196 = scmp.ne.s32.totalorder %s184, %s185
      %p197 = scmp.eq.s32.totalorder %s28, 1
      %p198 = por %p196, %p197
      %p200 = scmp.ne.s32.totalorder %s185, %s199
      %p201 = scmp.eq.s32.totalorder %s28, 0
      %p202 = por %p200, %p201
      %s204 = sadd.s32 %s203, 1
      %p207 = scmp.eq.s32.totalorder %s22, 1
      %p208 = scmp.ne.s32.totalorder %s203, %s205
      %p209 = scmp.eq.s32.totalorder %s22, 0
      %p210 = por %p208, %p209
      %p211 = scmp.ne.s32.totalorder %s203, %s205
      %p212 = scmp.eq.s32.totalorder %s27, 1
      %p213 = por %p211, %p212
      %p214 = scmp.ne.s32.totalorder %s205, %s206
      %p215 = scmp.eq.s32.totalorder %s27, 0
      %p216 = por %p214, %p215
      %p217 = scmp.ne.s32.totalorder %s205, %s206
      %p218 = scmp.eq.s32.totalorder %s28, 1
      %p219 = por %p217, %p218
      %p221 = scmp.ne.s32.totalorder %s206, %s220
      %p222 = scmp.eq.s32.totalorder %s28, 0
      %p223 = por %p221, %p222
      %s225 = sadd.s32 %s224, 1
      %p228 = scmp.eq.s32.totalorder %s22, 1
      %p229 = scmp.ne.s32.totalorder %s224, %s226
      %p230 = scmp.eq.s32.totalorder %s22, 0
      %p231 = por %p229, %p230
      %p232 = scmp.ne.s32.totalorder %s224, %s226
      %p233 = scmp.eq.s32.totalorder %s27, 1
      %p234 = por %p232, %p233
      %p235 = scmp.ne.s32.totalorder %s226, %s227
      %p236 = scmp.eq.s32.totalorder %s27, 0
      %p237 = por %p235, %p236
      %p238 = scmp.ne.s32.totalorder %s226, %s227
      %p239 = scmp.eq.s32.totalorder %s28, 1
      %p240 = por %p238, %p239
      %p242 = scmp.ne.s32.totalorder %s227, %s241
      %p243 = scmp.eq.s32.totalorder %s28, 0
      %p244 = por %p242, %p243
      %s246 = sadd.s32 %s245, 1
      %p249 = scmp.eq.s32.totalorder %s22, 1
      %p250 = scmp.ne.s32.totalorder %s245, %s247
      %p251 = scmp.eq.s32.totalorder %s22, 0
      %p252 = por %p250, %p251
      %p253 = scmp.ne.s32.totalorder %s245, %s247
      %p254 = scmp.eq.s32.totalorder %s27, 1
      %p255 = por %p253, %p254
      %p256 = scmp.ne.s32.totalorder %s247, %s248
      %p257 = scmp.eq.s32.totalorder %s27, 0
      %p258 = por %p256, %p257
      %p259 = scmp.ne.s32.totalorder %s247, %s248
      %p260 = scmp.eq.s32.totalorder %s28, 1
      %p261 = por %p259, %p260
      %p263 = scmp.ne.s32.totalorder %s248, %s262
      %p264 = scmp.eq.s32.totalorder %s28, 0
      %p265 = por %p263, %p264
      %s267 = sadd.s32 %s266, 1
      %p270 = scmp.eq.s32.totalorder %s22, 1
      %p271 = scmp.ne.s32.totalorder %s266, %s268
      %p272 = scmp.eq.s32.totalorder %s22, 0
      %p273 = por %p271, %p272
      %p274 = scmp.ne.s32.totalorder %s266, %s268
      %p275 = scmp.eq.s32.totalorder %s27, 1
      %p276 = por %p274, %p275
      %p277 = scmp.ne.s32.totalorder %s268, %s269
      %p278 = scmp.eq.s32.totalorder %s27, 0
      %p279 = por %p277, %p278
      %p280 = scmp.ne.s32.totalorder %s268, %s269
      %p281 = scmp.eq.s32.totalorder %s28, 1
      %p282 = por %p280, %p281
      %p284 = scmp.ne.s32.totalorder %s269, %s283
      %p285 = scmp.eq.s32.totalorder %s28, 0
      %p286 = por %p284, %p285
      %s288 = sadd.s32 %s287, 1
      %p291 = scmp.eq.s32.totalorder %s22, 1
      %p292 = scmp.ne.s32.totalorder %s287, %s289
      %p293 = scmp.eq.s32.totalorder %s22, 0
      %p294 = por %p292, %p293
      %p295 = scmp.ne.s32.totalorder %s287, %s289
      %p296 = scmp.eq.s32.totalorder %s27, 1
      %p297 = por %p295, %p296
      %p298 = scmp.ne.s32.totalorder %s289, %s290
      %p299 = scmp.eq.s32.totalorder %s27, 0
      %p300 = por %p298, %p299
      %p301 = scmp.ne.s32.totalorder %s289, %s290
      %p302 = scmp.eq.s32.totalorder %s28, 1
      %p303 = por %p301, %p302
      %p305 = scmp.ne.s32.totalorder %s290, %s304
      %p306 = scmp.eq.s32.totalorder %s28, 0
      %p307 = por %p305, %p306
      %s308 = ssub.s32 %s22, %s29
      %p309 = scmp.eq.s32.totalorder %s308, 0
      %s311 = sadd.s32 %s310, 1
      %s312 = scalar_select %p309, %s310, %s311
      %p315 = pneg %p309
      %p316 = scmp.eq.s32.totalorder %s22, 1
      %p317 = por %p315, %p316
      %p318 = scmp.ne.s32.totalorder %s310, %s313
      %p319 = scmp.eq.s32.totalorder %s22, 0
      %p320 = por %p318, %p319
      %p321 = scmp.ne.s32.totalorder %s310, %s313
      %p322 = scmp.eq.s32.totalorder %s27, 1
      %p323 = por %p321, %p322
      %p324 = scmp.ne.s32.totalorder %s313, %s314
      %p325 = scmp.eq.s32.totalorder %s27, 0
      %p326 = por %p324, %p325
      %p327 = scmp.ne.s32.totalorder %s313, %s314
      %p328 = scmp.eq.s32.totalorder %s28, 1
      %p329 = por %p327, %p328
      %p331 = scmp.ne.s32.totalorder %s314, %s330
      %p332 = scmp.eq.s32.totalorder %s28, 0
      %p333 = por %p331, %p332
      %p334 = scmp.le.s32.totalorder 1, %s22
      %p335 = scmp.lt.s32.totalorder %s22, 3
      %p336 = pnand %p334, %p335
      %p337 = pneg %p336
      // Predicated region
      $region9: #{tpu_custom_call.1} parent=5 // pred_check
        _
      $region10: #{tpu_custom_call.1} parent=5 // pred_check_branch
        %339 = sbr.rel (%p336) target = $region12
      $region11: #{tpu_custom_call.1} parent=5 // pred_region
        %s340 = ssub.s32 %s22, 1
        // Predicated region
        $region13: #{tpu_custom_call.1} parent=11 // pred_check
          %p341 = pneg %p69
        $region14: #{tpu_custom_call.1} parent=11 // pred_check_branch
          %343 = sbr.rel (%p341) target = $region16
        $region15: #{tpu_custom_call.1} parent=11 // pred_region
          _
        $region16: #{tpu_custom_call.1} parent=11 // pred_fallthru
          _
        // Predicated region
        $region17: #{tpu_custom_call.1} parent=11 // pred_check
          %p344 = pneg %p90
        $region18: #{tpu_custom_call.1} parent=11 // pred_check_branch
          %346 = sbr.rel (%p344) target = $region20
        $region19: #{tpu_custom_call.1} parent=11 // pred_region
          _
        $region20: #{tpu_custom_call.1} parent=11 // pred_fallthru
          _
        // Predicated region
        $region21: #{tpu_custom_call.1} parent=11 // pred_check
          %p347 = pneg %p111
        $region22: #{tpu_custom_call.1} parent=11 // pred_check_branch
          %349 = sbr.rel (%p347) target = $region24
        $region23: #{tpu_custom_call.1} parent=11 // pred_region
          _
        $region24: #{tpu_custom_call.1} parent=11 // pred_fallthru
          _
        // Predicated region
        $region25: #{tpu_custom_call.1} parent=11 // pred_check
          %p350 = pneg %p132
        $region26: #{tpu_custom_call.1} parent=11 // pred_check_branch
          %352 = sbr.rel (%p350) target = $region28
        $region27: #{tpu_custom_call.1} parent=11 // pred_region
          _
        $region28: #{tpu_custom_call.1} parent=11 // pred_fallthru
          _
        // Predicated region
        $region29: #{tpu_custom_call.1} parent=11 // pred_check
          %p353 = pneg %p153
        $region30: #{tpu_custom_call.1} parent=11 // pred_check_branch
          %355 = sbr.rel (%p353) target = $region32
        $region31: #{tpu_custom_call.1} parent=11 // pred_region
          _
        $region32: #{tpu_custom_call.1} parent=11 // pred_fallthru
          _
        // Predicated region
        $region33: #{tpu_custom_call.1} parent=11 // pred_check
          %p356 = pneg %p174
        $region34: #{tpu_custom_call.1} parent=11 // pred_check_branch
          %358 = sbr.rel (%p356) target = $region36
        $region35: #{tpu_custom_call.1} parent=11 // pred_region
          _
        $region36: #{tpu_custom_call.1} parent=11 // pred_fallthru
          _
        // Predicated region
        $region37: #{tpu_custom_call.1} parent=11 // pred_check
          %p359 = pneg %p195
        $region38: #{tpu_custom_call.1} parent=11 // pred_check_branch
          %361 = sbr.rel (%p359) target = $region40
        $region39: #{tpu_custom_call.1} parent=11 // pred_region
          _
        $region40: #{tpu_custom_call.1} parent=11 // pred_fallthru
          _
        // Predicated region
        $region41: #{tpu_custom_call.1} parent=11 // pred_check
          %p362 = pneg %p216
        $region42: #{tpu_custom_call.1} parent=11 // pred_check_branch
          %364 = sbr.rel (%p362) target = $region44
        $region43: #{tpu_custom_call.1} parent=11 // pred_region
          _
        $region44: #{tpu_custom_call.1} parent=11 // pred_fallthru
          _
        // Predicated region
        $region45: #{tpu_custom_call.1} parent=11 // pred_check
          %p365 = pneg %p237
        $region46: #{tpu_custom_call.1} parent=11 // pred_check_branch
          %367 = sbr.rel (%p365) target = $region48
        $region47: #{tpu_custom_call.1} parent=11 // pred_region
          _
        $region48: #{tpu_custom_call.1} parent=11 // pred_fallthru
          _
        // Predicated region
        $region49: #{tpu_custom_call.1} parent=11 // pred_check
          %p368 = pneg %p258
        $region50: #{tpu_custom_call.1} parent=11 // pred_check_branch
          %370 = sbr.rel (%p368) target = $region52
        $region51: #{tpu_custom_call.1} parent=11 // pred_region
          _
        $region52: #{tpu_custom_call.1} parent=11 // pred_fallthru
          _
        // Predicated region
        $region53: #{tpu_custom_call.1} parent=11 // pred_check
          %p371 = pneg %p279
        $region54: #{tpu_custom_call.1} parent=11 // pred_check_branch
          %373 = sbr.rel (%p371) target = $region56
        $region55: #{tpu_custom_call.1} parent=11 // pred_region
          _
        $region56: #{tpu_custom_call.1} parent=11 // pred_fallthru
          _
        // Predicated region
        $region57: #{tpu_custom_call.1} parent=11 // pred_check
          %p374 = pneg %p300
        $region58: #{tpu_custom_call.1} parent=11 // pred_check_branch
          %376 = sbr.rel (%p374) target = $region60
        $region59: #{tpu_custom_call.1} parent=11 // pred_region
          _
        $region60: #{tpu_custom_call.1} parent=11 // pred_fallthru
          _
      $region12: #{tpu_custom_call.1} parent=5 // pred_fallthru
        _
      %p377 = scmp.lt.s32.totalorder %s22, 2
      // Predicated region
      $region61: #{tpu_custom_call.1} parent=5 // pred_check
        %p378 = pneg %p377
      $region62: #{tpu_custom_call.1} parent=5 // pred_check_branch
        %380 = sbr.rel (%p378) target = $region64
      $region63: #{tpu_custom_call.1} parent=5 // pred_region
        // Predicated region
        $region65: #{tpu_custom_call.1} parent=63 // pred_check
          %p381 = pneg %p42
        $region66: #{tpu_custom_call.1} parent=63 // pred_check_branch
          %383 = sbr.rel (%p381) target = $region68
        $region67: #{tpu_custom_call.1} parent=63 // pred_region
          %p384 = scmp.lt.s32.totalorder %s22, 1
          %s385 = scalar_select %p384, %s22, 1
          %s386 = smul.addr %s385, 8
          %s387 = scalar_lea.vmem %s0, %s386
        $region68: #{tpu_custom_call.1} parent=63 // pred_fallthru
          _
      $region64: #{tpu_custom_call.1} parent=5 // pred_fallthru
        _
      %p388 = scmp.le.s32.totalorder 1, %s22
      %p389 = scmp.lt.s32.totalorder %s22, 3
      %p390 = pnand %p388, %p389
      %p391 = pneg %p390
      // Predicated region
      $region69: #{tpu_custom_call.1} parent=5 // pred_check
        _
      $region70: #{tpu_custom_call.1} parent=5 // pred_check_branch
        %393 = sbr.rel (%p390) target = $region72
      $region71: #{tpu_custom_call.1} parent=5 // pred_region
        %s394 = ssub.s32 %s22, 1
        %p395 = scmp.lt.s32.totalorder %s27, 1
        %s396 = scalar_select %p395, %s27, 1
        %s397 = smul.addr %s396, 8
        %s398 = scalar_lea.vmem %s0, %s397
        %p399 = pneg %p48
        %p400 = pneg %p45
        %p401 = pneg %p69
        %p402 = pneg %p66
        %p403 = pneg %p90
        %p404 = pneg %p87
        %p405 = pneg %p111
        %p406 = pneg %p108
        %p407 = pneg %p132
        %p408 = pneg %p129
        %p409 = pneg %p153
        %p410 = pneg %p150
        %p411 = pneg %p174
        %p412 = pneg %p171
        %p413 = pneg %p195
        %p414 = pneg %p192
        %p415 = pneg %p216
        %p416 = pneg %p213
        %p417 = pneg %p237
        %p418 = pneg %p234
        %p419 = pneg %p258
        %p420 = pneg %p255
        %p421 = pneg %p279
        %p422 = pneg %p276
        %p423 = pneg %p300
        %p424 = pneg %p297
        %p425 = pneg %p326
        %p426 = pneg %p323
        %s427 = sand.u32 %s313, 1
        %s428 = scalar_lea.sflag [#allocation5], %s427
        %s429 = sand.u32 %s313, 1
        %s430 = smul.addr %s429, 8
        %s431 = scalar_lea.vmem [#allocation4], %s430
        %p432 = scmp.lt.s32.totalorder %s27, 1
        %s433 = scalar_select %p432, %s27, 1
        %s434 = smul.addr %s433, 8
        %s435 = scalar_lea.vmem %s0, %s434
        %v437 = vld [vmem:[%s435] sm:$0xff]
        %v438 = vld [vmem:[%s1] sm:$0x1]
        %v439 = vld [vmem:[%s2] sm:$0x1]
        %vm440 = vcmask 261120
        %v441 = vsel %vm440, %v437, 0.0
        %442 = vadd.xlane.f32.xlu0 %v441
        %v443 = vpop.xlane.xlu0 %442
        %v444 = vrcp.pop 32.0
        %v445 = vmul.f32 %v443, %v444
        %v446 = vsub.f32 %v437, %v445
        %v447 = vmul.f32 %v446, %v446
        %v448 = vsel %vm440, %v447, 0.0
        %449 = vadd.xlane.f32.xlu0 %v448
        %v450 = vpop.xlane.xlu0 %449
        %v451 = vmul.f32 %v450, %v444
        %v452 = vadd.f32 %v451, 1e-05
        %v453 = vrsqrt.pop %v452
        %v454 = vmul.f32 %v446, %v453
        %v456 = vlaneseq
        %v457 = vshrl.u32 %v456, 7
        %v458 = vsub.s32 0, %v457
        %v459 = vrot.slane %v438, %v458
        %v461 = vmul.f32 %v454, %v459
        %v463 = vlaneseq
        %v464 = vshrl.u32 %v463, 7
        %v465 = vsub.s32 0, %v464
        %v466 = vrot.slane %v439, %v465
        %v468 = vadd.f32 %v461, %v466
        %v469 = vpack.c.bf16 %v468, %v468
        %v470 = vld [vmem:[%s3] sm:$0xf]
        %v471 = vld [vmem:[%s3 + $0x4] sm:$0xf]
        %v472 = vld [vmem:[%s3 + $0x8] sm:$0xf]
        %v473 = vld [vmem:[%s3 + $0xc] sm:$0xf]
        %v474 = vld [vmem:[%s4] sm:$0x1]
        %v476 = vlaneseq
        %v477 = vshrl.u32 %v476, 7
        %v478 = vsub.s32 0, %v477
        %v479 = vrot.slane %v474, %v478
        %v485 = vunpack.c.l.b16 %v470
        %v486 = vunpack.c.l.b16 %v471
        %v487 = vunpack.c.l.b16 %v472
        %v488 = vunpack.c.l.b16 %v473
        %v489 = vpack.c.b16 %v486, %v485
        %v490 = vpack.c.b16 %v488, %v487
        %v494 = vsel %vm440, %v469, 0
        %496 = vmatprep.subr.bf16.mxu0 0
        %497 = vmatpush1.bf16.msra.mxu0 0
        %498 = vmatprep.subr.bf16.mxu0 0
        %499 = vmatpush1.bf16.msra.mxu0 0
        %500 = vmatprep.subr.bf16.mxu0 0
        %501 = vmatpush1.bf16.msra.mxu0 0
        %502 = vmatprep.subr.bf16.mxu0 0
        %503 = vmatpush1.bf16.msra.mxu0 0
        %504 = vmatprep.subr.bf16.mxu0 0
        %505 = vmatpush1.bf16.msra.mxu0 0
        %506 = vmatprep.subr.bf16.mxu0 0
        %507 = vmatpush1.bf16.msra.mxu0 0
        %508 = vmatprep.subr.bf16.mxu0 0
        %509 = vmatpush1.bf16.msra.mxu0 %v490
        %510 = vmatprep.subr.bf16.mxu0 0
        %511 = vmatpush1.bf16.msra.mxu0 %v489
        %512 = vmatprep.subr.bf16.mxu0 0
        %513 = vmatpush2.bf16.msra.mxu0 0
        %514 = vmatprep.subr.bf16.mxu0 0
        %515 = vmatpush2.bf16.msra.mxu0 0
        %516 = vmatprep.subr.bf16.mxu0 0
        %517 = vmatpush2.bf16.msra.mxu0 0
        %518 = vmatprep.subr.bf16.mxu0 0
        %519 = vmatpush2.bf16.msra.mxu0 0
        %520 = vmatprep.subr.bf16.mxu0 0
        %521 = vmatpush2.bf16.msra.mxu0 0
        %522 = vmatprep.subr.bf16.mxu0 0
        %523 = vmatpush2.bf16.msra.mxu0 0
        %524 = vmatprep.subr.bf16.mxu0 0
        %525 = vmatpush2.bf16.msra.mxu0 0
        %526 = vmatprep.subr.bf16.mxu0 0
        %527 = vmatpush2.bf16.msra.mxu0 0
        %528 = vmatprep.mubr.bf16.mxu0 0
        %529 = vmatmul.mubr.bf16.gmra.mxu0 %v494
        %v530 = vpop.f32.mrf.mxu0
        %v531 = vadd.f32 %v479, %v530
        %v532 = vpop.f32.mrf.mxu0
        %v533 = vpop.f32.mrf.mxu0
        %v534 = vpop.f32.mrf.mxu0
        %535 = vdwg.mxu0
        %v536 = vpack.c.bf16 %v531, %v531
        %v538 = vunpack.c.l.b16 %v536
        %v539 = vpack.c.b16 %v538, %v538
        %540 = vrot.lane.b32.xlu0 %v539, 96
        %v541 = vpop.permute.xlu0 %540
        %vm543 = vcmask 257024
        %544 = vst.msk [vmem:[#allocation2] sm:$0xf] %vm543, %v541
        %545 = vrot.lane.b32.xlu0 %v539, 64
        %v546 = vpop.permute.xlu0 %545
        %548 = vst.msk [vmem:[#allocation3] sm:$0xf] %vm543, %v546
        %v549 = vld [vmem:[#allocation2] sm:$0xf]
        %v550 = vld [vmem:[#allocation3] sm:$0xf]
        %vm551 = vcmask 64512
        %v553 = vsel %vm551, %v536, 0
        %v556 = vsel %vm551, %v549, 0
        %558 = vmatprep.subr.bf16.mxu0 0
        %559 = vmatpush1.bf16.xpose.msra.mxu0 0
        %560 = vmatprep.subr.bf16.mxu0 0
        %561 = vmatpush1.bf16.xpose.msra.mxu0 0
        %562 = vmatprep.subr.bf16.mxu0 0
        %563 = vmatpush1.bf16.xpose.msra.mxu0 0
        %564 = vmatprep.subr.bf16.mxu0 0
        %565 = vmatpush1.bf16.xpose.msra.mxu0 0
        %566 = vmatprep.subr.bf16.mxu0 0
        %567 = vmatpush1.bf16.xpose.msra.mxu0 0
        %568 = vmatprep.subr.bf16.mxu0 0
        %569 = vmatpush1.bf16.xpose.msra.mxu0 0
        %570 = vmatprep.subr.bf16.mxu0 0
        %571 = vmatpush1.bf16.xpose.msra.mxu0 0
        %572 = vmatprep.subr.bf16.mxu0 0
        %573 = vmatpush1.bf16.xpose.msra.mxu0 %v556
        %574 = vmatprep.subr.bf16.mxu0 0
        %575 = vmatpush2.bf16.xpose.msra.mxu0 0
        %576 = vmatprep.subr.bf16.mxu0 0
        %577 = vmatpush2.bf16.xpose.msra.mxu0 0
        %578 = vmatprep.subr.bf16.mxu0 0
        %579 = vmatpush2.bf16.xpose.msra.mxu0 0
        %580 = vmatprep.subr.bf16.mxu0 0
        %581 = vmatpush2.bf16.xpose.msra.mxu0 0
        %582 = vmatprep.subr.bf16.mxu0 0
        %583 = vmatpush2.bf16.xpose.msra.mxu0 0
        %584 = vmatprep.subr.bf16.mxu0 0
        %585 = vmatpush2.bf16.xpose.msra.mxu0 0
        %586 = vmatprep.subr.bf16.mxu0 0
        %587 = vmatpush2.bf16.xpose.msra.mxu0 0
        %588 = vmatprep.subr.bf16.mxu0 0
        %589 = vmatpush2.bf16.xpose.msra.mxu0 0
        %590 = vmatprep.mubr.bf16.mxu0 0
        %591 = vmatmul.mubr.bf16.gmra.mxu0 %v553
        %v592 = vpop.f32.mrf.mxu0
        %v593 = vadd.f32 0.0, %v592
        %v594 = vpop.f32.mrf.mxu0
        %v595 = vpop.f32.mrf.mxu0
        %v596 = vpop.f32.mrf.mxu0
        %597 = vdwg.mxu0
        %v598 = vmul.f32 %v593, 0.35355338
        %v599 = vsel %vm551, %v598, -inf
        %600 = vmax.xlane.f32.xlu0 %v599
        %v601 = vpop.xlane.xlu0 %600
        %v602 = vsub.f32 -inf, %v601
        %v603 = vmul.f32 %v602, 1.442695
        %v604 = vpow.pop %v603
        %v605 = vsub.f32 %v598, %v601
        %v606 = vmul.f32 %v605, 1.442695
        %v607 = vpow.pop %v606
        %v608 = vmul.f32 %v604, 0.0
        %v609 = vsel %vm551, %v607, 0.0
        %610 = vadd.xlane.f32.xlu0 %v609
        %v611 = vpop.xlane.xlu0 %610
        %v612 = vadd.f32 %v608, %v611
        %v613 = vpack.c.bf16 %v607, %v607
        %v615 = vsel %vm551, %v613, 0
        %vm617 = vcmask 1043456
        %v619 = vsel %vm617, %v550, 0
        %621 = vmatprep.subr.bf16.mxu0 0
        %622 = vmatpush1.bf16.msra.mxu0 0
        %623 = vmatprep.subr.bf16.mxu0 0
        %624 = vmatpush1.bf16.msra.mxu0 0
        %625 = vmatprep.subr.bf16.mxu0 0
        %626 = vmatpush1.bf16.msra.mxu0 0
        %627 = vmatprep.subr.bf16.mxu0 0
        %628 = vmatpush1.bf16.msra.mxu0 0
        %629 = vmatprep.subr.bf16.mxu0 0
        %630 = vmatpush1.bf16.msra.mxu0 0
        %631 = vmatprep.subr.bf16.mxu0 0
        %632 = vmatpush1.bf16.msra.mxu0 0
        %633 = vmatprep.subr.bf16.mxu0 0
        %634 = vmatpush1.bf16.msra.mxu0 0
        %635 = vmatprep.subr.bf16.mxu0 0
        %636 = vmatpush1.bf16.msra.mxu0 %v619
        %637 = vmatprep.subr.bf16.mxu0 0
        %638 = vmatpush2.bf16.msra.mxu0 0
        %639 = vmatprep.subr.bf16.mxu0 0
        %640 = vmatpush2.bf16.msra.mxu0 0
        %641 = vmatprep.subr.bf16.mxu0 0
        %642 = vmatpush2.bf16.msra.mxu0 0
        %643 = vmatprep.subr.bf16.mxu0 0
        %644 = vmatpush2.bf16.msra.mxu0 0
        %645 = vmatprep.subr.bf16.mxu0 0
        %646 = vmatpush2.bf16.msra.mxu0 0
        %647 = vmatprep.subr.bf16.mxu0 0
        %648 = vmatpush2.bf16.msra.mxu0 0
        %649 = vmatprep.subr.bf16.mxu0 0
        %650 = vmatpush2.bf16.msra.mxu0 0
        %651 = vmatprep.subr.bf16.mxu0 0
        %652 = vmatpush2.bf16.msra.mxu0 0
        %653 = vmatprep.mubr.bf16.mxu0 0
        %654 = vmatmul.mubr.bf16.gmra.mxu0 %v615
        %v655 = vpop.f32.mrf.mxu0
        %v656 = vadd.f32 0.0, %v655
        %v657 = vpop.f32.mrf.mxu0
        %v658 = vpop.f32.mrf.mxu0
        %v659 = vpop.f32.mrf.mxu0
        %660 = vdwg.mxu0
        %v661 = vadd.f32 %v608, %v656
        %v662 = vrcp.pop %v612
        %v663 = vmul.f32 %v661, %v662
        %664 = vrot.lane.b32.xlu0 %v536, 120
        %v665 = vpop.permute.xlu0 %664
        %v667 = vunpack.c.l.b16 %v549
        %v668 = vpack.c.b16 %v667, %v667
        %669 = vrot.lane.b32.xlu0 %v668, 120
        %v670 = vpop.permute.xlu0 %669
        %v672 = vsel %vm551, %v665, 0
        %v675 = vsel %vm551, %v670, 0
        %677 = vmatprep.subr.bf16.mxu0 0
        %678 = vmatpush1.bf16.xpose.msra.mxu0 0
        %679 = vmatprep.subr.bf16.mxu0 0
        %680 = vmatpush1.bf16.xpose.msra.mxu0 0
        %681 = vmatprep.subr.bf16.mxu0 0
        %682 = vmatpush1.bf16.xpose.msra.mxu0 0
        %683 = vmatprep.subr.bf16.mxu0 0
        %684 = vmatpush1.bf16.xpose.msra.mxu0 0
        %685 = vmatprep.subr.bf16.mxu0 0
        %686 = vmatpush1.bf16.xpose.msra.mxu0 0
        %687 = vmatprep.subr.bf16.mxu0 0
        %688 = vmatpush1.bf16.xpose.msra.mxu0 0
        %689 = vmatprep.subr.bf16.mxu0 0
        %690 = vmatpush1.bf16.xpose.msra.mxu0 0
        %691 = vmatprep.subr.bf16.mxu0 0
        %692 = vmatpush1.bf16.xpose.msra.mxu0 %v675
        %693 = vmatprep.subr.bf16.mxu0 0
        %694 = vmatpush2.bf16.xpose.msra.mxu0 0
        %695 = vmatprep.subr.bf16.mxu0 0
        %696 = vmatpush2.bf16.xpose.msra.mxu0 0
        %697 = vmatprep.subr.bf16.mxu0 0
        %698 = vmatpush2.bf16.xpose.msra.mxu0 0
        %699 = vmatprep.subr.bf16.mxu0 0
        %700 = vmatpush2.bf16.xpose.msra.mxu0 0
        %701 = vmatprep.subr.bf16.mxu0 0
        %702 = vmatpush2.bf16.xpose.msra.mxu0 0
        %703 = vmatprep.subr.bf16.mxu0 0
        %704 = vmatpush2.bf16.xpose.msra.mxu0 0
        %705 = vmatprep.subr.bf16.mxu0 0
        %706 = vmatpush2.bf16.xpose.msra.mxu0 0
        %707 = vmatprep.subr.bf16.mxu0 0
        %708 = vmatpush2.bf16.xpose.msra.mxu0 0
        %709 = vmatprep.mubr.bf16.mxu0 0
        %710 = vmatmul.mubr.bf16.gmra.mxu0 %v672
        %v711 = vpop.f32.mrf.mxu0
        %v712 = vadd.f32 0.0, %v711
        %v713 = vpop.f32.mrf.mxu0
        %v714 = vpop.f32.mrf.mxu0
        %v715 = vpop.f32.mrf.mxu0
        %716 = vdwg.mxu0
        %v717 = vmul.f32 %v712, 0.35355338
        %v718 = vsel %vm551, %v717, -inf
        %719 = vmax.xlane.f32.xlu0 %v718
        %v720 = vpop.xlane.xlu0 %719
        %v721 = vsub.f32 -inf, %v720
        %v722 = vmul.f32 %v721, 1.442695
        %v723 = vpow.pop %v722
        %v724 = vsub.f32 %v717, %v720
        %v725 = vmul.f32 %v724, 1.442695
        %v726 = vpow.pop %v725
        %v727 = vmul.f32 %v723, 0.0
        %v728 = vsel %vm551, %v726, 0.0
        %729 = vadd.xlane.f32.xlu0 %v728
        %v730 = vpop.xlane.xlu0 %729
        %v731 = vadd.f32 %v727, %v730
        %v732 = vpack.c.bf16 %v726, %v726
        %v734 = vunpack.c.l.b16 %v550
        %v735 = vpack.c.b16 %v734, %v734
        %736 = vrot.lane.b32.xlu0 %v735, 120
        %v737 = vpop.permute.xlu0 %736
        %v739 = vsel %vm551, %v732, 0
        %v742 = vsel %vm617, %v737, 0
        %744 = vmatprep.subr.bf16.mxu0 0
        %745 = vmatpush1.bf16.msra.mxu0 0
        %746 = vmatprep.subr.bf16.mxu0 0
        %747 = vmatpush1.bf16.msra.mxu0 0
        %748 = vmatprep.subr.bf16.mxu0 0
        %749 = vmatpush1.bf16.msra.mxu0 0
        %750 = vmatprep.subr.bf16.mxu0 0
        %751 = vmatpush1.bf16.msra.mxu0 0
        %752 = vmatprep.subr.bf16.mxu0 0
        %753 = vmatpush1.bf16.msra.mxu0 0
        %754 = vmatprep.subr.bf16.mxu0 0
        %755 = vmatpush1.bf16.msra.mxu0 0
        %756 = vmatprep.subr.bf16.mxu0 0
        %757 = vmatpush1.bf16.msra.mxu0 0
        %758 = vmatprep.subr.bf16.mxu0 0
        %759 = vmatpush1.bf16.msra.mxu0 %v742
        %760 = vmatprep.subr.bf16.mxu0 0
        %761 = vmatpush2.bf16.msra.mxu0 0
        %762 = vmatprep.subr.bf16.mxu0 0
        %763 = vmatpush2.bf16.msra.mxu0 0
        %764 = vmatprep.subr.bf16.mxu0 0
        %765 = vmatpush2.bf16.msra.mxu0 0
        %766 = vmatprep.subr.bf16.mxu0 0
        %767 = vmatpush2.bf16.msra.mxu0 0
        %768 = vmatprep.subr.bf16.mxu0 0
        %769 = vmatpush2.bf16.msra.mxu0 0
        %770 = vmatprep.subr.bf16.mxu0 0
        %771 = vmatpush2.bf16.msra.mxu0 0
        %772 = vmatprep.subr.bf16.mxu0 0
        %773 = vmatpush2.bf16.msra.mxu0 0
        %774 = vmatprep.subr.bf16.mxu0 0
        %775 = vmatpush2.bf16.msra.mxu0 0
        %776 = vmatprep.mubr.bf16.mxu0 0
        %777 = vmatmul.mubr.bf16.gmra.mxu0 %v739
        %v778 = vpop.f32.mrf.mxu0
        %v779 = vadd.f32 0.0, %v778
        %v780 = vpop.f32.mrf.mxu0
        %v781 = vpop.f32.mrf.mxu0
        %v782 = vpop.f32.mrf.mxu0
        %783 = vdwg.mxu0
        %v784 = vadd.f32 %v727, %v779
        %v785 = vrcp.pop %v731
        %v786 = vmul.f32 %v784, %v785
        %787 = vrot.lane.b32.xlu0 %v536, 112
        %v788 = vpop.permute.xlu0 %787
        %789 = vrot.lane.b32.xlu0 %v668, 112
        %v790 = vpop.permute.xlu0 %789
        %v792 = vsel %vm551, %v788, 0
        %v795 = vsel %vm551, %v790, 0
        %797 = vmatprep.subr.bf16.mxu0 0
        %798 = vmatpush1.bf16.xpose.msra.mxu0 0
        %799 = vmatprep.subr.bf16.mxu0 0
        %800 = vmatpush1.bf16.xpose.msra.mxu0 0
        %801 = vmatprep.subr.bf16.mxu0 0
        %802 = vmatpush1.bf16.xpose.msra.mxu0 0
        %803 = vmatprep.subr.bf16.mxu0 0
        %804 = vmatpush1.bf16.xpose.msra.mxu0 0
        %805 = vmatprep.subr.bf16.mxu0 0
        %806 = vmatpush1.bf16.xpose.msra.mxu0 0
        %807 = vmatprep.subr.bf16.mxu0 0
        %808 = vmatpush1.bf16.xpose.msra.mxu0 0
        %809 = vmatprep.subr.bf16.mxu0 0
        %810 = vmatpush1.bf16.xpose.msra.mxu0 0
        %811 = vmatprep.subr.bf16.mxu0 0
        %812 = vmatpush1.bf16.xpose.msra.mxu0 %v795
        %813 = vmatprep.subr.bf16.mxu0 0
        %814 = vmatpush2.bf16.xpose.msra.mxu0 0
        %815 = vmatprep.subr.bf16.mxu0 0
        %816 = vmatpush2.bf16.xpose.msra.mxu0 0
        %817 = vmatprep.subr.bf16.mxu0 0
        %818 = vmatpush2.bf16.xpose.msra.mxu0 0
        %819 = vmatprep.subr.bf16.mxu0 0
        %820 = vmatpush2.bf16.xpose.msra.mxu0 0
        %821 = vmatprep.subr.bf16.mxu0 0
        %822 = vmatpush2.bf16.xpose.msra.mxu0 0
        %823 = vmatprep.subr.bf16.mxu0 0
        %824 = vmatpush2.bf16.xpose.msra.mxu0 0
        %825 = vmatprep.subr.bf16.mxu0 0
        %826 = vmatpush2.bf16.xpose.msra.mxu0 0
        %827 = vmatprep.subr.bf16.mxu0 0
        %828 = vmatpush2.bf16.xpose.msra.mxu0 0
        %829 = vmatprep.mubr.bf16.mxu0 0
        %830 = vmatmul.mubr.bf16.gmra.mxu0 %v792
        %v831 = vpop.f32.mrf.mxu0
        %v832 = vadd.f32 0.0, %v831
        %v833 = vpop.f32.mrf.mxu0
        %v834 = vpop.f32.mrf.mxu0
        %v835 = vpop.f32.mrf.mxu0
        %836 = vdwg.mxu0
        %v837 = vmul.f32 %v832, 0.35355338
        %v838 = vsel %vm551, %v837, -inf
        %839 = vmax.xlane.f32.xlu0 %v838
        %v840 = vpop.xlane.xlu0 %839
        %v841 = vsub.f32 -inf, %v840
        %v842 = vmul.f32 %v841, 1.442695
        %v843 = vpow.pop %v842
        %v844 = vsub.f32 %v837, %v840
        %v845 = vmul.f32 %v844, 1.442695
        %v846 = vpow.pop %v845
        %v847 = vmul.f32 %v843, 0.0
        %v848 = vsel %vm551, %v846, 0.0
        %849 = vadd.xlane.f32.xlu0 %v848
        %v850 = vpop.xlane.xlu0 %849
        %v851 = vadd.f32 %v847, %v850
        %v852 = vpack.c.bf16 %v846, %v846
        %853 = vrot.lane.b32.xlu0 %v735, 112
        %v854 = vpop.permute.xlu0 %853
        %v856 = vsel %vm551, %v852, 0
        %v859 = vsel %vm617, %v854, 0
        %861 = vmatprep.subr.bf16.mxu0 0
        %862 = vmatpush1.bf16.msra.mxu0 0
        %863 = vmatprep.subr.bf16.mxu0 0
        %864 = vmatpush1.bf16.msra.mxu0 0
        %865 = vmatprep.subr.bf16.mxu0 0
        %866 = vmatpush1.bf16.msra.mxu0 0
        %867 = vmatprep.subr.bf16.mxu0 0
        %868 = vmatpush1.bf16.msra.mxu0 0
        %869 = vmatprep.subr.bf16.mxu0 0
        %870 = vmatpush1.bf16.msra.mxu0 0
        %871 = vmatprep.subr.bf16.mxu0 0
        %872 = vmatpush1.bf16.msra.mxu0 0
        %873 = vmatprep.subr.bf16.mxu0 0
        %874 = vmatpush1.bf16.msra.mxu0 0
        %875 = vmatprep.subr.bf16.mxu0 0
        %876 = vmatpush1.bf16.msra.mxu0 %v859
        %877 = vmatprep.subr.bf16.mxu0 0
        %878 = vmatpush2.bf16.msra.mxu0 0
        %879 = vmatprep.subr.bf16.mxu0 0
        %880 = vmatpush2.bf16.msra.mxu0 0
        %881 = vmatprep.subr.bf16.mxu0 0
        %882 = vmatpush2.bf16.msra.mxu0 0
        %883 = vmatprep.subr.bf16.mxu0 0
        %884 = vmatpush2.bf16.msra.mxu0 0
        %885 = vmatprep.subr.bf16.mxu0 0
        %886 = vmatpush2.bf16.msra.mxu0 0
        %887 = vmatprep.subr.bf16.mxu0 0
        %888 = vmatpush2.bf16.msra.mxu0 0
        %889 = vmatprep.subr.bf16.mxu0 0
        %890 = vmatpush2.bf16.msra.mxu0 0
        %891 = vmatprep.subr.bf16.mxu0 0
        %892 = vmatpush2.bf16.msra.mxu0 0
        %893 = vmatprep.mubr.bf16.mxu0 0
        %894 = vmatmul.mubr.bf16.gmra.mxu0 %v856
        %v895 = vpop.f32.mrf.mxu0
        %v896 = vadd.f32 0.0, %v895
        %v897 = vpop.f32.mrf.mxu0
        %v898 = vpop.f32.mrf.mxu0
        %v899 = vpop.f32.mrf.mxu0
        %900 = vdwg.mxu0
        %v901 = vadd.f32 %v847, %v896
        %v902 = vrcp.pop %v851
        %v903 = vmul.f32 %v901, %v902
        %904 = vrot.lane.b32.xlu0 %v536, 104
        %v905 = vpop.permute.xlu0 %904
        %906 = vrot.lane.b32.xlu0 %v668, 104
        %v907 = vpop.permute.xlu0 %906
        %v909 = vsel %vm551, %v905, 0
        %v912 = vsel %vm551, %v907, 0
        %914 = vmatprep.subr.bf16.mxu0 0
        %915 = vmatpush1.bf16.xpose.msra.mxu0 0
        %916 = vmatprep.subr.bf16.mxu0 0
        %917 = vmatpush1.bf16.xpose.msra.mxu0 0
        %918 = vmatprep.subr.bf16.mxu0 0
        %919 = vmatpush1.bf16.xpose.msra.mxu0 0
        %920 = vmatprep.subr.bf16.mxu0 0
        %921 = vmatpush1.bf16.xpose.msra.mxu0 0
        %922 = vmatprep.subr.bf16.mxu0 0
        %923 = vmatpush1.bf16.xpose.msra.mxu0 0
        %924 = vmatprep.subr.bf16.mxu0 0
        %925 = vmatpush1.bf16.xpose.msra.mxu0 0
        %926 = vmatprep.subr.bf16.mxu0 0
        %927 = vmatpush1.bf16.xpose.msra.mxu0 0
        %928 = vmatprep.subr.bf16.mxu0 0
        %929 = vmatpush1.bf16.xpose.msra.mxu0 %v912
        %930 = vmatprep.subr.bf16.mxu0 0
        %931 = vmatpush2.bf16.xpose.msra.mxu0 0
        %932 = vmatprep.subr.bf16.mxu0 0
        %933 = vmatpush2.bf16.xpose.msra.mxu0 0
        %934 = vmatprep.subr.bf16.mxu0 0
        %935 = vmatpush2.bf16.xpose.msra.mxu0 0
        %936 = vmatprep.subr.bf16.mxu0 0
        %937 = vmatpush2.bf16.xpose.msra.mxu0 0
        %938 = vmatprep.subr.bf16.mxu0 0
        %939 = vmatpush2.bf16.xpose.msra.mxu0 0
        %940 = vmatprep.subr.bf16.mxu0 0
        %941 = vmatpush2.bf16.xpose.msra.mxu0 0
        %942 = vmatprep.subr.bf16.mxu0 0
        %943 = vmatpush2.bf16.xpose.msra.mxu0 0
        %944 = vmatprep.subr.bf16.mxu0 0
        %945 = vmatpush2.bf16.xpose.msra.mxu0 0
        %946 = vmatprep.mubr.bf16.mxu0 0
        %947 = vmatmul.mubr.bf16.gmra.mxu0 %v909
        %v948 = vpop.f32.mrf.mxu0
        %v949 = vadd.f32 0.0, %v948
        %v950 = vpop.f32.mrf.mxu0
        %v951 = vpop.f32.mrf.mxu0
        %v952 = vpop.f32.mrf.mxu0
        %953 = vdwg.mxu0
        %v954 = vmul.f32 %v949, 0.35355338
        %v955 = vsel %vm551, %v954, -inf
        %956 = vmax.xlane.f32.xlu0 %v955
        %v957 = vpop.xlane.xlu0 %956
        %v958 = vsub.f32 -inf, %v957
        %v959 = vmul.f32 %v958, 1.442695
        %v960 = vpow.pop %v959
        %v961 = vsub.f32 %v954, %v957
        %v962 = vmul.f32 %v961, 1.442695
        %v963 = vpow.pop %v962
        %v964 = vmul.f32 %v960, 0.0
        %v965 = vsel %vm551, %v963, 0.0
        %966 = vadd.xlane.f32.xlu0 %v965
        %v967 = vpop.xlane.xlu0 %966
        %v968 = vadd.f32 %v964, %v967
        %v969 = vpack.c.bf16 %v963, %v963
        %970 = vrot.lane.b32.xlu0 %v735, 104
        %v971 = vpop.permute.xlu0 %970
        %v973 = vsel %vm551, %v969, 0
        %v976 = vsel %vm617, %v971, 0
        %978 = vmatprep.subr.bf16.mxu0 0
        %979 = vmatpush1.bf16.msra.mxu0 0
        %980 = vmatprep.subr.bf16.mxu0 0
        %981 = vmatpush1.bf16.msra.mxu0 0
        %982 = vmatprep.subr.bf16.mxu0 0
        %983 = vmatpush1.bf16.msra.mxu0 0
        %984 = vmatprep.subr.bf16.mxu0 0
        %985 = vmatpush1.bf16.msra.mxu0 0
        %986 = vmatprep.subr.bf16.mxu0 0
        %987 = vmatpush1.bf16.msra.mxu0 0
        %988 = vmatprep.subr.bf16.mxu0 0
        %989 = vmatpush1.bf16.msra.mxu0 0
        %990 = vmatprep.subr.bf16.mxu0 0
        %991 = vmatpush1.bf16.msra.mxu0 0
        %992 = vmatprep.subr.bf16.mxu0 0
        %993 = vmatpush1.bf16.msra.mxu0 %v976
        %994 = vmatprep.subr.bf16.mxu0 0
        %995 = vmatpush2.bf16.msra.mxu0 0
        %996 = vmatprep.subr.bf16.mxu0 0
        %997 = vmatpush2.bf16.msra.mxu0 0
        %998 = vmatprep.subr.bf16.mxu0 0
        %999 = vmatpush2.bf16.msra.mxu0 0
        %1000 = vmatprep.subr.bf16.mxu0 0
        %1001 = vmatpush2.bf16.msra.mxu0 0
        %1002 = vmatprep.subr.bf16.mxu0 0
        %1003 = vmatpush2.bf16.msra.mxu0 0
        %1004 = vmatprep.subr.bf16.mxu0 0
        %1005 = vmatpush2.bf16.msra.mxu0 0
        %1006 = vmatprep.subr.bf16.mxu0 0
        %1007 = vmatpush2.bf16.msra.mxu0 0
        %1008 = vmatprep.subr.bf16.mxu0 0
        %1009 = vmatpush2.bf16.msra.mxu0 0
        %1010 = vmatprep.mubr.bf16.mxu0 0
        %1011 = vmatmul.mubr.bf16.gmra.mxu0 %v973
        %v1012 = vpop.f32.mrf.mxu0
        %v1013 = vadd.f32 0.0, %v1012
        %v1014 = vpop.f32.mrf.mxu0
        %v1015 = vpop.f32.mrf.mxu0
        %v1016 = vpop.f32.mrf.mxu0
        %1017 = vdwg.mxu0
        %v1018 = vadd.f32 %v964, %v1013
        %v1019 = vrcp.pop %v968
        %v1020 = vmul.f32 %v1018, %v1019
        %1022 = vrot.lane.b32.xlu0 %v786, 8
        %v1023 = vpop.permute.xlu0 %1022
        %1026 = vrot.lane.b32.xlu0 %v903, 16
        %v1027 = vpop.permute.xlu0 %1026
        %1030 = vrot.lane.b32.xlu0 %v1020, 24
        %v1031 = vpop.permute.xlu0 %1030
        %v1033 = vsel %vm551, %v663, %v1023
        %vm1034 = vcmask 130048
        %v1035 = vsel %vm1034, %v1033, %v1027
        %vm1036 = vcmask 195584
        %v1037 = vsel %vm1036, %v1035, %v1031
        %v1038 = vpack.c.bf16 %v1037, %v1037
        %v1039 = vld [vmem:[%s5] sm:$0xf]
        %v1040 = vld [vmem:[%s5 + $0x4] sm:$0xf]
        %v1041 = vld [vmem:[%s5 + $0x8] sm:$0xf]
        %v1042 = vld [vmem:[%s5 + $0xc] sm:$0xf]
        %v1047 = vunpack.c.l.b16 %v1039
        %v1048 = vunpack.c.l.b16 %v1040
        %v1049 = vunpack.c.l.b16 %v1041
        %v1050 = vunpack.c.l.b16 %v1042
        %v1051 = vpack.c.b16 %v1048, %v1047
        %v1052 = vpack.c.b16 %v1050, %v1049
        %v1056 = vsel %vm440, %v1038, 0
        %1058 = vmatprep.subr.bf16.mxu0 0
        %1059 = vmatpush1.bf16.msra.mxu0 0
        %1060 = vmatprep.subr.bf16.mxu0 0
        %1061 = vmatpush1.bf16.msra.mxu0 0
        %1062 = vmatprep.subr.bf16.mxu0 0
        %1063 = vmatpush1.bf16.msra.mxu0 0
        %1064 = vmatprep.subr.bf16.mxu0 0
        %1065 = vmatpush1.bf16.msra.mxu0 0
        %1066 = vmatprep.subr.bf16.mxu0 0
        %1067 = vmatpush1.bf16.msra.mxu0 0
        %1068 = vmatprep.subr.bf16.mxu0 0
        %1069 = vmatpush1.bf16.msra.mxu0 0
        %1070 = vmatprep.subr.bf16.mxu0 0
        %1071 = vmatpush1.bf16.msra.mxu0 %v1052
        %1072 = vmatprep.subr.bf16.mxu0 0
        %1073 = vmatpush1.bf16.msra.mxu0 %v1051
        %1074 = vmatprep.subr.bf16.mxu0 0
        %1075 = vmatpush2.bf16.msra.mxu0 0
        %1076 = vmatprep.subr.bf16.mxu0 0
        %1077 = vmatpush2.bf16.msra.mxu0 0
        %1078 = vmatprep.subr.bf16.mxu0 0
        %1079 = vmatpush2.bf16.msra.mxu0 0
        %1080 = vmatprep.subr.bf16.mxu0 0
        %1081 = vmatpush2.bf16.msra.mxu0 0
        %1082 = vmatprep.subr.bf16.mxu0 0
        %1083 = vmatpush2.bf16.msra.mxu0 0
        %1084 = vmatprep.subr.bf16.mxu0 0
        %1085 = vmatpush2.bf16.msra.mxu0 0
        %1086 = vmatprep.subr.bf16.mxu0 0
        %1087 = vmatpush2.bf16.msra.mxu0 0
        %1088 = vmatprep.subr.bf16.mxu0 0
        %1089 = vmatpush2.bf16.msra.mxu0 0
        %1090 = vmatprep.mubr.bf16.mxu0 0
        %1091 = vmatmul.mubr.bf16.gmra.mxu0 %v1056
        %v1092 = vpop.f32.mrf.mxu0
        %v1093 = vadd.f32 0.0, %v1092
        %v1094 = vpop.f32.mrf.mxu0
        %v1095 = vpop.f32.mrf.mxu0
        %v1096 = vpop.f32.mrf.mxu0
        %1097 = vdwg.mxu0
        %v1098 = vadd.f32 %v437, %v1093
        %v1099 = vld [vmem:[%s6] sm:$0x1]
        %v1101 = vlaneseq
        %v1102 = vshrl.u32 %v1101, 7
        %v1103 = vsub.s32 0, %v1102
        %v1104 = vrot.slane %v1099, %v1103
        %v1106 = vadd.f32 %v1098, %v1104
        %v1107 = vld [vmem:[%s7] sm:$0x1]
        %v1108 = vld [vmem:[%s8] sm:$0x1]
        %v1109 = vsel %vm440, %v1106, 0.0
        %1110 = vadd.xlane.f32.xlu0 %v1109
        %v1111 = vpop.xlane.xlu0 %1110
        %v1112 = vmul.f32 %v1111, %v444
        %v1113 = vsub.f32 %v1106, %v1112
        %v1114 = vmul.f32 %v1113, %v1113
        %v1115 = vsel %vm440, %v1114, 0.0
        %1116 = vadd.xlane.f32.xlu0 %v1115
        %v1117 = vpop.xlane.xlu0 %1116
        %v1118 = vmul.f32 %v1117, %v444
        %v1119 = vadd.f32 %v1118, 1e-05
        %v1120 = vrsqrt.pop %v1119
        %v1121 = vmul.f32 %v1113, %v1120
        %v1123 = vlaneseq
        %v1124 = vshrl.u32 %v1123, 7
        %v1125 = vsub.s32 0, %v1124
        %v1126 = vrot.slane %v1107, %v1125
        %v1128 = vmul.f32 %v1121, %v1126
        %v1130 = vlaneseq
        %v1131 = vshrl.u32 %v1130, 7
        %v1132 = vsub.s32 0, %v1131
        %v1133 = vrot.slane %v1108, %v1132
        %v1135 = vadd.f32 %v1128, %v1133
        %v1136 = vpack.c.bf16 %v1135, %v1135
        %v1137 = vld [vmem:[%s9] sm:$0xf]
        %v1138 = vld [vmem:[%s9 + $0x4] sm:$0xf]
        %v1139 = vld [vmem:[%s9 + $0x8] sm:$0xf]
        %v1140 = vld [vmem:[%s9 + $0xc] sm:$0xf]
        %v1141 = vld [vmem:[%s10] sm:$0x1]
        %v1143 = vlaneseq
        %v1144 = vshrl.u32 %v1143, 7
        %v1145 = vsub.s32 0, %v1144
        %v1146 = vrot.slane %v1141, %v1145
        %v1152 = vunpack.c.l.b16 %v1137
        %v1153 = vunpack.c.l.b16 %v1138
        %v1154 = vunpack.c.l.b16 %v1139
        %v1155 = vunpack.c.l.b16 %v1140
        %v1156 = vpack.c.b16 %v1153, %v1152
        %v1157 = vpack.c.b16 %v1155, %v1154
        %v1161 = vsel %vm440, %v1136, 0
        %1163 = vmatprep.subr.bf16.mxu0 0
        %1164 = vmatpush1.bf16.msra.mxu0 0
        %1165 = vmatprep.subr.bf16.mxu0 0
        %1166 = vmatpush1.bf16.msra.mxu0 0
        %1167 = vmatprep.subr.bf16.mxu0 0
        %1168 = vmatpush1.bf16.msra.mxu0 0
        %1169 = vmatprep.subr.bf16.mxu0 0
        %1170 = vmatpush1.bf16.msra.mxu0 0
        %1171 = vmatprep.subr.bf16.mxu0 0
        %1172 = vmatpush1.bf16.msra.mxu0 0
        %1173 = vmatprep.subr.bf16.mxu0 0
        %1174 = vmatpush1.bf16.msra.mxu0 0
        %1175 = vmatprep.subr.bf16.mxu0 0
        %1176 = vmatpush1.bf16.msra.mxu0 %v1157
        %1177 = vmatprep.subr.bf16.mxu0 0
        %1178 = vmatpush1.bf16.msra.mxu0 %v1156
        %1179 = vmatprep.subr.bf16.mxu0 0
        %1180 = vmatpush2.bf16.msra.mxu0 0
        %1181 = vmatprep.subr.bf16.mxu0 0
        %1182 = vmatpush2.bf16.msra.mxu0 0
        %1183 = vmatprep.subr.bf16.mxu0 0
        %1184 = vmatpush2.bf16.msra.mxu0 0
        %1185 = vmatprep.subr.bf16.mxu0 0
        %1186 = vmatpush2.bf16.msra.mxu0 0
        %1187 = vmatprep.subr.bf16.mxu0 0
        %1188 = vmatpush2.bf16.msra.mxu0 0
        %1189 = vmatprep.subr.bf16.mxu0 0
        %1190 = vmatpush2.bf16.msra.mxu0 0
        %1191 = vmatprep.subr.bf16.mxu0 0
        %1192 = vmatpush2.bf16.msra.mxu0 0
        %1193 = vmatprep.subr.bf16.mxu0 0
        %1194 = vmatpush2.bf16.msra.mxu0 0
        %1195 = vmatprep.mubr.bf16.mxu0 0
        %1196 = vmatmul.mubr.bf16.gmra.mxu0 %v1161
        %v1197 = vpop.f32.mrf.mxu0
        %v1198 = vadd.f32 %v1146, %v1197
        %v1199 = vpop.f32.mrf.mxu0
        %v1200 = vpop.f32.mrf.mxu0
        %v1201 = vpop.f32.mrf.mxu0
        %1202 = vdwg.mxu0
        %v1203 = vmax.f32 %v1198, 0.0
        %v1204 = vpack.c.bf16 %v1203, %v1203
        %v1205 = vld [vmem:[%s11] sm:$0xf]
        %v1206 = vld [vmem:[%s11 + $0x4] sm:$0xf]
        %v1207 = vld [vmem:[%s11 + $0x8] sm:$0xf]
        %v1208 = vld [vmem:[%s11 + $0xc] sm:$0xf]
        %v1209 = vld [vmem:[%s11 + $0x10] sm:$0xf]
        %v1210 = vld [vmem:[%s11 + $0x14] sm:$0xf]
        %v1211 = vld [vmem:[%s11 + $0x18] sm:$0xf]
        %v1212 = vld [vmem:[%s11 + $0x1c] sm:$0xf]
        %v1213 = vld [vmem:[%s11 + $0x20] sm:$0xf]
        %v1214 = vld [vmem:[%s11 + $0x24] sm:$0xf]
        %v1215 = vld [vmem:[%s11 + $0x28] sm:$0xf]
        %v1216 = vld [vmem:[%s11 + $0x2c] sm:$0xf]
        %v1217 = vld [vmem:[%s11 + $0x30] sm:$0xf]
        %v1218 = vld [vmem:[%s11 + $0x34] sm:$0xf]
        %v1219 = vld [vmem:[%s11 + $0x38] sm:$0xf]
        %v1220 = vld [vmem:[%s11 + $0x3c] sm:$0xf]
        %v1237 = vunpack.c.l.b16 %v1205
        %v1238 = vunpack.c.l.b16 %v1206
        %v1239 = vunpack.c.l.b16 %v1207
        %v1240 = vunpack.c.l.b16 %v1208
        %v1241 = vunpack.c.l.b16 %v1209
        %v1242 = vunpack.c.l.b16 %v1210
        %v1243 = vunpack.c.l.b16 %v1211
        %v1244 = vunpack.c.l.b16 %v1212
        %v1245 = vunpack.c.l.b16 %v1213
        %v1246 = vunpack.c.l.b16 %v1214
        %v1247 = vunpack.c.l.b16 %v1215
        %v1248 = vunpack.c.l.b16 %v1216
        %v1249 = vunpack.c.l.b16 %v1217
        %v1250 = vunpack.c.l.b16 %v1218
        %v1251 = vunpack.c.l.b16 %v1219
        %v1252 = vunpack.c.l.b16 %v1220
        %v1253 = vpack.c.b16 %v1238, %v1237
        %v1254 = vpack.c.b16 %v1240, %v1239
        %v1255 = vpack.c.b16 %v1242, %v1241
        %v1256 = vpack.c.b16 %v1244, %v1243
        %v1257 = vpack.c.b16 %v1246, %v1245
        %v1258 = vpack.c.b16 %v1248, %v1247
        %v1259 = vpack.c.b16 %v1250, %v1249
        %v1260 = vpack.c.b16 %v1252, %v1251
        %1269 = vmatprep.subr.bf16.mxu0 0
        %1270 = vmatpush1.bf16.msra.mxu0 %v1260
        %1271 = vmatprep.subr.bf16.mxu0 0
        %1272 = vmatpush1.bf16.msra.mxu0 %v1259
        %1273 = vmatprep.subr.bf16.mxu0 0
        %1274 = vmatpush1.bf16.msra.mxu0 %v1258
        %1275 = vmatprep.subr.bf16.mxu0 0
        %1276 = vmatpush1.bf16.msra.mxu0 %v1257
        %1277 = vmatprep.subr.bf16.mxu0 0
        %1278 = vmatpush1.bf16.msra.mxu0 %v1256
        %1279 = vmatprep.subr.bf16.mxu0 0
        %1280 = vmatpush1.bf16.msra.mxu0 %v1255
        %1281 = vmatprep.subr.bf16.mxu0 0
        %1282 = vmatpush1.bf16.msra.mxu0 %v1254
        %1283 = vmatprep.subr.bf16.mxu0 0
        %1284 = vmatpush1.bf16.msra.mxu0 %v1253
        %1285 = vmatprep.subr.bf16.mxu0 0
        %1286 = vmatpush2.bf16.msra.mxu0 0
        %1287 = vmatprep.subr.bf16.mxu0 0
        %1288 = vmatpush2.bf16.msra.mxu0 0
        %1289 = vmatprep.subr.bf16.mxu0 0
        %1290 = vmatpush2.bf16.msra.mxu0 0
        %1291 = vmatprep.subr.bf16.mxu0 0
        %1292 = vmatpush2.bf16.msra.mxu0 0
        %1293 = vmatprep.subr.bf16.mxu0 0
        %1294 = vmatpush2.bf16.msra.mxu0 0
        %1295 = vmatprep.subr.bf16.mxu0 0
        %1296 = vmatpush2.bf16.msra.mxu0 0
        %1297 = vmatprep.subr.bf16.mxu0 0
        %1298 = vmatpush2.bf16.msra.mxu0 0
        %1299 = vmatprep.subr.bf16.mxu0 0
        %1300 = vmatpush2.bf16.msra.mxu0 0
        %1301 = vmatprep.mubr.bf16.mxu0 0
        %1302 = vmatmul.mubr.bf16.gmra.mxu0 %v1204
        %v1303 = vpop.f32.mrf.mxu0
        %v1304 = vadd.f32 0.0, %v1303
        %v1305 = vpop.f32.mrf.mxu0
        %v1306 = vpop.f32.mrf.mxu0
        %v1307 = vpop.f32.mrf.mxu0
        %1308 = vdwg.mxu0
        %v1309 = vadd.f32 %v1106, %v1304
        %v1310 = vld [vmem:[%s12] sm:$0x1]
        %v1312 = vlaneseq
        %v1313 = vshrl.u32 %v1312, 7
        %v1314 = vsub.s32 0, %v1313
        %v1315 = vrot.slane %v1310, %v1314
        %v1317 = vadd.f32 %v1309, %v1315
        %1318 = vst.msk [vmem:[%s431] sm:$0xff] %vm440, %v1317
        %s1319 = sand.u32 %s313, 1
        %s1320 = scalar_lea.sflag [#allocation5], %s1319
        %s1321 = sand.u32 %s313, 1
        %s1322 = smul.addr %s1321, 8
        %s1323 = scalar_lea.vmem [#allocation4], %s1322
        // Predicated region
        $region73: #{tpu_custom_call.1} parent=71 // pred_check
          %p1324 = pneg %p323
        $region74: #{tpu_custom_call.1} parent=71 // pred_check_branch
          %1326 = sbr.rel (%p1324) target = $region76
        $region75: #{tpu_custom_call.1} parent=71 // pred_region
          %s1328 = ssub.s32 128, 128
          %1329 = vsyncadd %s1320, %s1328
          %s1330 = smul.addr %s27, 128
          %s1331 = scalar_lea.hbm %s13, %s1330
          %s1333 = sshll.u32 %s1323, 4
          %s1334 = int_to_ptr.vmem [resolvable:$true] %s1333
          %1336 = dma.vmem_to_hbm [thread:$0]  %s1334, 128, %s1331, %s1320
        $region76: #{tpu_custom_call.1} parent=71 // pred_fallthru
          _
      $region72: #{tpu_custom_call.1} parent=5 // pred_fallthru
        _
      %p1337 = scmp.le.s32.totalorder 2, %s22
      // Predicated region
      $region77: #{tpu_custom_call.1} parent=5 // pred_check
        %p1338 = pneg %p1337
      $region78: #{tpu_custom_call.1} parent=5 // pred_check_branch
        %1340 = sbr.rel (%p1338) target = $region80
      $region79: #{tpu_custom_call.1} parent=5 // pred_region
        %s1341 = ssub.s32 %s22, 2
        // Predicated region
        $region81: #{tpu_custom_call.1} parent=79 // pred_check
          %p1342 = pneg %p329
        $region82: #{tpu_custom_call.1} parent=79 // pred_check_branch
          %1344 = sbr.rel (%p1342) target = $region84
        $region83: #{tpu_custom_call.1} parent=79 // pred_region
          %s1345 = sand.u32 %s314, 1
          %s1346 = scalar_lea.sflag [#allocation5], %s1345
          %s1347 = sand.u32 %s314, 1
          %s1348 = smul.addr %s1347, 8
          %s1349 = scalar_lea.vmem [#allocation4], %s1348
          %1350 = dma.done %s1346, 128
        $region84: #{tpu_custom_call.1} parent=79 // pred_fallthru
          _
      $region80: #{tpu_custom_call.1} parent=5 // pred_fallthru
        _
    $region6: #{tpu_custom_call.1} parent=1 // loop_footer
      %s26 = sadd.s32 1, %s22
    $region7: #{tpu_custom_call.1} parent=1 // loop_footer_branch
      %21 = sbr.rel target = $region3
    $region8: #{tpu_custom_call.1} parent=1 // loop_exit
      _
    %1351 = vsyncpa [#allocation5], 1
    %s1352 = scalar_lea.sflag [#allocation5], 1
    %1353 = vsyncpa %s1352, 1

// kernel: tpu_custom_call.1
$region0: #{tpu_custom_call.1}
  #allocation0 [shape = 'u32[]', space=smem, size = 0x4, offset = 0x4, fixed_abs, tag = 'smem constant byte address 0x4 - core index']
  #allocation1 [shape = 'u32[144,128]{1,0:T(1,128)}', space=vmem, size = 0x12000, scoped, tag = 'internal scratch']
  #allocation2 [shape = 'bf16[8,32]{1,0:T(8,128)(2,1)}', space=vmem, size = 0x800, scoped, tag = 'scratch operand']
  #allocation3 [shape = 'bf16[8,32]{1,0:T(8,128)(2,1)}', space=vmem, size = 0x800, scoped, tag = 'scratch operand']
  %s0 = inlined_call_operand.vmem [shape: f32[2,8,32], index: 0, kind: input, shape index: {}]
  %s1 = inlined_call_operand.vmem [shape: f32[1,32], index: 1, kind: input, shape index: {}]
  %s2 = inlined_call_operand.vmem [shape: f32[1,32], index: 2, kind: input, shape index: {}]
  %s3 = inlined_call_operand.vmem [shape: bf16[32,96], index: 3, kind: input, shape index: {}]
  %s4 = inlined_call_operand.vmem [shape: f32[1,96], index: 4, kind: input, shape index: {}]
  %s5 = inlined_call_operand.vmem [shape: bf16[32,32], index: 5, kind: input, shape index: {}]
  %s6 = inlined_call_operand.vmem [shape: f32[1,32], index: 6, kind: input, shape index: {}]
  %s7 = inlined_call_operand.vmem [shape: f32[1,32], index: 7, kind: input, shape index: {}]
  %s8 = inlined_call_operand.vmem [shape: f32[1,32], index: 8, kind: input, shape index: {}]
  %s9 = inlined_call_operand.vmem [shape: bf16[32,128], index: 9, kind: input, shape index: {}]
  %s10 = inlined_call_operand.vmem [shape: f32[1,128], index: 10, kind: input, shape index: {}]
  %s11 = inlined_call_operand.vmem [shape: bf16[128,32], index: 11, kind: input, shape index: {}]
  %s12 = inlined_call_operand.vmem [shape: f32[1,32], index: 12, kind: input, shape index: {}]
  %s13 = inlined_call_operand.hbm [shape: f32[2,8,32], index: 13, kind: output, shape index: {}]
  %s14 = sld [smem:[#allocation0]]
  $region85: #{tpu_custom_call.1} parent=0
    _
  %s16 = ssub.s32 1, %s14
  %s17 = scalar_select 0, %s16, %s14
  $region1: #{tpu_custom_call.1} parent=0
    #allocation4 [shape = 'u8[8192]{0}', space=vmem, size = 0x2000, scoped, tag = 'output window, operand 0']
    #allocation5 [shape = 's32[2]{0}', space=sflag, size = 0x8, scoped, tag = 'scoped memory for tpu_custom_call.1']
    %18 = vsyncpa [#allocation5], 0
    %s19 = scalar_lea.sflag [#allocation5], 1
    %20 = vsyncpa %s19, 0
    loop: start=0, step=1, limit=4
    $region2: #{tpu_custom_call.1} parent=1 // loop_pre_header
      _
    $region3: #{tpu_custom_call.1} parent=1 // loop_header
      %s22 = sphi 0, %s26
      %p23 = scmp.ge.s32.totalorder %s22, 4
      %s32 = sphi 0, %s34
      %s35 = sphi 0, %s32
      %s36 = sphi 0, %s35
      %s52 = sphi 0, %s36
      %s56 = sphi 0, %s56
      %s58 = sphi 0, %s56
      %s59 = sphi 0, %s58
      %s73 = sphi 0, %s59
      %s77 = sphi 0, %s77
      %s79 = sphi 0, %s77
      %s80 = sphi 0, %s79
      %s94 = sphi 0, %s80
      %s98 = sphi 0, %s98
      %s100 = sphi 0, %s98
      %s101 = sphi 0, %s100
      %s115 = sphi 0, %s101
      %s119 = sphi 0, %s119
      %s121 = sphi 0, %s119
      %s122 = sphi 0, %s121
      %s136 = sphi 0, %s122
      %s140 = sphi 0, %s140
      %s142 = sphi 0, %s140
      %s143 = sphi 0, %s142
      %s157 = sphi 0, %s143
      %s161 = sphi 0, %s161
      %s163 = sphi 0, %s161
      %s164 = sphi 0, %s163
      %s178 = sphi 0, %s164
      %s182 = sphi 0, %s182
      %s184 = sphi 0, %s182
      %s185 = sphi 0, %s184
      %s199 = sphi 0, %s185
      %s203 = sphi 0, %s203
      %s205 = sphi 0, %s203
      %s206 = sphi 0, %s205
      %s220 = sphi 0, %s206
      %s224 = sphi 0, %s224
      %s226 = sphi 0, %s224
      %s227 = sphi 0, %s226
      %s241 = sphi 0, %s227
      %s245 = sphi 0, %s245
      %s247 = sphi 0, %s245
      %s248 = sphi 0, %s247
      %s262 = sphi 0, %s248
      %s266 = sphi 0, %s266
      %s268 = sphi 0, %s266
      %s269 = sphi 0, %s268
      %s283 = sphi 0, %s269
      %s287 = sphi 0, %s287
      %s289 = sphi 0, %s287
      %s290 = sphi 0, %s289
      %s304 = sphi 0, %s290
      %s310 = sphi 0, %s312
      %s313 = sphi 0, %s310
      %s314 = sphi 0, %s313
      %s330 = sphi 0, %s314
    $region4: #{tpu_custom_call.1} parent=1 // loop_header_branch
      %25 = sbr.rel (%p23) target = $region8
    $region5: #{tpu_custom_call.1} parent=1 // loop_body
      %s27 = ssub.s32 %s22, 1
      %s28 = ssub.s32 %s22, 2
      %s29 = sadd.s32 %s22, 1
      %s30 = ssub.s32 %s22, %s29
      %p31 = scmp.eq.s32.totalorder %s30, 0
      %s33 = sadd.s32 %s32, 1
      %s34 = scalar_select %p31, %s32, %s33
      %p37 = pneg %p31
      %p38 = scmp.eq.s32.totalorder %s22, 1
      %p39 = por %p37, %p38
      %p40 = scmp.ne.s32.totalorder %s32, %s35
      %p41 = scmp.eq.s32.totalorder %s22, 0
      %p42 = por %p40, %p41
      %p43 = scmp.ne.s32.totalorder %s32, %s35
      %p44 = scmp.eq.s32.totalorder %s27, 1
      %p45 = por %p43, %p44
      %p46 = scmp.ne.s32.totalorder %s35, %s36
      %p47 = scmp.eq.s32.totalorder %s27, 0
      %p48 = por %p46, %p47
      %p49 = scmp.ne.s32.totalorder %s35, %s36
      %p50 = scmp.eq.s32.totalorder %s28, 1
      %p51 = por %p49, %p50
      %p53 = scmp.ne.s32.totalorder %s36, %s52
      %p54 = scmp.eq.s32.totalorder %s28, 0
      %p55 = por %p53, %p54
      %s57 = sadd.s32 %s56, 1
      %p60 = scmp.eq.s32.totalorder %s22, 1
      %p61 = scmp.ne.s32.totalorder %s56, %s58
      %p62 = scmp.eq.s32.totalorder %s22, 0
      %p63 = por %p61, %p62
      %p64 = scmp.ne.s32.totalorder %s56, %s58
      %p65 = scmp.eq.s32.totalorder %s27, 1
      %p66 = por %p64, %p65
      %p67 = scmp.ne.s32.totalorder %s58, %s59
      %p68 = scmp.eq.s32.totalorder %s27, 0
      %p69 = por %p67, %p68
      %p70 = scmp.ne.s32.totalorder %s58, %s59
      %p71 = scmp.eq.s32.totalorder %s28, 1
      %p72 = por %p70, %p71
      %p74 = scmp.ne.s32.totalorder %s59, %s73
      %p75 = scmp.eq.s32.totalorder %s28, 0
      %p76 = por %p74, %p75
      %s78 = sadd.s32 %s77, 1
      %p81 = scmp.eq.s32.totalorder %s22, 1
      %p82 = scmp.ne.s32.totalorder %s77, %s79
      %p83 = scmp.eq.s32.totalorder %s22, 0
      %p84 = por %p82, %p83
      %p85 = scmp.ne.s32.totalorder %s77, %s79
      %p86 = scmp.eq.s32.totalorder %s27, 1
      %p87 = por %p85, %p86
      %p88 = scmp.ne.s32.totalorder %s79, %s80
      %p89 = scmp.eq.s32.totalorder %s27, 0
      %p90 = por %p88, %p89
      %p91 = scmp.ne.s32.totalorder %s79, %s80
      %p92 = scmp.eq.s32.totalorder %s28, 1
      %p93 = por %p91, %p92
      %p95 = scmp.ne.s32.totalorder %s80, %s94
      %p96 = scmp.eq.s32.totalorder %s28, 0
      %p97 = por %p95, %p96
      %s99 = sadd.s32 %s98, 1
      %p102 = scmp.eq.s32.totalorder %s22, 1
      %p103 = scmp.ne.s32.totalorder %s98, %s100
      %p104 = scmp.eq.s32.totalorder %s22, 0
      %p105 = por %p103, %p104
      %p106 = scmp.ne.s32.totalorder %s98, %s100
      %p107 = scmp.eq.s32.totalorder %s27, 1
      %p108 = por %p106, %p107
      %p109 = scmp.ne.s32.totalorder %s100, %s101
      %p110 = scmp.eq.s32.totalorder %s27, 0
      %p111 = por %p109, %p110
      %p112 = scmp.ne.s32.totalorder %s100, %s101
      %p113 = scmp.eq.s32.totalorder %s28, 1
      %p114 = por %p112, %p113
      %p116 = scmp.ne.s32.totalorder %s101, %s115
      %p117 = scmp.eq.s32.totalorder %s28, 0
      %p118 = por %p116, %p117
      %s120 = sadd.s32 %s119, 1
      %p123 = scmp.eq.s32.totalorder %s22, 1
      %p124 = scmp.ne.s32.totalorder %s119, %s121
      %p125 = scmp.eq.s32.totalorder %s22, 0
      %p126 = por %p124, %p125
      %p127 = scmp.ne.s32.totalorder %s119, %s121
      %p128 = scmp.eq.s32.totalorder %s27, 1
      %p129 = por %p127, %p128
      %p130 = scmp.ne.s32.totalorder %s121, %s122
      %p131 = scmp.eq.s32.totalorder %s27, 0
      %p132 = por %p130, %p131
      %p133 = scmp.ne.s32.totalorder %s121, %s122
      %p134 = scmp.eq.s32.totalorder %s28, 1
      %p135 = por %p133, %p134
      %p137 = scmp.ne.s32.totalorder %s122, %s136
      %p138 = scmp.eq.s32.totalorder %s28, 0
      %p139 = por %p137, %p138
      %s141 = sadd.s32 %s140, 1
      %p144 = scmp.eq.s32.totalorder %s22, 1
      %p145 = scmp.ne.s32.totalorder %s140, %s142
      %p146 = scmp.eq.s32.totalorder %s22, 0
      %p147 = por %p145, %p146
      %p148 = scmp.ne.s32.totalorder %s140, %s142
      %p149 = scmp.eq.s32.totalorder %s27, 1
      %p150 = por %p148, %p149
      %p151 = scmp.ne.s32.totalorder %s142, %s143
      %p152 = scmp.eq.s32.totalorder %s27, 0
      %p153 = por %p151, %p152
      %p154 = scmp.ne.s32.totalorder %s142, %s143
      %p155 = scmp.eq.s32.totalorder %s28, 1
      %p156 = por %p154, %p155
      %p158 = scmp.ne.s32.totalorder %s143, %s157
      %p159 = scmp.eq.s32.totalorder %s28, 0
      %p160 = por %p158, %p159
      %s162 = sadd.s32 %s161, 1
      %p165 = scmp.eq.s32.totalorder %s22, 1
      %p166 = scmp.ne.s32.totalorder %s161, %s163
      %p167 = scmp.eq.s32.totalorder %s22, 0
      %p168 = por %p166, %p167
      %p169 = scmp.ne.s32.totalorder %s161, %s163
      %p170 = scmp.eq.s32.totalorder %s27, 1
      %p171 = por %p169, %p170
      %p172 = scmp.ne.s32.totalorder %s163, %s164
      %p173 = scmp.eq.s32.totalorder %s27, 0
      %p174 = por %p172, %p173
      %p175 = scmp.ne.s32.totalorder %s163, %s164
      %p176 = scmp.eq.s32.totalorder %s28, 1
      %p177 = por %p175, %p176
      %p179 = scmp.ne.s32.totalorder %s164, %s178
      %p180 = scmp.eq.s32.totalorder %s28, 0
      %p181 = por %p179, %p180
      %s183 = sadd.s32 %s182, 1
      %p186 = scmp.eq.s32.totalorder %s22, 1
      %p187 = scmp.ne.s32.totalorder %s182, %s184
      %p188 = scmp.eq.s32.totalorder %s22, 0
      %p189 = por %p187, %p188
      %p190 = scmp.ne.s32.totalorder %s182, %s184
      %p191 = scmp.eq.s32.totalorder %s27, 1
      %p192 = por %p190, %p191
      %p193 = scmp.ne.s32.totalorder %s184, %s185
      %p194 = scmp.eq.s32.totalorder %s27, 0
      %p195 = por %p193, %p194
      %p196 = scmp.ne.s32.totalorder %s184, %s185
      %p197 = scmp.eq.s32.totalorder %s28, 1
      %p198 = por %p196, %p197
      %p200 = scmp.ne.s32.totalorder %s185, %s199
      %p201 = scmp.eq.s32.totalorder %s28, 0
      %p202 = por %p200, %p201
      %s204 = sadd.s32 %s203, 1
      %p207 = scmp.eq.s32.totalorder %s22, 1
      %p208 = scmp.ne.s32.totalorder %s203, %s205
      %p209 = scmp.eq.s32.totalorder %s22, 0
      %p210 = por %p208, %p209
      %p211 = scmp.ne.s32.totalorder %s203, %s205
      %p212 = scmp.eq.s32.totalorder %s27, 1
      %p213 = por %p211, %p212
      %p214 = scmp.ne.s32.totalorder %s205, %s206
      %p215 = scmp.eq.s32.totalorder %s27, 0
      %p216 = por %p214, %p215
      %p217 = scmp.ne.s32.totalorder %s205, %s206
      %p218 = scmp.eq.s32.totalorder %s28, 1
      %p219 = por %p217, %p218
      %p221 = scmp.ne.s32.totalorder %s206, %s220
      %p222 = scmp.eq.s32.totalorder %s28, 0
      %p223 = por %p221, %p222
      %s225 = sadd.s32 %s224, 1
      %p228 = scmp.eq.s32.totalorder %s22, 1
      %p229 = scmp.ne.s32.totalorder %s224, %s226
      %p230 = scmp.eq.s32.totalorder %s22, 0
      %p231 = por %p229, %p230
      %p232 = scmp.ne.s32.totalorder %s224, %s226
      %p233 = scmp.eq.s32.totalorder %s27, 1
      %p234 = por %p232, %p233
      %p235 = scmp.ne.s32.totalorder %s226, %s227
      %p236 = scmp.eq.s32.totalorder %s27, 0
      %p237 = por %p235, %p236
      %p238 = scmp.ne.s32.totalorder %s226, %s227
      %p239 = scmp.eq.s32.totalorder %s28, 1
      %p240 = por %p238, %p239
      %p242 = scmp.ne.s32.totalorder %s227, %s241
      %p243 = scmp.eq.s32.totalorder %s28, 0
      %p244 = por %p242, %p243
      %s246 = sadd.s32 %s245, 1
      %p249 = scmp.eq.s32.totalorder %s22, 1
      %p250 = scmp.ne.s32.totalorder %s245, %s247
      %p251 = scmp.eq.s32.totalorder %s22, 0
      %p252 = por %p250, %p251
      %p253 = scmp.ne.s32.totalorder %s245, %s247
      %p254 = scmp.eq.s32.totalorder %s27, 1
      %p255 = por %p253, %p254
      %p256 = scmp.ne.s32.totalorder %s247, %s248
      %p257 = scmp.eq.s32.totalorder %s27, 0
      %p258 = por %p256, %p257
      %p259 = scmp.ne.s32.totalorder %s247, %s248
      %p260 = scmp.eq.s32.totalorder %s28, 1
      %p261 = por %p259, %p260
      %p263 = scmp.ne.s32.totalorder %s248, %s262
      %p264 = scmp.eq.s32.totalorder %s28, 0
      %p265 = por %p263, %p264
      %s267 = sadd.s32 %s266, 1
      %p270 = scmp.eq.s32.totalorder %s22, 1
      %p271 = scmp.ne.s32.totalorder %s266, %s268
      %p272 = scmp.eq.s32.totalorder %s22, 0
      %p273 = por %p271, %p272
      %p274 = scmp.ne.s32.totalorder %s266, %s268
      %p275 = scmp.eq.s32.totalorder %s27, 1
      %p276 = por %p274, %p275
      %p277 = scmp.ne.s32.totalorder %s268, %s269
      %p278 = scmp.eq.s32.totalorder %s27, 0
      %p279 = por %p277, %p278
      %p280 = scmp.ne.s32.totalorder %s268, %s269
      %p281 = scmp.eq.s32.totalorder %s28, 1
      %p282 = por %p280, %p281
      %p284 = scmp.ne.s32.totalorder %s269, %s283
      %p285 = scmp.eq.s32.totalorder %s28, 0
      %p286 = por %p284, %p285
      %s288 = sadd.s32 %s287, 1
      %p291 = scmp.eq.s32.totalorder %s22, 1
      %p292 = scmp.ne.s32.totalorder %s287, %s289
      %p293 = scmp.eq.s32.totalorder %s22, 0
      %p294 = por %p292, %p293
      %p295 = scmp.ne.s32.totalorder %s287, %s289
      %p296 = scmp.eq.s32.totalorder %s27, 1
      %p297 = por %p295, %p296
      %p298 = scmp.ne.s32.totalorder %s289, %s290
      %p299 = scmp.eq.s32.totalorder %s27, 0
      %p300 = por %p298, %p299
      %p301 = scmp.ne.s32.totalorder %s289, %s290
      %p302 = scmp.eq.s32.totalorder %s28, 1
      %p303 = por %p301, %p302
      %p305 = scmp.ne.s32.totalorder %s290, %s304
      %p306 = scmp.eq.s32.totalorder %s28, 0
      %p307 = por %p305, %p306
      %s308 = ssub.s32 %s22, %s29
      %p309 = scmp.eq.s32.totalorder %s308, 0
      %s311 = sadd.s32 %s310, 1
      %s312 = scalar_select %p309, %s310, %s311
      %p315 = pneg %p309
      %p316 = scmp.eq.s32.totalorder %s22, 1
      %p317 = por %p315, %p316
      %p318 = scmp.ne.s32.totalorder %s310, %s313
      %p319 = scmp.eq.s32.totalorder %s22, 0
      %p320 = por %p318, %p319
      %p321 = scmp.ne.s32.totalorder %s310, %s313
      %p322 = scmp.eq.s32.totalorder %s27, 1
      %p323 = por %p321, %p322
      %p324 = scmp.ne.s32.totalorder %s313, %s314
      %p325 = scmp.eq.s32.totalorder %s27, 0
      %p326 = por %p324, %p325
      %p327 = scmp.ne.s32.totalorder %s313, %s314
      %p328 = scmp.eq.s32.totalorder %s28, 1
      %p329 = por %p327, %p328
      %p331 = scmp.ne.s32.totalorder %s314, %s330
      %p332 = scmp.eq.s32.totalorder %s28, 0
      %p333 = por %p331, %p332
      %p334 = scmp.le.s32.totalorder 1, %s22
      %p335 = scmp.lt.s32.totalorder %s22, 3
      %p336 = pnand %p334, %p335
      %p337 = pneg %p336
      // Predicated region
      $region9: #{tpu_custom_call.1} parent=5 // pred_check
        _
      $region10: #{tpu_custom_call.1} parent=5 // pred_check_branch
        %339 = sbr.rel (%p336) target = $region12
      $region11: #{tpu_custom_call.1} parent=5 // pred_region
        %s340 = ssub.s32 %s22, 1
        // Predicated region
        $region13: #{tpu_custom_call.1} parent=11 // pred_check
          %p341 = pneg %p69
        $region14: #{tpu_custom_call.1} parent=11 // pred_check_branch
          %343 = sbr.rel (%p341) target = $region16
        $region15: #{tpu_custom_call.1} parent=11 // pred_region
          _
        $region16: #{tpu_custom_call.1} parent=11 // pred_fallthru
          _
        // Predicated region
        $region17: #{tpu_custom_call.1} parent=11 // pred_check
          %p344 = pneg %p90
        $region18: #{tpu_custom_call.1} parent=11 // pred_check_branch
          %346 = sbr.rel (%p344) target = $region20
        $region19: #{tpu_custom_call.1} parent=11 // pred_region
          _
        $region20: #{tpu_custom_call.1} parent=11 // pred_fallthru
          _
        // Predicated region
        $region21: #{tpu_custom_call.1} parent=11 // pred_check
          %p347 = pneg %p111
        $region22: #{tpu_custom_call.1} parent=11 // pred_check_branch
          %349 = sbr.rel (%p347) target = $region24
        $region23: #{tpu_custom_call.1} parent=11 // pred_region
          _
        $region24: #{tpu_custom_call.1} parent=11 // pred_fallthru
          _
        // Predicated region
        $region25: #{tpu_custom_call.1} parent=11 // pred_check
          %p350 = pneg %p132
        $region26: #{tpu_custom_call.1} parent=11 // pred_check_branch
          %352 = sbr.rel (%p350) target = $region28
        $region27: #{tpu_custom_call.1} parent=11 // pred_region
          _
        $region28: #{tpu_custom_call.1} parent=11 // pred_fallthru
          _
        // Predicated region
        $region29: #{tpu_custom_call.1} parent=11 // pred_check
          %p353 = pneg %p153
        $region30: #{tpu_custom_call.1} parent=11 // pred_check_branch
          %355 = sbr.rel (%p353) target = $region32
        $region31: #{tpu_custom_call.1} parent=11 // pred_region
          _
        $region32: #{tpu_custom_call.1} parent=11 // pred_fallthru
          _
        // Predicated region
        $region33: #{tpu_custom_call.1} parent=11 // pred_check
          %p356 = pneg %p174
        $region34: #{tpu_custom_call.1} parent=11 // pred_check_branch
          %358 = sbr.rel (%p356) target = $region36
        $region35: #{tpu_custom_call.1} parent=11 // pred_region
          _
        $region36: #{tpu_custom_call.1} parent=11 // pred_fallthru
          _
        // Predicated region
        $region37: #{tpu_custom_call.1} parent=11 // pred_check
          %p359 = pneg %p195
        $region38: #{tpu_custom_call.1} parent=11 // pred_check_branch
          %361 = sbr.rel (%p359) target = $region40
        $region39: #{tpu_custom_call.1} parent=11 // pred_region
          _
        $region40: #{tpu_custom_call.1} parent=11 // pred_fallthru
          _
        // Predicated region
        $region41: #{tpu_custom_call.1} parent=11 // pred_check
          %p362 = pneg %p216
        $region42: #{tpu_custom_call.1} parent=11 // pred_check_branch
          %364 = sbr.rel (%p362) target = $region44
        $region43: #{tpu_custom_call.1} parent=11 // pred_region
          _
        $region44: #{tpu_custom_call.1} parent=11 // pred_fallthru
          _
        // Predicated region
        $region45: #{tpu_custom_call.1} parent=11 // pred_check
          %p365 = pneg %p237
        $region46: #{tpu_custom_call.1} parent=11 // pred_check_branch
          %367 = sbr.rel (%p365) target = $region48
        $region47: #{tpu_custom_call.1} parent=11 // pred_region
          _
        $region48: #{tpu_custom_call.1} parent=11 // pred_fallthru
          _
        // Predicated region
        $region49: #{tpu_custom_call.1} parent=11 // pred_check
          %p368 = pneg %p258
        $region50: #{tpu_custom_call.1} parent=11 // pred_check_branch
          %370 = sbr.rel (%p368) target = $region52
        $region51: #{tpu_custom_call.1} parent=11 // pred_region
          _
        $region52: #{tpu_custom_call.1} parent=11 // pred_fallthru
          _
        // Predicated region
        $region53: #{tpu_custom_call.1} parent=11 // pred_check
          %p371 = pneg %p279
        $region54: #{tpu_custom_call.1} parent=11 // pred_check_branch
          %373 = sbr.rel (%p371) target = $region56
        $region55: #{tpu_custom_call.1} parent=11 // pred_region
          _
        $region56: #{tpu_custom_call.1} parent=11 // pred_fallthru
          _
        // Predicated region
        $region57: #{tpu_custom_call.1} parent=11 // pred_check
          %p374 = pneg %p300
        $region58: #{tpu_custom_call.1} parent=11 // pred_check_branch
          %376 = sbr.rel (%p374) target = $region60
        $region59: #{tpu_custom_call.1} parent=11 // pred_region
          _
        $region60: #{tpu_custom_call.1} parent=11 // pred_fallthru
          _
      $region12: #{tpu_custom_call.1} parent=5 // pred_fallthru
        _
      %p377 = scmp.lt.s32.totalorder %s22, 2
      // Predicated region
      $region61: #{tpu_custom_call.1} parent=5 // pred_check
        %p378 = pneg %p377
      $region62: #{tpu_custom_call.1} parent=5 // pred_check_branch
        %380 = sbr.rel (%p378) target = $region64
      $region63: #{tpu_custom_call.1} parent=5 // pred_region
        // Predicated region
        $region65: #{tpu_custom_call.1} parent=63 // pred_check
          %p381 = pneg %p42
        $region66: #{tpu_custom_call.1} parent=63 // pred_check_branch
          %383 = sbr.rel (%p381) target = $region68
        $region67: #{tpu_custom_call.1} parent=63 // pred_region
          %p384 = scmp.lt.s32.totalorder %s22, 1
          %s385 = scalar_select %p384, %s22, 1
          %s386 = smul.addr %s385, 8
          %s387 = scalar_lea.vmem %s0, %s386
        $region68: #{tpu_custom_call.1} parent=63 // pred_fallthru
          _
      $region64: #{tpu_custom_call.1} parent=5 // pred_fallthru
        _
      %p388 = scmp.le.s32.totalorder 1, %s22
      %p389 = scmp.lt.s32.totalorder %s22, 3
      %p390 = pnand %p388, %p389
      %p391 = pneg %p390
      // Predicated region
      $region69: #{tpu_custom_call.1} parent=5 // pred_check
        _
      $region70: #{tpu_custom_call.1} parent=5 // pred_check_branch
        %393 = sbr.rel (%p390) target = $region72
      $region71: #{tpu_custom_call.1} parent=5 // pred_region
        %s394 = ssub.s32 %s22, 1
        %p395 = scmp.lt.s32.totalorder %s27, 1
        %s396 = scalar_select %p395, %s27, 1
        %s397 = smul.addr %s396, 8
        %s398 = scalar_lea.vmem %s0, %s397
        %p399 = pneg %p48
        %p400 = pneg %p45
        %p401 = pneg %p69
        %p402 = pneg %p66
        %p403 = pneg %p90
        %p404 = pneg %p87
        %p405 = pneg %p111
        %p406 = pneg %p108
        %p407 = pneg %p132
        %p408 = pneg %p129
        %p409 = pneg %p153
        %p410 = pneg %p150
        %p411 = pneg %p174
        %p412 = pneg %p171
        %p413 = pneg %p195
        %p414 = pneg %p192
        %p415 = pneg %p216
        %p416 = pneg %p213
        %p417 = pneg %p237
        %p418 = pneg %p234
        %p419 = pneg %p258
        %p420 = pneg %p255
        %p421 = pneg %p279
        %p422 = pneg %p276
        %p423 = pneg %p300
        %p424 = pneg %p297
        %p425 = pneg %p326
        %p426 = pneg %p323
        %s427 = sand.u32 %s313, 1
        %s428 = scalar_lea.sflag [#allocation5], %s427
        %s429 = sand.u32 %s313, 1
        %s430 = smul.addr %s429, 8
        %s431 = scalar_lea.vmem [#allocation4], %s430
        %p432 = scmp.lt.s32.totalorder %s27, 1
        %s433 = scalar_select %p432, %s27, 1
        %s434 = smul.addr %s433, 8
        %s435 = scalar_lea.vmem %s0, %s434
        %v437 = vld [vmem:[%s435] sm:$0xff]
        %v438 = vld [vmem:[%s1] sm:$0x1]
        %v439 = vld [vmem:[%s2] sm:$0x1]
        %vm440 = vcmask 261120
        %v441 = vsel %vm440, %v437, 0.0
        %442 = vadd.xlane.f32.xlu0 %v441
        %v443 = vpop.xlane.xlu0 %442
        %v444 = vrcp.pop 32.0
        %v445 = vmul.f32 %v443, %v444
        %v446 = vsub.f32 %v437, %v445
        %v447 = vmul.f32 %v446, %v446
        %v448 = vsel %vm440, %v447, 0.0
        %449 = vadd.xlane.f32.xlu0 %v448
        %v450 = vpop.xlane.xlu0 %449
        %v451 = vmul.f32 %v450, %v444
        %v452 = vadd.f32 %v451, 1e-05
        %v453 = vrsqrt.pop %v452
        %v454 = vmul.f32 %v446, %v453
        %v456 = vlaneseq
        %v457 = vshrl.u32 %v456, 7
        %v458 = vsub.s32 0, %v457
        %v459 = vrot.slane %v438, %v458
        %v461 = vmul.f32 %v454, %v459
        %v463 = vlaneseq
        %v464 = vshrl.u32 %v463, 7
        %v465 = vsub.s32 0, %v464
        %v466 = vrot.slane %v439, %v465
        %v468 = vadd.f32 %v461, %v466
        %v469 = vpack.c.bf16 %v468, %v468
        %v470 = vld [vmem:[%s3] sm:$0xf]
        %v471 = vld [vmem:[%s3 + $0x4] sm:$0xf]
        %v472 = vld [vmem:[%s3 + $0x8] sm:$0xf]
        %v473 = vld [vmem:[%s3 + $0xc] sm:$0xf]
        %v474 = vld [vmem:[%s4] sm:$0x1]
        %v476 = vlaneseq
        %v477 = vshrl.u32 %v476, 7
        %v478 = vsub.s32 0, %v477
        %v479 = vrot.slane %v474, %v478
        %v485 = vunpack.c.l.b16 %v470
        %v486 = vunpack.c.l.b16 %v471
        %v487 = vunpack.c.l.b16 %v472
        %v488 = vunpack.c.l.b16 %v473
        %v489 = vpack.c.b16 %v486, %v485
        %v490 = vpack.c.b16 %v488, %v487
        %v494 = vsel %vm440, %v469, 0
        %496 = vmatprep.subr.bf16.mxu0 0
        %497 = vmatpush1.bf16.msra.mxu0 0
        %498 = vmatprep.subr.bf16.mxu0 0
        %499 = vmatpush1.bf16.msra.mxu0 0
        %500 = vmatprep.subr.bf16.mxu0 0
        %501 = vmatpush1.bf16.msra.mxu0 0
        %502 = vmatprep.subr.bf16.mxu0 0
        %503 = vmatpush1.bf16.msra.mxu0 0
        %504 = vmatprep.subr.bf16.mxu0 0
        %505 = vmatpush1.bf16.msra.mxu0 0
        %506 = vmatprep.subr.bf16.mxu0 0
        %507 = vmatpush1.bf16.msra.mxu0 0
        %508 = vmatprep.subr.bf16.mxu0 0
        %509 = vmatpush1.bf16.msra.mxu0 %v490
        %510 = vmatprep.subr.bf16.mxu0 0
        %511 = vmatpush1.bf16.msra.mxu0 %v489
        %512 = vmatprep.subr.bf16.mxu0 0
        %513 = vmatpush2.bf16.msra.mxu0 0
        %514 = vmatprep.subr.bf16.mxu0 0
        %515 = vmatpush2.bf16.msra.mxu0 0
        %516 = vmatprep.subr.bf16.mxu0 0
        %517 = vmatpush2.bf16.msra.mxu0 0
        %518 = vmatprep.subr.bf16.mxu0 0
        %519 = vmatpush2.bf16.msra.mxu0 0
        %520 = vmatprep.subr.bf16.mxu0 0
        %521 = vmatpush2.bf16.msra.mxu0 0
        %522 = vmatprep.subr.bf16.mxu0 0
        %523 = vmatpush2.bf16.msra.mxu0 0
        %524 = vmatprep.subr.bf16.mxu0 0
        %525 = vmatpush2.bf16.msra.mxu0 0
        %526 = vmatprep.subr.bf16.mxu0 0
        %527 = vmatpush2.bf16.msra.mxu0 0
        %528 = vmatprep.mubr.bf16.mxu0 0
        %529 = vmatmul.mubr.bf16.gmra.mxu0 %v494
        %v530 = vpop.f32.mrf.mxu0
        %v531 = vadd.f32 %v479, %v530
        %v532 = vpop.f32.mrf.mxu0
        %v533 = vpop.f32.mrf.mxu0
        %v534 = vpop.f32.mrf.mxu0
        %535 = vdwg.mxu0
        %v536 = vpack.c.bf16 %v531, %v531
        %v538 = vunpack.c.l.b16 %v536
        %v539 = vpack.c.b16 %v538, %v538
        %540 = vrot.lane.b32.xlu0 %v539, 96
        %v541 = vpop.permute.xlu0 %540
        %vm543 = vcmask 257024
        %544 = vst.msk [vmem:[#allocation2] sm:$0xf] %vm543, %v541
        %545 = vrot.lane.b32.xlu0 %v539, 64
        %v546 = vpop.permute.xlu0 %545
        %548 = vst.msk [vmem:[#allocation3] sm:$0xf] %vm543, %v546
        %v549 = vld [vmem:[#allocation2] sm:$0xf]
        %v550 = vld [vmem:[#allocation3] sm:$0xf]
        %vm551 = vcmask 64512
        %v553 = vsel %vm551, %v536, 0
        %v556 = vsel %vm551, %v549, 0
        %558 = vmatprep.subr.bf16.mxu0 0
        %559 = vmatpush1.bf16.xpose.msra.mxu0 0
        %560 = vmatprep.subr.bf16.mxu0 0
        %561 = vmatpush1.bf16.xpose.msra.mxu0 0
        %562 = vmatprep.subr.bf16.mxu0 0
        %563 = vmatpush1.bf16.xpose.msra.mxu0 0
        %564 = vmatprep.subr.bf16.mxu0 0
        %565 = vmatpush1.bf16.xpose.msra.mxu0 0
        %566 = vmatprep.subr.bf16.mxu0 0
        %567 = vmatpush1.bf16.xpose.msra.mxu0 0
        %568 = vmatprep.subr.bf16.mxu0 0
        %569 = vmatpush1.bf16.xpose.msra.mxu0 0
        %570 = vmatprep.subr.bf16.mxu0 0
        %571 = vmatpush1.bf16.xpose.msra.mxu0 0
        %572 = vmatprep.subr.bf16.mxu0 0
        %573 = vmatpush1.bf16.xpose.msra.mxu0 %v556
        %574 = vmatprep.subr.bf16.mxu0 0
        %575 = vmatpush2.bf16.xpose.msra.mxu0 0
        %576 = vmatprep.subr.bf16.mxu0 0
        %577 = vmatpush2.bf16.xpose.msra.mxu0 0
        %578 = vmatprep.subr.bf16.mxu0 0
        %579 = vmatpush2.bf16.xpose.msra.mxu0 0
        %580 = vmatprep.subr.bf16.mxu0 0
        %581 = vmatpush2.bf16.xpose.msra.mxu0 0
        %582 = vmatprep.subr.bf16.mxu0 0
        %583 = vmatpush2.bf16.xpose.msra.mxu0 0
        %584 = vmatprep.subr.bf16.mxu0 0
        %585 = vmatpush2.bf16.xpose.msra.mxu0 0
        %586 = vmatprep.subr.bf16.mxu0 0
        %587 = vmatpush2.bf16.xpose.msra.mxu0 0
        %588 = vmatprep.subr.bf16.mxu0 0
        %589 = vmatpush2.bf16.xpose.msra.mxu0 0
        %590 = vmatprep.mubr.bf16.mxu0 0
        %591 = vmatmul.mubr.bf16.gmra.mxu0 %v553
        %v592 = vpop.f32.mrf.mxu0
        %v593 = vadd.f32 0.0, %v592
        %v594 = vpop.f32.mrf.mxu0
        %v595 = vpop.f32.mrf.mxu0
        %v596 = vpop.f32.mrf.mxu0
        %597 = vdwg.mxu0
        %v598 = vmul.f32 %v593, 0.35355338
        %v599 = vsel %vm551, %v598, -inf
        %600 = vmax.xlane.f32.xlu0 %v599
        %v601 = vpop.xlane.xlu0 %600
        %v602 = vsub.f32 -inf, %v601
        %v603 = vmul.f32 %v602, 1.442695
        %v604 = vpow.pop %v603
        %v605 = vsub.f32 %v598, %v601
        %v606 = vmul.f32 %v605, 1.442695
        %v607 = vpow.pop %v606
        %v608 = vmul.f32 %v604, 0.0
        %v609 = vsel %vm551, %v607, 0.0
        %610 = vadd.xlane.f32.xlu0 %v609
        %v611 = vpop.xlane.xlu0 %610
        %v612 = vadd.f32 %v608, %v611
        %v613 = vpack.c.bf16 %v607, %v607
        %v615 = vsel %vm551, %v613, 0
        %vm617 = vcmask 1043456
        %v619 = vsel %vm617, %v550, 0
        %621 = vmatprep.subr.bf16.mxu0 0
        %622 = vmatpush1.bf16.msra.mxu0 0
        %623 = vmatprep.subr.bf16.mxu0 0
        %624 = vmatpush1.bf16.msra.mxu0 0
        %625 = vmatprep.subr.bf16.mxu0 0
        %626 = vmatpush1.bf16.msra.mxu0 0
        %627 = vmatprep.subr.bf16.mxu0 0
        %628 = vmatpush1.bf16.msra.mxu0 0
        %629 = vmatprep.subr.bf16.mxu0 0
        %630 = vmatpush1.bf16.msra.mxu0 0
        %631 = vmatprep.subr.bf16.mxu0 0
        %632 = vmatpush1.bf16.msra.mxu0 0
        %633 = vmatprep.subr.bf16.mxu0 0
        %634 = vmatpush1.bf16.msra.mxu0 0
        %635 = vmatprep.subr.bf16.mxu0 0
        %636 = vmatpush1.bf16.msra.mxu0 %v619
        %637 = vmatprep.subr.bf16.mxu0 0
        %638 = vmatpush2.bf16.msra.mxu0 0
        %639 = vmatprep.subr.bf16.mxu0 0
        %640 = vmatpush2.bf16.msra.mxu0 0
        %641 = vmatprep.subr.bf16.mxu0 0
        %642 = vmatpush2.bf16.msra.mxu0 0
        %643 = vmatprep.subr.bf16.mxu0 0
        %644 = vmatpush2.bf16.msra.mxu0 0
        %645 = vmatprep.subr.bf16.mxu0 0
        %646 = vmatpush2.bf16.msra.mxu0 0
        %647 = vmatprep.subr.bf16.mxu0 0
        %648 = vmatpush2.bf16.msra.mxu0 0
        %649 = vmatprep.subr.bf16.mxu0 0
        %650 = vmatpush2.bf16.msra.mxu0 0
        %651 = vmatprep.subr.bf16.mxu0 0
        %652 = vmatpush2.bf16.msra.mxu0 0
        %653 = vmatprep.mubr.bf16.mxu0 0
        %654 = vmatmul.mubr.bf16.gmra.mxu0 %v615
        %v655 = vpop.f32.mrf.mxu0
        %v656 = vadd.f32 0.0, %v655
        %v657 = vpop.f32.mrf.mxu0
        %v658 = vpop.f32.mrf.mxu0
        %v659 = vpop.f32.mrf.mxu0
        %660 = vdwg.mxu0
        %v661 = vadd.f32 %v608, %v656
        %v662 = vrcp.pop %v612
        %v663 = vmul.f32 %v661, %v662
        %664 = vrot.lane.b32.xlu0 %v536, 120
        %v665 = vpop.permute.xlu0 %664
        %v667 = vunpack.c.l.b16 %v549
        %v668 = vpack.c.b16 %v667, %v667
        %669 = vrot.lane.b32.xlu0 %v668, 120
        %v670 = vpop.permute.xlu0 %669
        %v672 = vsel %vm551, %v665, 0
        %v675 = vsel %vm551, %v670, 0
        %677 = vmatprep.subr.bf16.mxu0 0
        %678 = vmatpush1.bf16.xpose.msra.mxu0 0
        %679 = vmatprep.subr.bf16.mxu0 0
        %680 = vmatpush1.bf16.xpose.msra.mxu0 0
        %681 = vmatprep.subr.bf16.mxu0 0
        %682 = vmatpush1.bf16.xpose.msra.mxu0 0
        %683 = vmatprep.subr.bf16.mxu0 0
        %684 = vmatpush1.bf16.xpose.msra.mxu0 0
        %685 = vmatprep.subr.bf16.mxu0 0
        %686 = vmatpush1.bf16.xpose.msra.mxu0 0
        %687 = vmatprep.subr.bf16.mxu0 0
        %688 = vmatpush1.bf16.xpose.msra.mxu0 0
        %689 = vmatprep.subr.bf16.mxu0 0
        %690 = vmatpush1.bf16.xpose.msra.mxu0 0
        %691 = vmatprep.subr.bf16.mxu0 0
        %692 = vmatpush1.bf16.xpose.msra.mxu0 %v675
        %693 = vmatprep.subr.bf16.mxu0 0
        %694 = vmatpush2.bf16.xpose.msra.mxu0 0
        %695 = vmatprep.subr.bf16.mxu0 0
        %696 = vmatpush2.bf16.xpose.msra.mxu0 0
        %697 = vmatprep.subr.bf16.mxu0 0
        %698 = vmatpush2.bf16.xpose.msra.mxu0 0
        %699 = vmatprep.subr.bf16.mxu0 0
        %700 = vmatpush2.bf16.xpose.msra.mxu0 0
        %701 = vmatprep.subr.bf16.mxu0 0
        %702 = vmatpush2.bf16.xpose.msra.mxu0 0
        %703 = vmatprep.subr.bf16.mxu0 0
        %704 = vmatpush2.bf16.xpose.msra.mxu0 0
        %705 = vmatprep.subr.bf16.mxu0 0
        %706 = vmatpush2.bf16.xpose.msra.mxu0 0
        %707 = vmatprep.subr.bf16.mxu0 0
        %708 = vmatpush2.bf16.xpose.msra.mxu0 0
        %709 = vmatprep.mubr.bf16.mxu0 0
        %710 = vmatmul.mubr.bf16.gmra.mxu0 %v672
        %v711 = vpop.f32.mrf.mxu0
        %v712 = vadd.f32 0.0, %v711
        %v713 = vpop.f32.mrf.mxu0
        %v714 = vpop.f32.mrf.mxu0
        %v715 = vpop.f32.mrf.mxu0
        %716 = vdwg.mxu0
        %v717 = vmul.f32 %v712, 0.35355338
        %v718 = vsel %vm551, %v717, -inf
        %719 = vmax.xlane.f32.xlu0 %v718
        %v720 = vpop.xlane.xlu0 %719
        %v721 = vsub.f32 -inf, %v720
        %v722 = vmul.f32 %v721, 1.442695
        %v723 = vpow.pop %v722
        %v724 = vsub.f32 %v717, %v720
        %v725 = vmul.f32 %v724, 1.442695
        %v726 = vpow.pop %v725
        %v727 = vmul.f32 %v723, 0.0
        %v728 = vsel %vm551, %v726, 0.0
        %729 = vadd.xlane.f32.xlu0 %v728
        %v730 = vpop.xlane.xlu0 %729
        %v731 = vadd.f32 %v727, %v730
        %v732 = vpack.c.bf16 %v726, %v726
        %v734 = vunpack.c.l.b16 %v550
        %v735 = vpack.c.b16 %v734, %v734
        %736 = vrot.lane.b32.xlu0 %v735, 120
        %v737 = vpop.permute.xlu0 %736
        %v739 = vsel %vm551, %v732, 0
        %v742 = vsel %vm617, %v737, 0
        %744 = vmatprep.subr.bf16.mxu0 0
        %745 = vmatpush1.bf16.msra.mxu0 0
        %746 = vmatprep.subr.bf16.mxu0 0
        %747 = vmatpush1.bf16.msra.mxu0 0
        %748 = vmatprep.subr.bf16.mxu0 0
        %749 = vmatpush1.bf16.msra.mxu0 0
        %750 = vmatprep.subr.bf16.mxu0 0
        %751 = vmatpush1.bf16.msra.mxu0 0
        %752 = vmatprep.subr.bf16.mxu0 0
        %753 = vmatpush1.bf16.msra.mxu0 0
        %754 = vmatprep.subr.bf16.mxu0 0
        %755 = vmatpush1.bf16.msra.mxu0 0
        %756 = vmatprep.subr.bf16.mxu0 0
        %757 = vmatpush1.bf16.msra.mxu0 0
        %758 = vmatprep.subr.bf16.mxu0 0
        %759 = vmatpush1.bf16.msra.mxu0 %v742
        %760 = vmatprep.subr.bf16.mxu0 0
        %761 = vmatpush2.bf16.msra.mxu0 0
        %762 = vmatprep.subr.bf16.mxu0 0
        %763 = vmatpush2.bf16.msra.mxu0 0
        %764 = vmatprep.subr.bf16.mxu0 0
        %765 = vmatpush2.bf16.msra.mxu0 0
        %766 = vmatprep.subr.bf16.mxu0 0
        %767 = vmatpush2.bf16.msra.mxu0 0
        %768 = vmatprep.subr.bf16.mxu0 0
        %769 = vmatpush2.bf16.msra.mxu0 0
        %770 = vmatprep.subr.bf16.mxu0 0
        %771 = vmatpush2.bf16.msra.mxu0 0
        %772 = vmatprep.subr.bf16.mxu0 0
        %773 = vmatpush2.bf16.msra.mxu0 0
        %774 = vmatprep.subr.bf16.mxu0 0
        %775 = vmatpush2.bf16.msra.mxu0 0
        %776 = vmatprep.mubr.bf16.mxu0 0
        %777 = vmatmul.mubr.bf16.gmra.mxu0 %v739
        %v778 = vpop.f32.mrf.mxu0
        %v779 = vadd.f32 0.0, %v778
        %v780 = vpop.f32.mrf.mxu0
        %v781 = vpop.f32.mrf.mxu0
        %v782 = vpop.f32.mrf.mxu0
        %783 = vdwg.mxu0
        %v784 = vadd.f32 %v727, %v779
        %v785 = vrcp.pop %v731
        %v786 = vmul.f32 %v784, %v785
        %787 = vrot.lane.b32.xlu0 %v536, 112
        %v788 = vpop.permute.xlu0 %787
        %789 = vrot.lane.b32.xlu0 %v668, 112
        %v790 = vpop.permute.xlu0 %789
        %v792 = vsel %vm551, %v788, 0
        %v795 = vsel %vm551, %v790, 0
        %797 = vmatprep.subr.bf16.mxu0 0
        %798 = vmatpush1.bf16.xpose.msra.mxu0 0
        %799 = vmatprep.subr.bf16.mxu0 0
        %800 = vmatpush1.bf16.xpose.msra.mxu0 0
        %801 = vmatprep.subr.bf16.mxu0 0
        %802 = vmatpush1.bf16.xpose.msra.mxu0 0
        %803 = vmatprep.subr.bf16.mxu0 0
        %804 = vmatpush1.bf16.xpose.msra.mxu0 0
        %805 = vmatprep.subr.bf16.mxu0 0
        %806 = vmatpush1.bf16.xpose.msra.mxu0 0
        %807 = vmatprep.subr.bf16.mxu0 0
        %808 = vmatpush1.bf16.xpose.msra.mxu0 0
        %809 = vmatprep.subr.bf16.mxu0 0
        %810 = vmatpush1.bf16.xpose.msra.mxu0 0
        %811 = vmatprep.subr.bf16.mxu0 0
        %812 = vmatpush1.bf16.xpose.msra.mxu0 %v795
        %813 = vmatprep.subr.bf16.mxu0 0
        %814 = vmatpush2.bf16.xpose.msra.mxu0 0
        %815 = vmatprep.subr.bf16.mxu0 0
        %816 = vmatpush2.bf16.xpose.msra.mxu0 0
        %817 = vmatprep.subr.bf16.mxu0 0
        %818 = vmatpush2.bf16.xpose.msra.mxu0 0
        %819 = vmatprep.subr.bf16.mxu0 0
        %820 = vmatpush2.bf16.xpose.msra.mxu0 0
        %821 = vmatprep.subr.bf16.mxu0 0
        %822 = vmatpush2.bf16.xpose.msra.mxu0 0
        %823 = vmatprep.subr.bf16.mxu0 0
        %824 = vmatpush2.bf16.xpose.msra.mxu0 0
        %825 = vmatprep.subr.bf16.mxu0 0
        %826 = vmatpush2.bf16.xpose.msra.mxu0 0
        %827 = vmatprep.subr.bf16.mxu0 0
        %828 = vmatpush2.bf16.xpose.msra.mxu0 0
        %829 = vmatprep.mubr.bf16.mxu0 0
        %830 = vmatmul.mubr.bf16.gmra.mxu0 %v792
        %v831 = vpop.f32.mrf.mxu0
        %v832 = vadd.f32 0.0, %v831
        %v833 = vpop.f32.mrf.mxu0
        %v834 = vpop.f32.mrf.mxu0
        %v835 = vpop.f32.mrf.mxu0
        %836 = vdwg.mxu0
        %v837 = vmul.f32 %v832, 0.35355338
        %v838 = vsel %vm551, %v837, -inf
        %839 = vmax.xlane.f32.xlu0 %v838
        %v840 = vpop.xlane.xlu0 %839
        %v841 = vsub.f32 -inf, %v840
        %v842 = vmul.f32 %v841, 1.442695
        %v843 = vpow.pop %v842
        %v844 = vsub.f32 %v837, %v840
        %v845 = vmul.f32 %v844, 1.442695
        %v846 = vpow.pop %v845
        %v847 = vmul.f32 %v843, 0.0
        %v848 = vsel %vm551, %v846, 0.0
        %849 = vadd.xlane.f32.xlu0 %v848
        %v850 = vpop.xlane.xlu0 %849
        %v851 = vadd.f32 %v847, %v850
        %v852 = vpack.c.bf16 %v846, %v846
        %853 = vrot.lane.b32.xlu0 %v735, 112
        %v854 = vpop.permute.xlu0 %853
        %v856 = vsel %vm551, %v852, 0
        %v859 = vsel %vm617, %v854, 0
        %861 = vmatprep.subr.bf16.mxu0 0
        %862 = vmatpush1.bf16.msra.mxu0 0
        %863 = vmatprep.subr.bf16.mxu0 0
        %864 = vmatpush1.bf16.msra.mxu0 0
        %865 = vmatprep.subr.bf16.mxu0 0
        %866 = vmatpush1.bf16.msra.mxu0 0
        %867 = vmatprep.subr.bf16.mxu0 0
        %868 = vmatpush1.bf16.msra.mxu0 0
        %869 = vmatprep.subr.bf16.mxu0 0
        %870 = vmatpush1.bf16.msra.mxu0 0
        %871 = vmatprep.subr.bf16.mxu0 0
        %872 = vmatpush1.bf16.msra.mxu0 0
        %873 = vmatprep.subr.bf16.mxu0 0
        %874 = vmatpush1.bf16.msra.mxu0 0
        %875 = vmatprep.subr.bf16.mxu0 0
        %876 = vmatpush1.bf16.msra.mxu0 %v859
        %877 = vmatprep.subr.bf16.mxu0 0
        %878 = vmatpush2.bf16.msra.mxu0 0
        %879 = vmatprep.subr.bf16.mxu0 0
        %880 = vmatpush2.bf16.msra.mxu0 0
        %881 = vmatprep.subr.bf16.mxu0 0
        %882 = vmatpush2.bf16.msra.mxu0 0
        %883 = vmatprep.subr.bf16.mxu0 0
        %884 = vmatpush2.bf16.msra.mxu0 0
        %885 = vmatprep.subr.bf16.mxu0 0
        %886 = vmatpush2.bf16.msra.mxu0 0
        %887 = vmatprep.subr.bf16.mxu0 0
        %888 = vmatpush2.bf16.msra.mxu0 0
        %889 = vmatprep.subr.bf16.mxu0 0
        %890 = vmatpush2.bf16.msra.mxu0 0
        %891 = vmatprep.subr.bf16.mxu0 0
        %892 = vmatpush2.bf16.msra.mxu0 0
        %893 = vmatprep.mubr.bf16.mxu0 0
        %894 = vmatmul.mubr.bf16.gmra.mxu0 %v856
        %v895 = vpop.f32.mrf.mxu0
        %v896 = vadd.f32 0.0, %v895
        %v897 = vpop.f32.mrf.mxu0
        %v898 = vpop.f32.mrf.mxu0
        %v899 = vpop.f32.mrf.mxu0
        %900 = vdwg.mxu0
        %v901 = vadd.f32 %v847, %v896
        %v902 = vrcp.pop %v851
        %v903 = vmul.f32 %v901, %v902
        %904 = vrot.lane.b32.xlu0 %v536, 104
        %v905 = vpop.permute.xlu0 %904
        %906 = vrot.lane.b32.xlu0 %v668, 104
        %v907 = vpop.permute.xlu0 %906
        %v909 = vsel %vm551, %v905, 0
        %v912 = vsel %vm551, %v907, 0
        %914 = vmatprep.subr.bf16.mxu0 0
        %915 = vmatpush1.bf16.xpose.msra.mxu0 0
        %916 = vmatprep.subr.bf16.mxu0 0
        %917 = vmatpush1.bf16.xpose.msra.mxu0 0
        %918 = vmatprep.subr.bf16.mxu0 0
        %919 = vmatpush1.bf16.xpose.msra.mxu0 0
        %920 = vmatprep.subr.bf16.mxu0 0
        %921 = vmatpush1.bf16.xpose.msra.mxu0 0
        %922 = vmatprep.subr.bf16.mxu0 0
        %923 = vmatpush1.bf16.xpose.msra.mxu0 0
        %924 = vmatprep.subr.bf16.mxu0 0
        %925 = vmatpush1.bf16.xpose.msra.mxu0 0
        %926 = vmatprep.subr.bf16.mxu0 0
        %927 = vmatpush1.bf16.xpose.msra.mxu0 0
        %928 = vmatprep.subr.bf16.mxu0 0
        %929 = vmatpush1.bf16.xpose.msra.mxu0 %v912
        %930 = vmatprep.subr.bf16.mxu0 0
        %931 = vmatpush2.bf16.xpose.msra.mxu0 0
        %932 = vmatprep.subr.bf16.mxu0 0
        %933 = vmatpush2.bf16.xpose.msra.mxu0 0
        %934 = vmatprep.subr.bf16.mxu0 0
        %935 = vmatpush2.bf16.xpose.msra.mxu0 0
        %936 = vmatprep.subr.bf16.mxu0 0
        %937 = vmatpush2.bf16.xpose.msra.mxu0 0
        %938 = vmatprep.subr.bf16.mxu0 0
        %939 = vmatpush2.bf16.xpose.msra.mxu0 0
        %940 = vmatprep.subr.bf16.mxu0 0
        %941 = vmatpush2.bf16.xpose.msra.mxu0 0
        %942 = vmatprep.subr.bf16.mxu0 0
        %943 = vmatpush2.bf16.xpose.msra.mxu0 0
        %944 = vmatprep.subr.bf16.mxu0 0
        %945 = vmatpush2.bf16.xpose.msra.mxu0 0
        %946 = vmatprep.mubr.bf16.mxu0 0
        %947 = vmatmul.mubr.bf16.gmra.mxu0 %v909
        %v948 = vpop.f32.mrf.mxu0
        %v949 = vadd.f32 0.0, %v948
        %v950 = vpop.f32.mrf.mxu0
        %v951 = vpop.f32.mrf.mxu0
        %v952 = vpop.f32.mrf.mxu0
        %953 = vdwg.mxu0
        %v954 = vmul.f32 %v949, 0.35355338
        %v955 = vsel %vm551, %v954, -inf
        %956 = vmax.xlane.f32.xlu0 %v955
        %v957 = vpop.xlane.xlu0 %956
        %v958 = vsub.f32 -inf, %v957
        %v959 = vmul.f32 %v958, 1.442695
        %v960 = vpow.pop %v959
        %v961 = vsub.f32 %v954, %v957
        %v962 = vmul.f32 %v961, 1.442695
        %v963 = vpow.pop %v962
        %v964 = vmul.f32 %v960, 0.0
        %v965 = vsel %vm551, %v963, 0.0
        %966 = vadd.xlane.f32.xlu0 %v965
        %v967 = vpop.xlane.xlu0 %966
        %v968 = vadd.f32 %v964, %v967
        %v969 = vpack.c.bf16 %v963, %v963
        %970 = vrot.lane.b32.xlu0 %v735, 104
        %v971 = vpop.permute.xlu0 %970
        %v973 = vsel %vm551, %v969, 0
        %v976 = vsel %vm617, %v971, 0
        %978 = vmatprep.subr.bf16.mxu0 0
        %979 = vmatpush1.bf16.msra.mxu0 0
        %980 = vmatprep.subr.bf16.mxu0 0
        %981 = vmatpush1.bf16.msra.mxu0 0
        %982 = vmatprep.subr.bf16.mxu0 0
        %983 = vmatpush1.bf16.msra.mxu0 0
        %984 = vmatprep.subr.bf16.mxu0 0
        %985 = vmatpush1.bf16.msra.mxu0 0
        %986 = vmatprep.subr.bf16.mxu0 0
        %987 = vmatpush1.bf16.msra.mxu0 0
        %988 = vmatprep.subr.bf16.mxu0 0
        %989 = vmatpush1.bf16.msra.mxu0 0
        %990 = vmatprep.subr.bf16.mxu0 0
        %991 = vmatpush1.bf16.msra.mxu0 0
        %992 = vmatprep.subr.bf16.mxu0 0
        %993 = vmatpush1.bf16.msra.mxu0 %v976
        %994 = vmatprep.subr.bf16.mxu0 0
        %995 = vmatpush2.bf16.msra.mxu0 0
        %996 = vmatprep.subr.bf16.mxu0 0
        %997 = vmatpush2.bf16.msra.mxu0 0
        %998 = vmatprep.subr.bf16.mxu0 0
        %999 = vmatpush2.bf16.msra.mxu0 0
        %1000 = vmatprep.subr.bf16.mxu0 0
        %1001 = vmatpush2.bf16.msra.mxu0 0
        %1002 = vmatprep.subr.bf16.mxu0 0
        %1003 = vmatpush2.bf16.msra.mxu0 0
        %1004 = vmatprep.subr.bf16.mxu0 0
        %1005 = vmatpush2.bf16.msra.mxu0 0
        %1006 = vmatprep.subr.bf16.mxu0 0
        %1007 = vmatpush2.bf16.msra.mxu0 0
        %1008 = vmatprep.subr.bf16.mxu0 0
        %1009 = vmatpush2.bf16.msra.mxu0 0
        %1010 = vmatprep.mubr.bf16.mxu0 0
        %1011 = vmatmul.mubr.bf16.gmra.mxu0 %v973
        %v1012 = vpop.f32.mrf.mxu0
        %v1013 = vadd.f32 0.0, %v1012
        %v1014 = vpop.f32.mrf.mxu0
        %v1015 = vpop.f32.mrf.mxu0
        %v1016 = vpop.f32.mrf.mxu0
        %1017 = vdwg.mxu0
        %v1018 = vadd.f32 %v964, %v1013
        %v1019 = vrcp.pop %v968
        %v1020 = vmul.f32 %v1018, %v1019
        %1022 = vrot.lane.b32.xlu0 %v786, 8
        %v1023 = vpop.permute.xlu0 %1022
        %1026 = vrot.lane.b32.xlu0 %v903, 16
        %v1027 = vpop.permute.xlu0 %1026
        %1030 = vrot.lane.b32.xlu0 %v1020, 24
        %v1031 = vpop.permute.xlu0 %1030
        %v1033 = vsel %vm551, %v663, %v1023
        %vm1034 = vcmask 130048
        %v1035 = vsel %vm1034, %v1033, %v1027
        %vm1036 = vcmask 195584
        %v1037 = vsel %vm1036, %v1035, %v1031
        %v1038 = vpack.c.bf16 %v1037, %v1037
        %v1039 = vld [vmem:[%s5] sm:$0xf]
        %v1040 = vld [vmem:[%s5 + $0x4] sm:$0xf]
        %v1041 = vld [vmem:[%s5 + $0x8] sm:$0xf]
        %v1042 = vld [vmem:[%s5 + $0xc] sm:$0xf]
        %v1047 = vunpack.c.l.b16 %v1039
        %v1048 = vunpack.c.l.b16 %v1040
        %v1049 = vunpack.c.l.b16 %v1041
        %v1050 = vunpack.c.l.b16 %v1042
        %v1051 = vpack.c.b16 %v1048, %v1047
        %v1052 = vpack.c.b16 %v1050, %v1049
        %v1056 = vsel %vm440, %v1038, 0
        %1058 = vmatprep.subr.bf16.mxu0 0
        %1059 = vmatpush1.bf16.msra.mxu0 0
        %1060 = vmatprep.subr.bf16.mxu0 0
        %1061 = vmatpush1.bf16.msra.mxu0 0
        %1062 = vmatprep.subr.bf16.mxu0 0
        %1063 = vmatpush1.bf16.msra.mxu0 0
        %1064 = vmatprep.subr.bf16.mxu0 0
        %1065 = vmatpush1.bf16.msra.mxu0 0
        %1066 = vmatprep.subr.bf16.mxu0 0
        %1067 = vmatpush1.bf16.msra.mxu0 0
        %1068 = vmatprep.subr.bf16.mxu0 0
        %1069 = vmatpush1.bf16.msra.mxu0 0
        %1070 = vmatprep.subr.bf16.mxu0 0
        %1071 = vmatpush1.bf16.msra.mxu0 %v1052
        %1072 = vmatprep.subr.bf16.mxu0 0
        %1073 = vmatpush1.bf16.msra.mxu0 %v1051
        %1074 = vmatprep.subr.bf16.mxu0 0
        %1075 = vmatpush2.bf16.msra.mxu0 0
        %1076 = vmatprep.subr.bf16.mxu0 0
        %1077 = vmatpush2.bf16.msra.mxu0 0
        %1078 = vmatprep.subr.bf16.mxu0 0
        %1079 = vmatpush2.bf16.msra.mxu0 0
        %1080 = vmatprep.subr.bf16.mxu0 0
        %1081 = vmatpush2.bf16.msra.mxu0 0
        %1082 = vmatprep.subr.bf16.mxu0 0
        %1083 = vmatpush2.bf16.msra.mxu0 0
        %1084 = vmatprep.subr.bf16.mxu0 0
        %1085 = vmatpush2.bf16.msra.mxu0 0
        %1086 = vmatprep.subr.bf16.mxu0 0
        %1087 = vmatpush2.bf16.msra.mxu0 0
        %1088 = vmatprep.subr.bf16.mxu0 0
        %1089 = vmatpush2.bf16.msra.mxu0 0
        %1090 = vmatprep.mubr.bf16.mxu0 0
        %1091 = vmatmul.mubr.bf16.gmra.mxu0 %v1056
        %v1092 = vpop.f32.mrf.mxu0
        %v1093 = vadd.f32 0.0, %v1092
        %v1094 = vpop.f32.mrf.mxu0
        %v1095 = vpop.f32.mrf.mxu0
        %v1096 = vpop.f32.mrf.mxu0
        %1097 = vdwg.mxu0
        %v1098 = vadd.f32 %v437, %v1093
        %v1099 = vld [vmem:[%s6] sm:$0x1]
        %v1101 = vlaneseq
        %v1102 = vshrl.u32 %v1101, 7
        %v1103 = vsub.s32 0, %v1102
        %v1104 = vrot.slane %v1099, %v1103
        %v1106 = vadd.f32 %v1098, %v1104
        %v1107 = vld [vmem:[%s7] sm:$0x1]
        %v1108 = vld [vmem:[%s8] sm:$0x1]
        %v1109 = vsel %vm440, %v1106, 0.0
        %1110 = vadd.xlane.f32.xlu0 %v1109
        %v1111 = vpop.xlane.xlu0 %1110
        %v1112 = vmul.f32 %v1111, %v444
        %v1113 = vsub.f32 %v1106, %v1112
        %v1114 = vmul.f32 %v1113, %v1113
        %v1115 = vsel %vm440, %v1114, 0.0
        %1116 = vadd.xlane.f32.xlu0 %v1115
        %v1117 = vpop.xlane.xlu0 %1116
        %v1118 = vmul.f32 %v1117, %v444
        %v1119 = vadd.f32 %v1118, 1e-05
        %v1120 = vrsqrt.pop %v1119
        %v1121 = vmul.f32 %v1113, %v1120
        %v1123 = vlaneseq
        %v1124 = vshrl.u32 %v1123, 7
        %v1125 = vsub.s32 0, %v1124
        %v1126 = vrot.slane %v1107, %v1125
        %v1128 = vmul.f32 %v1121, %v1126
        %v1130 = vlaneseq
        %v1131 = vshrl.u32 %v1130, 7
        %v1132 = vsub.s32 0, %v1131
        %v1133 = vrot.slane %v1108, %v1132
        %v1135 = vadd.f32 %v1128, %v1133
        %v1136 = vpack.c.bf16 %v1135, %v1135
        %v1137 = vld [vmem:[%s9] sm:$0xf]
        %v1138 = vld [vmem:[%s9 + $0x4] sm:$0xf]
        %v1139 = vld [vmem:[%s9 + $0x8] sm:$0xf]
        %v1140 = vld [vmem:[%s9 + $0xc] sm:$0xf]
        %v1141 = vld [vmem:[%s10] sm:$0x1]
        %v1143 = vlaneseq
        %v1144 = vshrl.u32 %v1143, 7
        %v1145 = vsub.s32 0, %v1144
        %v1146 = vrot.slane %v1141, %v1145
        %v1152 = vunpack.c.l.b16 %v1137
        %v1153 = vunpack.c.l.b16 %v1138
        %v1154 = vunpack.c.l.b16 %v1139
        %v1155 = vunpack.c.l.b16 %v1140
        %v1156 = vpack.c.b16 %v1153, %v1152
        %v1157 = vpack.c.b16 %v1155, %v1154
        %v1161 = vsel %vm440, %v1136, 0
        %1163 = vmatprep.subr.bf16.mxu0 0
        %1164 = vmatpush1.bf16.msra.mxu0 0
        %1165 = vmatprep.subr.bf16.mxu0 0
        %1166 = vmatpush1.bf16.msra.mxu0 0
        %1167 = vmatprep.subr.bf16.mxu0 0
        %1168 = vmatpush1.bf16.msra.mxu0 0
        %1169 = vmatprep.subr.bf16.mxu0 0
        %1170 = vmatpush1.bf16.msra.mxu0 0
        %1171 = vmatprep.subr.bf16.mxu0 0
        %1172 = vmatpush1.bf16.msra.mxu0 0
        %1173 = vmatprep.subr.bf16.mxu0 0
        %1174 = vmatpush1.bf16.msra.mxu0 0
        %1175 = vmatprep.subr.bf16.mxu0 0
        %1176 = vmatpush1.bf16.msra.mxu0 %v1157
        %1177 = vmatprep.subr.bf16.mxu0 0
        %1178 = vmatpush1.bf16.msra.mxu0 %v1156
        %1179 = vmatprep.subr.bf16.mxu0 0
        %1180 = vmatpush2.bf16.msra.mxu0 0
        %1181 = vmatprep.subr.bf16.mxu0 0
        %1182 = vmatpush2.bf16.msra.mxu0 0
        %1183 = vmatprep.subr.bf16.mxu0 0
        %1184 = vmatpush2.bf16.msra.mxu0 0
        %1185 = vmatprep.subr.bf16.mxu0 0
        %1186 = vmatpush2.bf16.msra.mxu0 0
        %1187 = vmatprep.subr.bf16.mxu0 0
        %1188 = vmatpush2.bf16.msra.mxu0 0
        %1189 = vmatprep.subr.bf16.mxu0 0
        %1190 = vmatpush2.bf16.msra.mxu0 0
        %1191 = vmatprep.subr.bf16.mxu0 0
        %1192 = vmatpush2.bf16.msra.mxu0 0
        %1193 = vmatprep.subr.bf16.mxu0 0
        %1194 = vmatpush2.bf16.msra.mxu0 0
        %1195 = vmatprep.mubr.bf16.mxu0 0
        %1196 = vmatmul.mubr.bf16.gmra.mxu0 %v1161
        %v1197 = vpop.f32.mrf.mxu0
        %v1198 = vadd.f32 %v1146, %v1197
        %v1199 = vpop.f32.mrf.mxu0
        %v1200 = vpop.f32.mrf.mxu0
        %v1201 = vpop.f32.mrf.mxu0
        %1202 = vdwg.mxu0
        %v1203 = vmax.f32 %v1198, 0.0
        %v1204 = vpack.c.bf16 %v1203, %v1203
        %v1205 = vld [vmem:[%s11] sm:$0xf]
        %v1206 = vld [vmem:[%s11 + $0x4] sm:$0xf]
        %v1207 = vld [vmem:[%s11 + $0x8] sm:$0xf]
        %v1208 = vld [vmem:[%s11 + $0xc] sm:$0xf]
        %v1209 = vld [vmem:[%s11 + $0x10] sm:$0xf]
        %v1210 = vld [vmem:[%s11 + $0x14] sm:$0xf]
        %v1211 = vld [vmem:[%s11 + $0x18] sm:$0xf]
        %v1212 = vld [vmem:[%s11 + $0x1c] sm:$0xf]
        %v1213 = vld [vmem:[%s11 + $0x20] sm:$0xf]
        %v1214 = vld [vmem:[%s11 + $0x24] sm:$0xf]
        %v1215 = vld [vmem:[%s11 + $0x28] sm:$0xf]
        %v1216 = vld [vmem:[%s11 + $0x2c] sm:$0xf]
        %v1217 = vld [vmem:[%s11 + $0x30] sm:$0xf]
        %v1218 = vld [vmem:[%s11 + $0x34] sm:$0xf]
        %v1219 = vld [vmem:[%s11 + $0x38] sm:$0xf]
        %v1220 = vld [vmem:[%s11 + $0x3c] sm:$0xf]
        %v1237 = vunpack.c.l.b16 %v1205
        %v1238 = vunpack.c.l.b16 %v1206
        %v1239 = vunpack.c.l.b16 %v1207
        %v1240 = vunpack.c.l.b16 %v1208
        %v1241 = vunpack.c.l.b16 %v1209
        %v1242 = vunpack.c.l.b16 %v1210
        %v1243 = vunpack.c.l.b16 %v1211
        %v1244 = vunpack.c.l.b16 %v1212
        %v1245 = vunpack.c.l.b16 %v1213
        %v1246 = vunpack.c.l.b16 %v1214
        %v1247 = vunpack.c.l.b16 %v1215
        %v1248 = vunpack.c.l.b16 %v1216
        %v1249 = vunpack.c.l.b16 %v1217
        %v1250 = vunpack.c.l.b16 %v1218
        %v1251 = vunpack.c.l.b16 %v1219
        %v1252 = vunpack.c.l.b16 %v1220
        %v1253 = vpack.c.b16 %v1238, %v1237
        %v1254 = vpack.c.b16 %v1240, %v1239
        %v1255 = vpack.c.b16 %v1242, %v1241
        %v1256 = vpack.c.b16 %v1244, %v1243
        %v1257 = vpack.c.b16 %v1246, %v1245
        %v1258 = vpack.c.b16 %v1248, %v1247
        %v1259 = vpack.c.b16 %v1250, %v1249
        %v1260 = vpack.c.b16 %v1252, %v1251
        %1269 = vmatprep.subr.bf16.mxu0 0
        %1270 = vmatpush1.bf16.msra.mxu0 %v1260
        %1271 = vmatprep.subr.bf16.mxu0 0
        %1272 = vmatpush1.bf16.msra.mxu0 %v1259
        %1273 = vmatprep.subr.bf16.mxu0 0
        %1274 = vmatpush1.bf16.msra.mxu0 %v1258
        %1275 = vmatprep.subr.bf16.mxu0 0
        %1276 = vmatpush1.bf16.msra.mxu0 %v1257
        %1277 = vmatprep.subr.bf16.mxu0 0
        %1278 = vmatpush1.bf16.msra.mxu0 %v1256
        %1279 = vmatprep.subr.bf16.mxu0 0
        %1280 = vmatpush1.bf16.msra.mxu0 %v1255
        %1281 = vmatprep.subr.bf16.mxu0 0
        %1282 = vmatpush1.bf16.msra.mxu0 %v1254
        %1283 = vmatprep.subr.bf16.mxu0 0
        %1284 = vmatpush1.bf16.msra.mxu0 %v1253
        %1285 = vmatprep.subr.bf16.mxu0 0
        %1286 = vmatpush2.bf16.msra.mxu0 0
        %1287 = vmatprep.subr.bf16.mxu0 0
        %1288 = vmatpush2.bf16.msra.mxu0 0
        %1289 = vmatprep.subr.bf16.mxu0 0
        %1290 = vmatpush2.bf16.msra.mxu0 0
        %1291 = vmatprep.subr.bf16.mxu0 0
        %1292 = vmatpush2.bf16.msra.mxu0 0
        %1293 = vmatprep.subr.bf16.mxu0 0
        %1294 = vmatpush2.bf16.msra.mxu0 0
        %1295 = vmatprep.subr.bf16.mxu0 0
        %1296 = vmatpush2.bf16.msra.mxu0 0
        %1297 = vmatprep.subr.bf16.mxu0 0
        %1298 = vmatpush2.bf16.msra.mxu0 0
        %1299 = vmatprep.subr.bf16.mxu0 0
        %1300 = vmatpush2.bf16.msra.mxu0 0
        %1301 = vmatprep.mubr.bf16.mxu0 0
        %1302 = vmatmul.mubr.bf16.gmra.mxu0 %v1204
        %v1303 = vpop.f32.mrf.mxu0
        %v1304 = vadd.f32 0.0, %v1303
        %v1305 = vpop.f32.mrf.mxu0
        %v1306 = vpop.f32.mrf.mxu0
        %v1307 = vpop.f32.mrf.mxu0
        %1308 = vdwg.mxu0
        %v1309 = vadd.f32 %v1106, %v1304
        %v1310 = vld [vmem:[%s12] sm:$0x1]
        %v1312 = vlaneseq
        %v1313 = vshrl.u32 %v1312, 7
        %v1314 = vsub.s32 0, %v1313
        %v1315 = vrot.slane %v1310, %v1314
        %v1317 = vadd.f32 %v1309, %v1315
        %1318 = vst.msk [vmem:[%s431] sm:$0xff] %vm440, %v1317
        %s1319 = sand.u32 %s313, 1
        %s1320 = scalar_lea.sflag [#allocation5], %s1319
        %s1321 = sand.u32 %s313, 1
        %s1322 = smul.addr %s1321, 8
        %s1323 = scalar_lea.vmem [#allocation4], %s1322
        // Predicated region
        $region73: #{tpu_custom_call.1} parent=71 // pred_check
          %p1324 = pneg %p323
        $region74: #{tpu_custom_call.1} parent=71 // pred_check_branch
          %1326 = sbr.rel (%p1324) target = $region76
        $region75: #{tpu_custom_call.1} parent=71 // pred_region
          %s1328 = ssub.s32 128, 128
          %1329 = vsyncadd %s1320, %s1328
          %s1330 = smul.addr %s27, 128
          %s1331 = scalar_lea.hbm %s13, %s1330
          %s1333 = sshll.u32 %s1323, 4
          %s1334 = int_to_ptr.vmem [resolvable:$true] %s1333
          %1336 = dma.vmem_to_hbm [thread:$0]  %s1334, 128, %s1331, %s1320
        $region76: #{tpu_custom_call.1} parent=71 // pred_fallthru
          _
      $region72: #{tpu_custom_call.1} parent=5 // pred_fallthru
        _
      %p1337 = scmp.le.s32.totalorder 2, %s22
      // Predicated region
      $region77: #{tpu_custom_call.1} parent=5 // pred_check
        %p1338 = pneg %p1337
      $region78: #{tpu_custom_call.1} parent=5 // pred_check_branch
        %1340 = sbr.rel (%p1338) target = $region80
      $region79: #{tpu_custom_call.1} parent=5 // pred_region
        %s1341 = ssub.s32 %s22, 2
        // Predicated region
        $region81: #{tpu_custom_call.1} parent=79 // pred_check
          %p1342 = pneg %p329
        $region82: #{tpu_custom_call.1} parent=79 // pred_check_branch
          %1344 = sbr.rel (%p1342) target = $region84
        $region83: #{tpu_custom_call.1} parent=79 // pred_region
          %s1345 = sand.u32 %s314, 1
          %s1346 = scalar_lea.sflag [#allocation5], %s1345
          %s1347 = sand.u32 %s314, 1
          %s1348 = smul.addr %s1347, 8
          %s1349 = scalar_lea.vmem [#allocation4], %s1348
          %1350 = dma.done %s1346, 128
        $region84: #{tpu_custom_call.1} parent=79 // pred_fallthru
          _
      $region80: #{tpu_custom_call.1} parent=5 // pred_fallthru
        _
    $region6: #{tpu_custom_call.1} parent=1 // loop_footer
      %s26 = sadd.s32 1, %s22
    $region7: #{tpu_custom_call.1} parent=1 // loop_footer_branch
      %21 = sbr.rel target = $region3
    $region8: #{tpu_custom_call.1} parent=1 // loop_exit
      _
    %1351 = vsyncpa [#allocation5], 1
    %s1352 = scalar_lea.sflag [#allocation5], 1
    %1353 = vsyncpa %s1352, 1

</llo_original>
